<compile_context>
chip_gen: v6e
topology: v6e:2x2x1
jax: 0.10.0
libtpu: 0.0.40
codegen_flags: <defaults>
</compile_context>

<pallas_src>
import jax
import jax.numpy as jnp
import numpy as np
from jax.experimental import pallas as pl
from jax.experimental.pallas import tpu as pltpu


def _roll_last(z, j):
    """Equivalent of jnp.roll(z, j, axis=-1) for a static 0 < j < z.shape[-1]."""
    n = z.shape[-1]
    return jnp.concatenate([z[:, n - j:], z[:, :n - j]], axis=-1)


def _dpfp_cell_kernel(x_ref, c_ref, w_ref,
                      wx_ref, bx_ref, wc_ref, bc_ref, wo_ref, bo_ref, eye_ref,
                      out_ref, wnew_ref):
    f32 = jnp.float32
    TB, dim = x_ref.shape
    inner = wnew_ref.shape[-1]
    nu = inner // (2 * dim)

    x = x_ref[...]                      # (TB, dim)
    c = c_ref[...]                      # (TB, dim)

    # Fused input projections (2 batched matmuls instead of 4 per-example ones):
    #   co = [v | k] from context,   xo = [q | beta_logit] from x.
    co = jnp.dot(c, wc_ref[...], preferred_element_type=f32) + bc_ref[...]   # (TB, inner+dim)
    xo = jnp.dot(x, wx_ref[...], preferred_element_type=f32) + bx_ref[...]   # (TB, dim+1)
    v = co[:, :inner]                   # (TB, inner)
    k = co[:, inner:inner + dim]        # (TB, dim)
    q = xo[:, :dim]                     # (TB, dim)
    beta = jax.nn.sigmoid(xo[:, dim:dim + 1])                                 # (TB, 1)

    # dpfp feature map; q and k stacked so the relu/roll/repeat chain runs once.
    qk = jnp.concatenate([q, k], axis=0)                                      # (2TB, dim)
    z2 = jnp.concatenate([jnp.maximum(qk, 0.0), jnp.maximum(-qk, 0.0)],
                         axis=-1)                                             # (2TB, 2*dim)
    z_rolled = jnp.concatenate([_roll_last(z2, j) for j in range(1, nu + 1)],
                               axis=-1)                                       # (2TB, inner)
    z_repeat = jnp.concatenate([z2] * nu, axis=-1)                            # (2TB, inner)
    feat = z_repeat * z_rolled
    qp = feat[:TB, :]                   # dpfp(q), (TB, inner)
    kp = feat[TB:, :]                   # dpfp(k), (TB, inner)

    kp_sum = jnp.sum(kp, axis=-1, keepdims=True)                              # (TB, 1)
    eye = eye_ref[...]                  # (inner, inner) constant identity (hoisted)
    wo = wo_ref[...]                    # (inner, dim)

    out_rows = []
    for b in range(TB):                 # TB <= 8: small static unroll
        W_b = w_ref[b]                                                        # (inner, inner)
        kp_b = kp[b:b + 1, :]                                                 # (1, inner)
        # fast-weight read: einsum('ij,j->j', W, kp) == kp * column_sum(W)
        col_sum = jnp.sum(W_b, axis=0, keepdims=True)                         # (1, inner)
        dv_b = beta[b:b + 1, :] * (v[b:b + 1, :] - kp_b * col_sum)            # (1, inner)
        # exact lane->sublane copy of dv (dv as a column) via the constant identity
        dv_col = jnp.sum(eye * dv_b, axis=1, keepdims=True)                   # (inner, 1)
        # rank-1 fast-weight update: pure VPU broadcast multiply-add
        wnew_ref[b] = W_b + dv_col * kp_b
        # second read: row_sum(W_new) = row_sum(W) + dv * sum(kp)  (algebraic)
        rs_col = jnp.sum(W_b, axis=1, keepdims=True) + dv_col * kp_sum[b:b + 1, :]
        # out_b = (qp_b * row_sum_new) @ wo  ==  qp_b @ (row_sum_new_col * wo)
        out_rows.append(jnp.dot(qp[b:b + 1, :], rs_col * wo,
                                preferred_element_type=f32))                  # (1, dim)

    out_ref[...] = jnp.concatenate(out_rows, axis=0) + bo_ref[...]
    # TODO(synk): nn.Dropout(p=0.0) is the identity at inference; omitted in-kernel.


def init_params(key, dim, nu):
    inner = 2 * dim * nu
    ks = jax.random.split(key, 10)

    def lin(kw, kb, fan_in, fan_out):
        s = 1.0 / float(np.sqrt(fan_in))
        w = jax.random.uniform(kw, (fan_in, fan_out), jnp.float32, -s, s)
        b = jax.random.uniform(kb, (1, fan_out), jnp.float32, -s, s)
        return w, b

    wq, bq = lin(ks[0], ks[1], dim, dim)
    wk, bk = lin(ks[2], ks[3], dim, dim)
    wv, bv = lin(ks[4], ks[5], dim, inner)
    wo, bo = lin(ks[6], ks[7], inner, dim)
    wb, bb = lin(ks[8], ks[9], dim, 1)
    return dict(wq=wq, bq=bq, wk=wk, bk=bk, wv=wv, bv=bv,
                wo=wo, bo=bo, wb=wb, bb=bb)


def dpfp_cell_forward(params, x, W, context=None, nu=1):
    if context is None:
        context = x
    B, dim = x.shape
    inner = 2 * dim * nu
    assert W.shape == (B, inner, inner)

    # Batch tile: largest divisor of B up to 8 (keeps >= 2 grid steps for B >= 16
    # so both v7x TensorCores get work via the 'parallel' grid axis).
    TB = 1
    for cand in (8, 4, 2):
        if B % cand == 0:
            TB = cand
            break
    nblk = B // TB

    p = params
    f32 = jnp.float32
    # Fused projection weights, ordered so the in-kernel lane slices start at
    # 0 / inner (v, k) and 0 / dim (q, beta).
    wc = jnp.concatenate([p['wv'], p['wk']], axis=1).astype(f32)   # (dim, inner+dim)
    bc = jnp.concatenate([p['bv'], p['bk']], axis=1).astype(f32)   # (1, inner+dim)
    wx = jnp.concatenate([p['wq'], p['wb']], axis=1).astype(f32)   # (dim, dim+1)
    bx = jnp.concatenate([p['bq'], p['bb']], axis=1).astype(f32)   # (1, dim+1)
    eye = jnp.eye(inner, dtype=f32)                                # hoisted constant

    consts = [wx, bx, wc, bc, p['wo'].astype(f32), p['bo'].astype(f32), eye]

    def full_spec(a):
        nd = a.ndim
        return pl.BlockSpec(a.shape, lambda g, _nd=nd: (0,) * _nd)

    grid_spec = pltpu.PrefetchScalarGridSpec(
        num_scalar_prefetch=0,
        grid=(nblk,),
        in_specs=[pl.BlockSpec((TB, dim), lambda g: (g, 0)),
                  pl.BlockSpec((TB, dim), lambda g: (g, 0)),
                  pl.BlockSpec((TB, inner, inner), lambda g: (g, 0, 0))]
                 + [full_spec(a) for a in consts],
        out_specs=(pl.BlockSpec((TB, dim), lambda g: (g, 0)),
                   pl.BlockSpec((TB, inner, inner), lambda g: (g, 0, 0))),
    )

    out, w_new = pl.pallas_call(
        _dpfp_cell_kernel,
        out_shape=(jax.ShapeDtypeStruct((B, dim), f32),
                   jax.ShapeDtypeStruct((B, inner, inner), f32)),
        grid_spec=grid_spec,
        # Fast-weight state dominates HBM traffic: alias W (input 2) -> W_new (output 1).
        input_output_aliases={2: 1},
        compiler_params=pltpu.CompilerParams(
            dimension_semantics=("parallel",),
            vmem_limit_bytes=32 * 1024 * 1024),
    )(x, context, W, *consts)
    return out, w_new


# ---------------- pure-JAX reference (mirrors the torch module) ----------------
def _dpfp_ref(z, nu):
    z2 = jnp.concatenate([jax.nn.relu(z), jax.nn.relu(-z)], axis=-1)
    zrol = jnp.concatenate([jnp.roll(z2, j, axis=-1) for j in range(1, nu + 1)], axis=-1)
    zrep = jnp.concatenate([z2] * nu, axis=-1)
    return zrep * zrol


def dpfp_cell_ref(params, x, W, context=None, nu=1):
    if context is None:
        context = x
    p = params
    q = x @ p['wq'] + p['bq']
    k = context @ p['wk'] + p['bk']
    v = context @ p['wv'] + p['bv']
    beta = jax.nn.sigmoid(x @ p['wb'] + p['bb'])
    kp = _dpfp_ref(k, nu)
    vo = kp * jnp.sum(W, axis=1)                    # einsum('bij,bj->bj')
    dv = beta * (v - vo)
    Wn = W + dv[:, :, None] * kp[:, None, :]        # einsum('bp,bq->bpq')
    qp = _dpfp_ref(q, nu)
    out = qp * jnp.sum(Wn, axis=2)                  # einsum('bij,bi->bi')
    out = out @ p['wo'] + p['bo']
    return out, Wn


if __name__ == "__main__":
    B, dim, nu = 16, 32, 2
    inner = 2 * dim * nu

    key = jax.random.PRNGKey(0)
    kx, kw, kparam = jax.random.split(key, 3)
    x = jax.random.normal(kx, (B, dim), jnp.float32)
    W = 0.05 * jax.random.normal(kw, (B, inner, inner), jnp.float32)
    params = init_params(kparam, dim, nu)

    # Reference first (the kernel aliases W to its W_new output).
    out_gold, W_gold = dpfp_cell_ref(params, x, W, nu=nu)
    out_gold = jax.block_until_ready(out_gold)
    W_gold = jax.block_until_ready(W_gold)

    out, W_new = dpfp_cell_forward(params, x, W, nu=nu)
    out = jax.block_until_ready(out)
    W_new = jax.block_until_ready(W_new)

    np.testing.assert_allclose(np.asarray(out), np.asarray(out_gold), rtol=2e-4, atol=2e-4)
    np.testing.assert_allclose(np.asarray(W_new), np.asarray(W_gold), rtol=2e-4, atol=2e-4)

    print("KERNEL_OK")
</pallas_src>

<mosaic_0001>
module attributes {stable_mosaic.version = 11 : i64} {
  func.func @_dpfp_cell_kernel(%arg0: i32, %arg1: memref<8x32xf32, #tpu.memory_space<vmem>>, %arg2: memref<8x32xf32, #tpu.memory_space<vmem>>, %arg3: memref<8x128x128xf32, #tpu.memory_space<vmem>>, %arg4: memref<32x33xf32, #tpu.memory_space<vmem>>, %arg5: memref<1x33xf32, #tpu.memory_space<vmem>>, %arg6: memref<32x160xf32, #tpu.memory_space<vmem>>, %arg7: memref<1x160xf32, #tpu.memory_space<vmem>>, %arg8: memref<128x32xf32, #tpu.memory_space<vmem>>, %arg9: memref<1x32xf32, #tpu.memory_space<vmem>>, %arg10: memref<128x128xf32, #tpu.memory_space<vmem>>, %arg11: memref<8x32xf32, #tpu.memory_space<vmem>>, %arg12: memref<8x128x128xf32, #tpu.memory_space<vmem>>) attributes {dimension_semantics = [#tpu.dimension_semantics<parallel>], iteration_bounds = array<i64: 2>, scalar_prefetch = 0 : i64, scratch_operands = 0 : i64, tpu.core_type = #tpu.core_type<tc>, window_params = [{transform_indices = @transform_0, window_bounds = array<i64: 8, 32>}, {transform_indices = @transform_1, window_bounds = array<i64: 8, 32>}, {transform_indices = @transform_2, window_bounds = array<i64: 8, 128, 128>}, {pipeline_mode = #tpu.pipeline_mode<synchronous>, transform_indices = @transform_3, window_bounds = array<i64: 32, 33>}, {pipeline_mode = #tpu.pipeline_mode<synchronous>, transform_indices = @transform_4, window_bounds = array<i64: 1, 33>}, {pipeline_mode = #tpu.pipeline_mode<synchronous>, transform_indices = @transform_5, window_bounds = array<i64: 32, 160>}, {pipeline_mode = #tpu.pipeline_mode<synchronous>, transform_indices = @transform_6, window_bounds = array<i64: 1, 160>}, {pipeline_mode = #tpu.pipeline_mode<synchronous>, transform_indices = @transform_7, window_bounds = array<i64: 128, 32>}, {pipeline_mode = #tpu.pipeline_mode<synchronous>, transform_indices = @transform_8, window_bounds = array<i64: 1, 32>}, {pipeline_mode = #tpu.pipeline_mode<synchronous>, transform_indices = @transform_9, window_bounds = array<i64: 128, 128>}, {transform_indices = @transform_10, window_bounds = array<i64: 8, 32>}, {transform_indices = @transform_11, window_bounds = array<i64: 8, 128, 128>}]} {
    %c0 = arith.constant 0 : index
    %c0_0 = arith.constant 0 : index
    %0 = vector.load %arg1[%c0, %c0_0] : memref<8x32xf32, #tpu.memory_space<vmem>>, vector<8x32xf32>
    %c0_1 = arith.constant 0 : index
    %c0_2 = arith.constant 0 : index
    %1 = vector.load %arg2[%c0_1, %c0_2] : memref<8x32xf32, #tpu.memory_space<vmem>>, vector<8x32xf32>
    %c0_3 = arith.constant 0 : index
    %c0_4 = arith.constant 0 : index
    %2 = vector.load %arg6[%c0_3, %c0_4] : memref<32x160xf32, #tpu.memory_space<vmem>>, vector<32x160xf32>
    %cst = arith.constant dense<0.000000e+00> : vector<8x160xf32>
    %3 = tpu.matmul %1, %2, %cst {dimension_numbers = #tpu.dot_dimension_numbers<[1], [0], [0], [1], [0, 0, 1, 1], [], []>} : vector<8x32xf32>, vector<32x160xf32>, vector<8x160xf32> -> vector<8x160xf32>
    %c0_5 = arith.constant 0 : index
    %c0_6 = arith.constant 0 : index
    %4 = vector.load %arg7[%c0_5, %c0_6] : memref<1x160xf32, #tpu.memory_space<vmem>>, vector<1x160xf32>
    %5 = vector.broadcast %4 : vector<1x160xf32> to vector<8x160xf32>
    %6 = arith.addf %3, %5 : vector<8x160xf32>
    %c0_7 = arith.constant 0 : index
    %c0_8 = arith.constant 0 : index
    %7 = vector.load %arg4[%c0_7, %c0_8] : memref<32x33xf32, #tpu.memory_space<vmem>>, vector<32x33xf32>
    %cst_9 = arith.constant dense<0.000000e+00> : vector<8x33xf32>
    %8 = tpu.matmul %0, %7, %cst_9 {dimension_numbers = #tpu.dot_dimension_numbers<[1], [0], [0], [1], [0, 0, 1, 1], [], []>} : vector<8x32xf32>, vector<32x33xf32>, vector<8x33xf32> -> vector<8x33xf32>
    %c0_10 = arith.constant 0 : index
    %c0_11 = arith.constant 0 : index
    %9 = vector.load %arg5[%c0_10, %c0_11] : memref<1x33xf32, #tpu.memory_space<vmem>>, vector<1x33xf32>
    %10 = vector.broadcast %9 : vector<1x33xf32> to vector<8x33xf32>
    %11 = arith.addf %8, %10 : vector<8x33xf32>
    %12 = vector.extract_strided_slice %6 {offsets = [0, 0], sizes = [8, 128], strides = [1, 1]} : vector<8x160xf32> to vector<8x128xf32>
    %13 = vector.extract_strided_slice %6 {offsets = [0, 128], sizes = [8, 32], strides = [1, 1]} : vector<8x160xf32> to vector<8x32xf32>
    %14 = vector.extract_strided_slice %11 {offsets = [0, 0], sizes = [8, 32], strides = [1, 1]} : vector<8x33xf32> to vector<8x32xf32>
    %15 = vector.extract_strided_slice %11 {offsets = [0, 32], sizes = [8, 1], strides = [1, 1]} : vector<8x33xf32> to vector<8x1xf32>
    %16 = arith.negf %15 : vector<8x1xf32>
    %17 = math.exp %16 : vector<8x1xf32>
    %cst_12 = arith.constant 1.000000e+00 : f32
    %18 = vector.broadcast %cst_12 : f32 to vector<8x1xf32>
    %19 = arith.addf %18, %17 : vector<8x1xf32>
    %20 = arith.divf %18, %19 : vector<8x1xf32>
    %21 = tpu.concatenate %14, %13 in 0 : vector<8x32xf32>, vector<8x32xf32> -> vector<16x32xf32>
    %cst_13 = arith.constant 0.000000e+00 : f32
    %22 = vector.broadcast %cst_13 : f32 to vector<16x32xf32>
    %23 = arith.maximumf %21, %22 : vector<16x32xf32>
    %cst_14 = arith.constant 0.000000e+00 : f32
    %24 = vector.broadcast %cst_14 : f32 to vector<16x32xf32>
    %25 = arith.subf %24, %21 : vector<16x32xf32>
    %cst_15 = arith.constant 0.000000e+00 : f32
    %26 = vector.broadcast %cst_15 : f32 to vector<16x32xf32>
    %27 = arith.maximumf %25, %26 : vector<16x32xf32>
    %28 = tpu.concatenate %23, %27 in 1 : vector<16x32xf32>, vector<16x32xf32> -> vector<16x64xf32>
    %29 = vector.extract_strided_slice %28 {offsets = [0, 63], sizes = [16, 1], strides = [1, 1]} : vector<16x64xf32> to vector<16x1xf32>
    %30 = vector.extract_strided_slice %28 {offsets = [0, 0], sizes = [16, 63], strides = [1, 1]} : vector<16x64xf32> to vector<16x63xf32>
    %31 = tpu.concatenate %29, %30 in 1 : vector<16x1xf32>, vector<16x63xf32> -> vector<16x64xf32>
    %32 = vector.extract_strided_slice %28 {offsets = [0, 62], sizes = [16, 2], strides = [1, 1]} : vector<16x64xf32> to vector<16x2xf32>
    %33 = vector.extract_strided_slice %28 {offsets = [0, 0], sizes = [16, 62], strides = [1, 1]} : vector<16x64xf32> to vector<16x62xf32>
    %34 = tpu.concatenate %32, %33 in 1 : vector<16x2xf32>, vector<16x62xf32> -> vector<16x64xf32>
    %35 = tpu.concatenate %31, %34 in 1 : vector<16x64xf32>, vector<16x64xf32> -> vector<16x128xf32>
    %36 = tpu.concatenate %28, %28 in 1 : vector<16x64xf32>, vector<16x64xf32> -> vector<16x128xf32>
    %37 = arith.mulf %36, %35 : vector<16x128xf32>
    %38 = vector.extract_strided_slice %37 {offsets = [0, 0], sizes = [8, 128], strides = [1, 1]} : vector<16x128xf32> to vector<8x128xf32>
    %39 = vector.extract_strided_slice %37 {offsets = [8, 0], sizes = [8, 128], strides = [1, 1]} : vector<16x128xf32> to vector<8x128xf32>
    %cst_16 = arith.constant dense<0.000000e+00> : vector<8xf32>
    %40 = vector.multi_reduction <add>, %39, %cst_16 [1] : vector<8x128xf32> to vector<8xf32>
    %41 = vector.shape_cast %40 : vector<8xf32> to vector<8x1xf32>
    %c0_17 = arith.constant 0 : index
    %c0_18 = arith.constant 0 : index
    %42 = vector.load %arg10[%c0_17, %c0_18] : memref<128x128xf32, #tpu.memory_space<vmem>>, vector<128x128xf32>
    %c0_19 = arith.constant 0 : index
    %c0_20 = arith.constant 0 : index
    %43 = vector.load %arg8[%c0_19, %c0_20] : memref<128x32xf32, #tpu.memory_space<vmem>>, vector<128x32xf32>
    %c0_21 = arith.constant 0 : index
    %c0_22 = arith.constant 0 : index
    %c0_23 = arith.constant 0 : index
    %44 = vector.load %arg3[%c0_21, %c0_22, %c0_23] : memref<8x128x128xf32, #tpu.memory_space<vmem>>, vector<1x128x128xf32>
    %45 = vector.shape_cast %44 : vector<1x128x128xf32> to vector<128x128xf32>
    %46 = vector.extract_strided_slice %39 {offsets = [0, 0], sizes = [1, 128], strides = [1, 1]} : vector<8x128xf32> to vector<1x128xf32>
    %cst_24 = arith.constant dense<0.000000e+00> : vector<128xf32>
    %47 = vector.multi_reduction <add>, %45, %cst_24 [0] : vector<128x128xf32> to vector<128xf32>
    %48 = vector.shape_cast %47 : vector<128xf32> to vector<1x128xf32>
    %49 = vector.extract_strided_slice %20 {offsets = [0, 0], sizes = [1, 1], strides = [1, 1]} : vector<8x1xf32> to vector<1x1xf32>
    %50 = vector.extract_strided_slice %12 {offsets = [0, 0], sizes = [1, 128], strides = [1, 1]} : vector<8x128xf32> to vector<1x128xf32>
    %51 = arith.mulf %46, %48 : vector<1x128xf32>
    %52 = arith.subf %50, %51 : vector<1x128xf32>
    %53 = vector.broadcast %49 : vector<1x1xf32> to vector<1x128xf32>
    %54 = arith.mulf %53, %52 : vector<1x128xf32>
    %55 = vector.broadcast %54 : vector<1x128xf32> to vector<128x128xf32>
    %56 = arith.mulf %42, %55 : vector<128x128xf32>
    %cst_25 = arith.constant dense<0.000000e+00> : vector<128xf32>
    %57 = vector.multi_reduction <add>, %56, %cst_25 [1] : vector<128x128xf32> to vector<128xf32>
    %58 = vector.shape_cast %57 : vector<128xf32> to vector<128x1xf32>
    %59 = vector.broadcast %58 : vector<128x1xf32> to vector<128x128xf32>
    %60 = vector.broadcast %46 : vector<1x128xf32> to vector<128x128xf32>
    %61 = arith.mulf %59, %60 : vector<128x128xf32>
    %62 = arith.addf %45, %61 : vector<128x128xf32>
    %c0_26 = arith.constant 0 : index
    %c0_27 = arith.constant 0 : index
    %c0_28 = arith.constant 0 : index
    %63 = vector.load %arg12[%c0_26, %c0_27, %c0_28] : memref<8x128x128xf32, #tpu.memory_space<vmem>>, vector<1x128x128xf32>
    %64 = vector.shape_cast %63 : vector<1x128x128xf32> to vector<128x128xf32>
    %65 = vector.shape_cast %62 : vector<128x128xf32> to vector<1x128x128xf32>
    tpu.vector_store %arg12[%c0_26, %c0_27, %c0_28], %65 {strides = array<i32>} : memref<8x128x128xf32, #tpu.memory_space<vmem>>, vector<1x128x128xf32>,
    %cst_29 = arith.constant dense<0.000000e+00> : vector<128xf32>
    %66 = vector.multi_reduction <add>, %45, %cst_29 [1] : vector<128x128xf32> to vector<128xf32>
    %67 = vector.shape_cast %66 : vector<128xf32> to vector<128x1xf32>
    %68 = vector.extract_strided_slice %41 {offsets = [0, 0], sizes = [1, 1], strides = [1, 1]} : vector<8x1xf32> to vector<1x1xf32>
    %69 = vector.broadcast %68 : vector<1x1xf32> to vector<128x1xf32>
    %70 = arith.mulf %58, %69 : vector<128x1xf32>
    %71 = arith.addf %67, %70 : vector<128x1xf32>
    %72 = vector.extract_strided_slice %38 {offsets = [0, 0], sizes = [1, 128], strides = [1, 1]} : vector<8x128xf32> to vector<1x128xf32>
    %73 = vector.broadcast %71 : vector<128x1xf32> to vector<128x32xf32>
    %74 = arith.mulf %73, %43 : vector<128x32xf32>
    %cst_30 = arith.constant dense<0.000000e+00> : vector<1x32xf32>
    %75 = tpu.matmul %72, %74, %cst_30 {dimension_numbers = #tpu.dot_dimension_numbers<[1], [0], [0], [1], [0, 0, 1, 1], [], []>} : vector<1x128xf32>, vector<128x32xf32>, vector<1x32xf32> -> vector<1x32xf32>
    %c1 = arith.constant 1 : index
    %c0_31 = arith.constant 0 : index
    %c0_32 = arith.constant 0 : index
    %76 = vector.load %arg3[%c1, %c0_31, %c0_32] : memref<8x128x128xf32, #tpu.memory_space<vmem>>, vector<1x128x128xf32>
    %77 = vector.shape_cast %76 : vector<1x128x128xf32> to vector<128x128xf32>
    %78 = vector.extract_strided_slice %39 {offsets = [1, 0], sizes = [1, 128], strides = [1, 1]} : vector<8x128xf32> to vector<1x128xf32>
    %cst_33 = arith.constant dense<0.000000e+00> : vector<128xf32>
    %79 = vector.multi_reduction <add>, %77, %cst_33 [0] : vector<128x128xf32> to vector<128xf32>
    %80 = vector.shape_cast %79 : vector<128xf32> to vector<1x128xf32>
    %81 = vector.extract_strided_slice %20 {offsets = [1, 0], sizes = [1, 1], strides = [1, 1]} : vector<8x1xf32> to vector<1x1xf32>
    %82 = vector.extract_strided_slice %12 {offsets = [1, 0], sizes = [1, 128], strides = [1, 1]} : vector<8x128xf32> to vector<1x128xf32>
    %83 = arith.mulf %78, %80 : vector<1x128xf32>
    %84 = arith.subf %82, %83 : vector<1x128xf32>
    %85 = vector.broadcast %81 : vector<1x1xf32> to vector<1x128xf32>
    %86 = arith.mulf %85, %84 : vector<1x128xf32>
    %87 = vector.broadcast %86 : vector<1x128xf32> to vector<128x128xf32>
    %88 = arith.mulf %42, %87 : vector<128x128xf32>
    %cst_34 = arith.constant dense<0.000000e+00> : vector<128xf32>
    %89 = vector.multi_reduction <add>, %88, %cst_34 [1] : vector<128x128xf32> to vector<128xf32>
    %90 = vector.shape_cast %89 : vector<128xf32> to vector<128x1xf32>
    %91 = vector.broadcast %90 : vector<128x1xf32> to vector<128x128xf32>
    %92 = vector.broadcast %78 : vector<1x128xf32> to vector<128x128xf32>
    %93 = arith.mulf %91, %92 : vector<128x128xf32>
    %94 = arith.addf %77, %93 : vector<128x128xf32>
    %c1_35 = arith.constant 1 : index
    %c0_36 = arith.constant 0 : index
    %c0_37 = arith.constant 0 : index
    %95 = vector.load %arg12[%c1_35, %c0_36, %c0_37] : memref<8x128x128xf32, #tpu.memory_space<vmem>>, vector<1x128x128xf32>
    %96 = vector.shape_cast %95 : vector<1x128x128xf32> to vector<128x128xf32>
    %97 = vector.shape_cast %94 : vector<128x128xf32> to vector<1x128x128xf32>
    tpu.vector_store %arg12[%c1_35, %c0_36, %c0_37], %97 {strides = array<i32>} : memref<8x128x128xf32, #tpu.memory_space<vmem>>, vector<1x128x128xf32>,
    %cst_38 = arith.constant dense<0.000000e+00> : vector<128xf32>
    %98 = vector.multi_reduction <add>, %77, %cst_38 [1] : vector<128x128xf32> to vector<128xf32>
    %99 = vector.shape_cast %98 : vector<128xf32> to vector<128x1xf32>
    %100 = vector.extract_strided_slice %41 {offsets = [1, 0], sizes = [1, 1], strides = [1, 1]} : vector<8x1xf32> to vector<1x1xf32>
    %101 = vector.broadcast %100 : vector<1x1xf32> to vector<128x1xf32>
    %102 = arith.mulf %90, %101 : vector<128x1xf32>
    %103 = arith.addf %99, %102 : vector<128x1xf32>
    %104 = vector.extract_strided_slice %38 {offsets = [1, 0], sizes = [1, 128], strides = [1, 1]} : vector<8x128xf32> to vector<1x128xf32>
    %105 = vector.broadcast %103 : vector<128x1xf32> to vector<128x32xf32>
    %106 = arith.mulf %105, %43 : vector<128x32xf32>
    %cst_39 = arith.constant dense<0.000000e+00> : vector<1x32xf32>
    %107 = tpu.matmul %104, %106, %cst_39 {dimension_numbers = #tpu.dot_dimension_numbers<[1], [0], [0], [1], [0, 0, 1, 1], [], []>} : vector<1x128xf32>, vector<128x32xf32>, vector<1x32xf32> -> vector<1x32xf32>
    %c2 = arith.constant 2 : index
    %c0_40 = arith.constant 0 : index
    %c0_41 = arith.constant 0 : index
    %108 = vector.load %arg3[%c2, %c0_40, %c0_41] : memref<8x128x128xf32, #tpu.memory_space<vmem>>, vector<1x128x128xf32>
    %109 = vector.shape_cast %108 : vector<1x128x128xf32> to vector<128x128xf32>
    %110 = vector.extract_strided_slice %39 {offsets = [2, 0], sizes = [1, 128], strides = [1, 1]} : vector<8x128xf32> to vector<1x128xf32>
    %cst_42 = arith.constant dense<0.000000e+00> : vector<128xf32>
    %111 = vector.multi_reduction <add>, %109, %cst_42 [0] : vector<128x128xf32> to vector<128xf32>
    %112 = vector.shape_cast %111 : vector<128xf32> to vector<1x128xf32>
    %113 = vector.extract_strided_slice %20 {offsets = [2, 0], sizes = [1, 1], strides = [1, 1]} : vector<8x1xf32> to vector<1x1xf32>
    %114 = vector.extract_strided_slice %12 {offsets = [2, 0], sizes = [1, 128], strides = [1, 1]} : vector<8x128xf32> to vector<1x128xf32>
    %115 = arith.mulf %110, %112 : vector<1x128xf32>
    %116 = arith.subf %114, %115 : vector<1x128xf32>
    %117 = vector.broadcast %113 : vector<1x1xf32> to vector<1x128xf32>
    %118 = arith.mulf %117, %116 : vector<1x128xf32>
    %119 = vector.broadcast %118 : vector<1x128xf32> to vector<128x128xf32>
    %120 = arith.mulf %42, %119 : vector<128x128xf32>
    %cst_43 = arith.constant dense<0.000000e+00> : vector<128xf32>
    %121 = vector.multi_reduction <add>, %120, %cst_43 [1] : vector<128x128xf32> to vector<128xf32>
    %122 = vector.shape_cast %121 : vector<128xf32> to vector<128x1xf32>
    %123 = vector.broadcast %122 : vector<128x1xf32> to vector<128x128xf32>
    %124 = vector.broadcast %110 : vector<1x128xf32> to vector<128x128xf32>
    %125 = arith.mulf %123, %124 : vector<128x128xf32>
    %126 = arith.addf %109, %125 : vector<128x128xf32>
    %c2_44 = arith.constant 2 : index
    %c0_45 = arith.constant 0 : index
    %c0_46 = arith.constant 0 : index
    %127 = vector.load %arg12[%c2_44, %c0_45, %c0_46] : memref<8x128x128xf32, #tpu.memory_space<vmem>>, vector<1x128x128xf32>
    %128 = vector.shape_cast %127 : vector<1x128x128xf32> to vector<128x128xf32>
    %129 = vector.shape_cast %126 : vector<128x128xf32> to vector<1x128x128xf32>
    tpu.vector_store %arg12[%c2_44, %c0_45, %c0_46], %129 {strides = array<i32>} : memref<8x128x128xf32, #tpu.memory_space<vmem>>, vector<1x128x128xf32>,
    %cst_47 = arith.constant dense<0.000000e+00> : vector<128xf32>
    %130 = vector.multi_reduction <add>, %109, %cst_47 [1] : vector<128x128xf32> to vector<128xf32>
    %131 = vector.shape_cast %130 : vector<128xf32> to vector<128x1xf32>
    %132 = vector.extract_strided_slice %41 {offsets = [2, 0], sizes = [1, 1], strides = [1, 1]} : vector<8x1xf32> to vector<1x1xf32>
    %133 = vector.broadcast %132 : vector<1x1xf32> to vector<128x1xf32>
    %134 = arith.mulf %122, %133 : vector<128x1xf32>
    %135 = arith.addf %131, %134 : vector<128x1xf32>
    %136 = vector.extract_strided_slice %38 {offsets = [2, 0], sizes = [1, 128], strides = [1, 1]} : vector<8x128xf32> to vector<1x128xf32>
    %137 = vector.broadcast %135 : vector<128x1xf32> to vector<128x32xf32>
    %138 = arith.mulf %137, %43 : vector<128x32xf32>
    %cst_48 = arith.constant dense<0.000000e+00> : vector<1x32xf32>
    %139 = tpu.matmul %136, %138, %cst_48 {dimension_numbers = #tpu.dot_dimension_numbers<[1], [0], [0], [1], [0, 0, 1, 1], [], []>} : vector<1x128xf32>, vector<128x32xf32>, vector<1x32xf32> -> vector<1x32xf32>
    %c3 = arith.constant 3 : index
    %c0_49 = arith.constant 0 : index
    %c0_50 = arith.constant 0 : index
    %140 = vector.load %arg3[%c3, %c0_49, %c0_50] : memref<8x128x128xf32, #tpu.memory_space<vmem>>, vector<1x128x128xf32>
    %141 = vector.shape_cast %140 : vector<1x128x128xf32> to vector<128x128xf32>
    %142 = vector.extract_strided_slice %39 {offsets = [3, 0], sizes = [1, 128], strides = [1, 1]} : vector<8x128xf32> to vector<1x128xf32>
    %cst_51 = arith.constant dense<0.000000e+00> : vector<128xf32>
    %143 = vector.multi_reduction <add>, %141, %cst_51 [0] : vector<128x128xf32> to vector<128xf32>
    %144 = vector.shape_cast %143 : vector<128xf32> to vector<1x128xf32>
    %145 = vector.extract_strided_slice %20 {offsets = [3, 0], sizes = [1, 1], strides = [1, 1]} : vector<8x1xf32> to vector<1x1xf32>
    %146 = vector.extract_strided_slice %12 {offsets = [3, 0], sizes = [1, 128], strides = [1, 1]} : vector<8x128xf32> to vector<1x128xf32>
    %147 = arith.mulf %142, %144 : vector<1x128xf32>
    %148 = arith.subf %146, %147 : vector<1x128xf32>
    %149 = vector.broadcast %145 : vector<1x1xf32> to vector<1x128xf32>
    %150 = arith.mulf %149, %148 : vector<1x128xf32>
    %151 = vector.broadcast %150 : vector<1x128xf32> to vector<128x128xf32>
    %152 = arith.mulf %42, %151 : vector<128x128xf32>
    %cst_52 = arith.constant dense<0.000000e+00> : vector<128xf32>
    %153 = vector.multi_reduction <add>, %152, %cst_52 [1] : vector<128x128xf32> to vector<128xf32>
    %154 = vector.shape_cast %153 : vector<128xf32> to vector<128x1xf32>
    %155 = vector.broadcast %154 : vector<128x1xf32> to vector<128x128xf32>
    %156 = vector.broadcast %142 : vector<1x128xf32> to vector<128x128xf32>
    %157 = arith.mulf %155, %156 : vector<128x128xf32>
    %158 = arith.addf %141, %157 : vector<128x128xf32>
    %c3_53 = arith.constant 3 : index
    %c0_54 = arith.constant 0 : index
    %c0_55 = arith.constant 0 : index
    %159 = vector.load %arg12[%c3_53, %c0_54, %c0_55] : memref<8x128x128xf32, #tpu.memory_space<vmem>>, vector<1x128x128xf32>
    %160 = vector.shape_cast %159 : vector<1x128x128xf32> to vector<128x128xf32>
    %161 = vector.shape_cast %158 : vector<128x128xf32> to vector<1x128x128xf32>
    tpu.vector_store %arg12[%c3_53, %c0_54, %c0_55], %161 {strides = array<i32>} : memref<8x128x128xf32, #tpu.memory_space<vmem>>, vector<1x128x128xf32>,
    %cst_56 = arith.constant dense<0.000000e+00> : vector<128xf32>
    %162 = vector.multi_reduction <add>, %141, %cst_56 [1] : vector<128x128xf32> to vector<128xf32>
    %163 = vector.shape_cast %162 : vector<128xf32> to vector<128x1xf32>
    %164 = vector.extract_strided_slice %41 {offsets = [3, 0], sizes = [1, 1], strides = [1, 1]} : vector<8x1xf32> to vector<1x1xf32>
    %165 = vector.broadcast %164 : vector<1x1xf32> to vector<128x1xf32>
    %166 = arith.mulf %154, %165 : vector<128x1xf32>
    %167 = arith.addf %163, %166 : vector<128x1xf32>
    %168 = vector.extract_strided_slice %38 {offsets = [3, 0], sizes = [1, 128], strides = [1, 1]} : vector<8x128xf32> to vector<1x128xf32>
    %169 = vector.broadcast %167 : vector<128x1xf32> to vector<128x32xf32>
    %170 = arith.mulf %169, %43 : vector<128x32xf32>
    %cst_57 = arith.constant dense<0.000000e+00> : vector<1x32xf32>
    %171 = tpu.matmul %168, %170, %cst_57 {dimension_numbers = #tpu.dot_dimension_numbers<[1], [0], [0], [1], [0, 0, 1, 1], [], []>} : vector<1x128xf32>, vector<128x32xf32>, vector<1x32xf32> -> vector<1x32xf32>
    %c4 = arith.constant 4 : index
    %c0_58 = arith.constant 0 : index
    %c0_59 = arith.constant 0 : index
    %172 = vector.load %arg3[%c4, %c0_58, %c0_59] : memref<8x128x128xf32, #tpu.memory_space<vmem>>, vector<1x128x128xf32>
    %173 = vector.shape_cast %172 : vector<1x128x128xf32> to vector<128x128xf32>
    %174 = vector.extract_strided_slice %39 {offsets = [4, 0], sizes = [1, 128], strides = [1, 1]} : vector<8x128xf32> to vector<1x128xf32>
    %cst_60 = arith.constant dense<0.000000e+00> : vector<128xf32>
    %175 = vector.multi_reduction <add>, %173, %cst_60 [0] : vector<128x128xf32> to vector<128xf32>
    %176 = vector.shape_cast %175 : vector<128xf32> to vector<1x128xf32>
    %177 = vector.extract_strided_slice %20 {offsets = [4, 0], sizes = [1, 1], strides = [1, 1]} : vector<8x1xf32> to vector<1x1xf32>
    %178 = vector.extract_strided_slice %12 {offsets = [4, 0], sizes = [1, 128], strides = [1, 1]} : vector<8x128xf32> to vector<1x128xf32>
    %179 = arith.mulf %174, %176 : vector<1x128xf32>
    %180 = arith.subf %178, %179 : vector<1x128xf32>
    %181 = vector.broadcast %177 : vector<1x1xf32> to vector<1x128xf32>
    %182 = arith.mulf %181, %180 : vector<1x128xf32>
    %183 = vector.broadcast %182 : vector<1x128xf32> to vector<128x128xf32>
    %184 = arith.mulf %42, %183 : vector<128x128xf32>
    %cst_61 = arith.constant dense<0.000000e+00> : vector<128xf32>
    %185 = vector.multi_reduction <add>, %184, %cst_61 [1] : vector<128x128xf32> to vector<128xf32>
    %186 = vector.shape_cast %185 : vector<128xf32> to vector<128x1xf32>
    %187 = vector.broadcast %186 : vector<128x1xf32> to vector<128x128xf32>
    %188 = vector.broadcast %174 : vector<1x128xf32> to vector<128x128xf32>
    %189 = arith.mulf %187, %188 : vector<128x128xf32>
    %190 = arith.addf %173, %189 : vector<128x128xf32>
    %c4_62 = arith.constant 4 : index
    %c0_63 = arith.constant 0 : index
    %c0_64 = arith.constant 0 : index
    %191 = vector.load %arg12[%c4_62, %c0_63, %c0_64] : memref<8x128x128xf32, #tpu.memory_space<vmem>>, vector<1x128x128xf32>
    %192 = vector.shape_cast %191 : vector<1x128x128xf32> to vector<128x128xf32>
    %193 = vector.shape_cast %190 : vector<128x128xf32> to vector<1x128x128xf32>
    tpu.vector_store %arg12[%c4_62, %c0_63, %c0_64], %193 {strides = array<i32>} : memref<8x128x128xf32, #tpu.memory_space<vmem>>, vector<1x128x128xf32>,
    %cst_65 = arith.constant dense<0.000000e+00> : vector<128xf32>
    %194 = vector.multi_reduction <add>, %173, %cst_65 [1] : vector<128x128xf32> to vector<128xf32>
    %195 = vector.shape_cast %194 : vector<128xf32> to vector<128x1xf32>
    %196 = vector.extract_strided_slice %41 {offsets = [4, 0], sizes = [1, 1], strides = [1, 1]} : vector<8x1xf32> to vector<1x1xf32>
    %197 = vector.broadcast %196 : vector<1x1xf32> to vector<128x1xf32>
    %198 = arith.mulf %186, %197 : vector<128x1xf32>
    %199 = arith.addf %195, %198 : vector<128x1xf32>
    %200 = vector.extract_strided_slice %38 {offsets = [4, 0], sizes = [1, 128], strides = [1, 1]} : vector<8x128xf32> to vector<1x128xf32>
    %201 = vector.broadcast %199 : vector<128x1xf32> to vector<128x32xf32>
    %202 = arith.mulf %201, %43 : vector<128x32xf32>
    %cst_66 = arith.constant dense<0.000000e+00> : vector<1x32xf32>
    %203 = tpu.matmul %200, %202, %cst_66 {dimension_numbers = #tpu.dot_dimension_numbers<[1], [0], [0], [1], [0, 0, 1, 1], [], []>} : vector<1x128xf32>, vector<128x32xf32>, vector<1x32xf32> -> vector<1x32xf32>
    %c5 = arith.constant 5 : index
    %c0_67 = arith.constant 0 : index
    %c0_68 = arith.constant 0 : index
    %204 = vector.load %arg3[%c5, %c0_67, %c0_68] : memref<8x128x128xf32, #tpu.memory_space<vmem>>, vector<1x128x128xf32>
    %205 = vector.shape_cast %204 : vector<1x128x128xf32> to vector<128x128xf32>
    %206 = vector.extract_strided_slice %39 {offsets = [5, 0], sizes = [1, 128], strides = [1, 1]} : vector<8x128xf32> to vector<1x128xf32>
    %cst_69 = arith.constant dense<0.000000e+00> : vector<128xf32>
    %207 = vector.multi_reduction <add>, %205, %cst_69 [0] : vector<128x128xf32> to vector<128xf32>
    %208 = vector.shape_cast %207 : vector<128xf32> to vector<1x128xf32>
    %209 = vector.extract_strided_slice %20 {offsets = [5, 0], sizes = [1, 1], strides = [1, 1]} : vector<8x1xf32> to vector<1x1xf32>
    %210 = vector.extract_strided_slice %12 {offsets = [5, 0], sizes = [1, 128], strides = [1, 1]} : vector<8x128xf32> to vector<1x128xf32>
    %211 = arith.mulf %206, %208 : vector<1x128xf32>
    %212 = arith.subf %210, %211 : vector<1x128xf32>
    %213 = vector.broadcast %209 : vector<1x1xf32> to vector<1x128xf32>
    %214 = arith.mulf %213, %212 : vector<1x128xf32>
    %215 = vector.broadcast %214 : vector<1x128xf32> to vector<128x128xf32>
    %216 = arith.mulf %42, %215 : vector<128x128xf32>
    %cst_70 = arith.constant dense<0.000000e+00> : vector<128xf32>
    %217 = vector.multi_reduction <add>, %216, %cst_70 [1] : vector<128x128xf32> to vector<128xf32>
    %218 = vector.shape_cast %217 : vector<128xf32> to vector<128x1xf32>
    %219 = vector.broadcast %218 : vector<128x1xf32> to vector<128x128xf32>
    %220 = vector.broadcast %206 : vector<1x128xf32> to vector<128x128xf32>
    %221 = arith.mulf %219, %220 : vector<128x128xf32>
    %222 = arith.addf %205, %221 : vector<128x128xf32>
    %c5_71 = arith.constant 5 : index
    %c0_72 = arith.constant 0 : index
    %c0_73 = arith.constant 0 : index
    %223 = vector.load %arg12[%c5_71, %c0_72, %c0_73] : memref<8x128x128xf32, #tpu.memory_space<vmem>>, vector<1x128x128xf32>
    %224 = vector.shape_cast %223 : vector<1x128x128xf32> to vector<128x128xf32>
    %225 = vector.shape_cast %222 : vector<128x128xf32> to vector<1x128x128xf32>
    tpu.vector_store %arg12[%c5_71, %c0_72, %c0_73], %225 {strides = array<i32>} : memref<8x128x128xf32, #tpu.memory_space<vmem>>, vector<1x128x128xf32>,
    %cst_74 = arith.constant dense<0.000000e+00> : vector<128xf32>
    %226 = vector.multi_reduction <add>, %205, %cst_74 [1] : vector<128x128xf32> to vector<128xf32>
    %227 = vector.shape_cast %226 : vector<128xf32> to vector<128x1xf32>
    %228 = vector.extract_strided_slice %41 {offsets = [5, 0], sizes = [1, 1], strides = [1, 1]} : vector<8x1xf32> to vector<1x1xf32>
    %229 = vector.broadcast %228 : vector<1x1xf32> to vector<128x1xf32>
    %230 = arith.mulf %218, %229 : vector<128x1xf32>
    %231 = arith.addf %227, %230 : vector<128x1xf32>
    %232 = vector.extract_strided_slice %38 {offsets = [5, 0], sizes = [1, 128], strides = [1, 1]} : vector<8x128xf32> to vector<1x128xf32>
    %233 = vector.broadcast %231 : vector<128x1xf32> to vector<128x32xf32>
    %234 = arith.mulf %233, %43 : vector<128x32xf32>
    %cst_75 = arith.constant dense<0.000000e+00> : vector<1x32xf32>
    %235 = tpu.matmul %232, %234, %cst_75 {dimension_numbers = #tpu.dot_dimension_numbers<[1], [0], [0], [1], [0, 0, 1, 1], [], []>} : vector<1x128xf32>, vector<128x32xf32>, vector<1x32xf32> -> vector<1x32xf32>
    %c6 = arith.constant 6 : index
    %c0_76 = arith.constant 0 : index
    %c0_77 = arith.constant 0 : index
    %236 = vector.load %arg3[%c6, %c0_76, %c0_77] : memref<8x128x128xf32, #tpu.memory_space<vmem>>, vector<1x128x128xf32>
    %237 = vector.shape_cast %236 : vector<1x128x128xf32> to vector<128x128xf32>
    %238 = vector.extract_strided_slice %39 {offsets = [6, 0], sizes = [1, 128], strides = [1, 1]} : vector<8x128xf32> to vector<1x128xf32>
    %cst_78 = arith.constant dense<0.000000e+00> : vector<128xf32>
    %239 = vector.multi_reduction <add>, %237, %cst_78 [0] : vector<128x128xf32> to vector<128xf32>
    %240 = vector.shape_cast %239 : vector<128xf32> to vector<1x128xf32>
    %241 = vector.extract_strided_slice %20 {offsets = [6, 0], sizes = [1, 1], strides = [1, 1]} : vector<8x1xf32> to vector<1x1xf32>
    %242 = vector.extract_strided_slice %12 {offsets = [6, 0], sizes = [1, 128], strides = [1, 1]} : vector<8x128xf32> to vector<1x128xf32>
    %243 = arith.mulf %238, %240 : vector<1x128xf32>
    %244 = arith.subf %242, %243 : vector<1x128xf32>
    %245 = vector.broadcast %241 : vector<1x1xf32> to vector<1x128xf32>
    %246 = arith.mulf %245, %244 : vector<1x128xf32>
    %247 = vector.broadcast %246 : vector<1x128xf32> to vector<128x128xf32>
    %248 = arith.mulf %42, %247 : vector<128x128xf32>
    %cst_79 = arith.constant dense<0.000000e+00> : vector<128xf32>
    %249 = vector.multi_reduction <add>, %248, %cst_79 [1] : vector<128x128xf32> to vector<128xf32>
    %250 = vector.shape_cast %249 : vector<128xf32> to vector<128x1xf32>
    %251 = vector.broadcast %250 : vector<128x1xf32> to vector<128x128xf32>
    %252 = vector.broadcast %238 : vector<1x128xf32> to vector<128x128xf32>
    %253 = arith.mulf %251, %252 : vector<128x128xf32>
    %254 = arith.addf %237, %253 : vector<128x128xf32>
    %c6_80 = arith.constant 6 : index
    %c0_81 = arith.constant 0 : index
    %c0_82 = arith.constant 0 : index
    %255 = vector.load %arg12[%c6_80, %c0_81, %c0_82] : memref<8x128x128xf32, #tpu.memory_space<vmem>>, vector<1x128x128xf32>
    %256 = vector.shape_cast %255 : vector<1x128x128xf32> to vector<128x128xf32>
    %257 = vector.shape_cast %254 : vector<128x128xf32> to vector<1x128x128xf32>
    tpu.vector_store %arg12[%c6_80, %c0_81, %c0_82], %257 {strides = array<i32>} : memref<8x128x128xf32, #tpu.memory_space<vmem>>, vector<1x128x128xf32>,
    %cst_83 = arith.constant dense<0.000000e+00> : vector<128xf32>
    %258 = vector.multi_reduction <add>, %237, %cst_83 [1] : vector<128x128xf32> to vector<128xf32>
    %259 = vector.shape_cast %258 : vector<128xf32> to vector<128x1xf32>
    %260 = vector.extract_strided_slice %41 {offsets = [6, 0], sizes = [1, 1], strides = [1, 1]} : vector<8x1xf32> to vector<1x1xf32>
    %261 = vector.broadcast %260 : vector<1x1xf32> to vector<128x1xf32>
    %262 = arith.mulf %250, %261 : vector<128x1xf32>
    %263 = arith.addf %259, %262 : vector<128x1xf32>
    %264 = vector.extract_strided_slice %38 {offsets = [6, 0], sizes = [1, 128], strides = [1, 1]} : vector<8x128xf32> to vector<1x128xf32>
    %265 = vector.broadcast %263 : vector<128x1xf32> to vector<128x32xf32>
    %266 = arith.mulf %265, %43 : vector<128x32xf32>
    %cst_84 = arith.constant dense<0.000000e+00> : vector<1x32xf32>
    %267 = tpu.matmul %264, %266, %cst_84 {dimension_numbers = #tpu.dot_dimension_numbers<[1], [0], [0], [1], [0, 0, 1, 1], [], []>} : vector<1x128xf32>, vector<128x32xf32>, vector<1x32xf32> -> vector<1x32xf32>
    %c7 = arith.constant 7 : index
    %c0_85 = arith.constant 0 : index
    %c0_86 = arith.constant 0 : index
    %268 = vector.load %arg3[%c7, %c0_85, %c0_86] : memref<8x128x128xf32, #tpu.memory_space<vmem>>, vector<1x128x128xf32>
    %269 = vector.shape_cast %268 : vector<1x128x128xf32> to vector<128x128xf32>
    %270 = vector.extract_strided_slice %39 {offsets = [7, 0], sizes = [1, 128], strides = [1, 1]} : vector<8x128xf32> to vector<1x128xf32>
    %cst_87 = arith.constant dense<0.000000e+00> : vector<128xf32>
    %271 = vector.multi_reduction <add>, %269, %cst_87 [0] : vector<128x128xf32> to vector<128xf32>
    %272 = vector.shape_cast %271 : vector<128xf32> to vector<1x128xf32>
    %273 = vector.extract_strided_slice %20 {offsets = [7, 0], sizes = [1, 1], strides = [1, 1]} : vector<8x1xf32> to vector<1x1xf32>
    %274 = vector.extract_strided_slice %12 {offsets = [7, 0], sizes = [1, 128], strides = [1, 1]} : vector<8x128xf32> to vector<1x128xf32>
    %275 = arith.mulf %270, %272 : vector<1x128xf32>
    %276 = arith.subf %274, %275 : vector<1x128xf32>
    %277 = vector.broadcast %273 : vector<1x1xf32> to vector<1x128xf32>
    %278 = arith.mulf %277, %276 : vector<1x128xf32>
    %279 = vector.broadcast %278 : vector<1x128xf32> to vector<128x128xf32>
    %280 = arith.mulf %42, %279 : vector<128x128xf32>
    %cst_88 = arith.constant dense<0.000000e+00> : vector<128xf32>
    %281 = vector.multi_reduction <add>, %280, %cst_88 [1] : vector<128x128xf32> to vector<128xf32>
    %282 = vector.shape_cast %281 : vector<128xf32> to vector<128x1xf32>
    %283 = vector.broadcast %282 : vector<128x1xf32> to vector<128x128xf32>
    %284 = vector.broadcast %270 : vector<1x128xf32> to vector<128x128xf32>
    %285 = arith.mulf %283, %284 : vector<128x128xf32>
    %286 = arith.addf %269, %285 : vector<128x128xf32>
    %c7_89 = arith.constant 7 : index
    %c0_90 = arith.constant 0 : index
    %c0_91 = arith.constant 0 : index
    %287 = vector.load %arg12[%c7_89, %c0_90, %c0_91] : memref<8x128x128xf32, #tpu.memory_space<vmem>>, vector<1x128x128xf32>
    %288 = vector.shape_cast %287 : vector<1x128x128xf32> to vector<128x128xf32>
    %289 = vector.shape_cast %286 : vector<128x128xf32> to vector<1x128x128xf32>
    tpu.vector_store %arg12[%c7_89, %c0_90, %c0_91], %289 {strides = array<i32>} : memref<8x128x128xf32, #tpu.memory_space<vmem>>, vector<1x128x128xf32>,
    %cst_92 = arith.constant dense<0.000000e+00> : vector<128xf32>
    %290 = vector.multi_reduction <add>, %269, %cst_92 [1] : vector<128x128xf32> to vector<128xf32>
    %291 = vector.shape_cast %290 : vector<128xf32> to vector<128x1xf32>
    %292 = vector.extract_strided_slice %41 {offsets = [7, 0], sizes = [1, 1], strides = [1, 1]} : vector<8x1xf32> to vector<1x1xf32>
    %293 = vector.broadcast %292 : vector<1x1xf32> to vector<128x1xf32>
    %294 = arith.mulf %282, %293 : vector<128x1xf32>
    %295 = arith.addf %291, %294 : vector<128x1xf32>
    %296 = vector.extract_strided_slice %38 {offsets = [7, 0], sizes = [1, 128], strides = [1, 1]} : vector<8x128xf32> to vector<1x128xf32>
    %297 = vector.broadcast %295 : vector<128x1xf32> to vector<128x32xf32>
    %298 = arith.mulf %297, %43 : vector<128x32xf32>
    %cst_93 = arith.constant dense<0.000000e+00> : vector<1x32xf32>
    %299 = tpu.matmul %296, %298, %cst_93 {dimension_numbers = #tpu.dot_dimension_numbers<[1], [0], [0], [1], [0, 0, 1, 1], [], []>} : vector<1x128xf32>, vector<128x32xf32>, vector<1x32xf32> -> vector<1x32xf32>
    %300 = tpu.concatenate %75, %107, %139, %171, %203, %235, %267, %299 in 0 : vector<1x32xf32>, vector<1x32xf32>, vector<1x32xf32>, vector<1x32xf32>, vector<1x32xf32>, vector<1x32xf32>, vector<1x32xf32>, vector<1x32xf32> -> vector<8x32xf32>
    %c0_94 = arith.constant 0 : index
    %c0_95 = arith.constant 0 : index
    %301 = vector.load %arg9[%c0_94, %c0_95] : memref<1x32xf32, #tpu.memory_space<vmem>>, vector<1x32xf32>
    %302 = vector.broadcast %301 : vector<1x32xf32> to vector<8x32xf32>
    %303 = arith.addf %300, %302 : vector<8x32xf32>
    %c0_96 = arith.constant 0 : index
    %c0_97 = arith.constant 0 : index
    %304 = vector.load %arg11[%c0_96, %c0_97] : memref<8x32xf32, #tpu.memory_space<vmem>>, vector<8x32xf32>
    tpu.vector_store %arg11[%c0_96, %c0_97], %303 {strides = array<i32>} : memref<8x32xf32, #tpu.memory_space<vmem>>, vector<8x32xf32>,
    return
  }
  func.func @transform_0(%arg0: i32) -> (i32, i32) {
    %c0_i32 = arith.constant 0 : i32
    %c0_i32_0 = arith.constant 0 : i32
    return %arg0, %c0_i32 : i32, i32
  }
  func.func @transform_1(%arg0: i32) -> (i32, i32) {
    %c0_i32 = arith.constant 0 : i32
    %c0_i32_0 = arith.constant 0 : i32
    return %arg0, %c0_i32 : i32, i32
  }
  func.func @transform_2(%arg0: i32) -> (i32, i32, i32) {
    %c0_i32 = arith.constant 0 : i32
    %c0_i32_0 = arith.constant 0 : i32
    %c0_i32_1 = arith.constant 0 : i32
    return %arg0, %c0_i32, %c0_i32_0 : i32, i32, i32
  }
  func.func @transform_3(%arg0: i32) -> (i32, i32) {
    %c0_i32 = arith.constant 0 : i32
    %c0_i32_0 = arith.constant 0 : i32
    %c0_i32_1 = arith.constant 0 : i32
    return %c0_i32, %c0_i32_0 : i32, i32
  }
  func.func @transform_4(%arg0: i32) -> (i32, i32) {
    %c0_i32 = arith.constant 0 : i32
    %c0_i32_0 = arith.constant 0 : i32
    %c0_i32_1 = arith.constant 0 : i32
    return %c0_i32, %c0_i32_0 : i32, i32
  }
  func.func @transform_5(%arg0: i32) -> (i32, i32) {
    %c0_i32 = arith.constant 0 : i32
    %c0_i32_0 = arith.constant 0 : i32
    %c0_i32_1 = arith.constant 0 : i32
    return %c0_i32, %c0_i32_0 : i32, i32
  }
  func.func @transform_6(%arg0: i32) -> (i32, i32) {
    %c0_i32 = arith.constant 0 : i32
    %c0_i32_0 = arith.constant 0 : i32
    %c0_i32_1 = arith.constant 0 : i32
    return %c0_i32, %c0_i32_0 : i32, i32
  }
  func.func @transform_7(%arg0: i32) -> (i32, i32) {
    %c0_i32 = arith.constant 0 : i32
    %c0_i32_0 = arith.constant 0 : i32
    %c0_i32_1 = arith.constant 0 : i32
    return %c0_i32, %c0_i32_0 : i32, i32
  }
  func.func @transform_8(%arg0: i32) -> (i32, i32) {
    %c0_i32 = arith.constant 0 : i32
    %c0_i32_0 = arith.constant 0 : i32
    %c0_i32_1 = arith.constant 0 : i32
    return %c0_i32, %c0_i32_0 : i32, i32
  }
  func.func @transform_9(%arg0: i32) -> (i32, i32) {
    %c0_i32 = arith.constant 0 : i32
    %c0_i32_0 = arith.constant 0 : i32
    %c0_i32_1 = arith.constant 0 : i32
    return %c0_i32, %c0_i32_0 : i32, i32
  }
  func.func @transform_10(%arg0: i32) -> (i32, i32) {
    %c0_i32 = arith.constant 0 : i32
    %c0_i32_0 = arith.constant 0 : i32
    return %arg0, %c0_i32 : i32, i32
  }
  func.func @transform_11(%arg0: i32) -> (i32, i32, i32) {
    %c0_i32 = arith.constant 0 : i32
    %c0_i32_0 = arith.constant 0 : i32
    %c0_i32_1 = arith.constant 0 : i32
    return %arg0, %c0_i32, %c0_i32_0 : i32, i32, i32
  }
}

</mosaic_0001>

<llo_original>
// kernel: tpu_custom_call.1
$region0: #{tpu_custom_call.1}
  #allocation0 [shape = 'u32[]', space=smem, size = 0x4, offset = 0x4, fixed_abs, tag = 'smem constant byte address 0x4 - core index']
  #allocation1 [shape = 'u32[144,128]{1,0:T(1,128)}', space=vmem, size = 0x12000, scoped, tag = 'internal scratch']
  %s0 = inlined_call_operand.vmem [shape: f32[16,32], index: 0, kind: input, shape index: {}]
  %s1 = inlined_call_operand.vmem [shape: f32[16,32], index: 1, kind: input, shape index: {}]
  %s2 = inlined_call_operand.hbm [shape: f32[16,128,128], index: 2, kind: input, shape index: {}, may-alias: {2,11}]
  %s3 = inlined_call_operand.vmem [shape: f32[32,33], index: 3, kind: input, shape index: {}]
  %s4 = inlined_call_operand.vmem [shape: f32[1,33], index: 4, kind: input, shape index: {}]
  %s5 = inlined_call_operand.vmem [shape: f32[32,160], index: 5, kind: input, shape index: {}]
  %s6 = inlined_call_operand.vmem [shape: f32[1,160], index: 6, kind: input, shape index: {}]
  %s7 = inlined_call_operand.vmem [shape: f32[128,32], index: 7, kind: input, shape index: {}]
  %s8 = inlined_call_operand.vmem [shape: f32[1,32], index: 8, kind: input, shape index: {}]
  %s9 = inlined_call_operand.vmem [shape: f32[128,128], index: 9, kind: input, shape index: {}]
  %s10 = inlined_call_operand.hbm [shape: f32[16,32], index: 10, kind: output, shape index: {0}]
  %s11 = inlined_call_operand.hbm [shape: f32[16,128,128], index: 11, kind: output, shape index: {1}, may-alias: {2,11}]
  %12 = xla_tuple %s10, %s11
  %s13 = sld [smem:[#allocation0]]
  $region85: #{tpu_custom_call.1} parent=0
    _
  %s15 = ssub.s32 1, %s13
  %s16 = scalar_select 0, %s15, %s13
  $region1: #{tpu_custom_call.1} parent=0
    #allocation2 [shape = 'u8[1048576]{0}', space=vmem, size = 0x100000, scoped, tag = 'input window, operand 2']
    #allocation3 [shape = 's32[2]{0}', space=sflag, size = 0x8, scoped, tag = 'scoped memory for tpu_custom_call.1']
    #allocation4 [shape = 's32[2]{0}', space=sflag, size = 0x8, scoped, tag = 'scoped memory for tpu_custom_call.1']
    #allocation5 [shape = 'u8[8192]{0}', space=vmem, size = 0x2000, scoped, tag = 'output window, operand 0']
    #allocation6 [shape = 'u8[1048576]{0}', space=vmem, size = 0x100000, scoped, tag = 'output window, operand 1']
    #allocation7 [shape = 's32[2]{0}', space=sflag, size = 0x8, scoped, tag = 'scoped memory for tpu_custom_call.1']
    %17 = vsyncpa [#allocation3], 0
    %s18 = scalar_lea.sflag [#allocation3], 1
    %19 = vsyncpa %s18, 0
    %20 = vsyncpa [#allocation4], 0
    %s21 = scalar_lea.sflag [#allocation4], 1
    %22 = vsyncpa %s21, 0
    %23 = vsyncpa [#allocation7], 0
    %s24 = scalar_lea.sflag [#allocation7], 1
    %25 = vsyncpa %s24, 0
    loop: start=0, step=1, limit=4
    $region2: #{tpu_custom_call.1} parent=1 // loop_pre_header
      _
    $region3: #{tpu_custom_call.1} parent=1 // loop_header
      %s27 = sphi 0, %s31
      %p28 = scmp.ge.s32.totalorder %s27, 4
      %s37 = sphi 0, %s39
      %s40 = sphi 0, %s37
      %s41 = sphi 0, %s40
      %s57 = sphi 0, %s41
      %s63 = sphi 0, %s65
      %s66 = sphi 0, %s63
      %s67 = sphi 0, %s66
      %s83 = sphi 0, %s67
      %s89 = sphi 0, %s91
      %s92 = sphi 0, %s89
      %s93 = sphi 0, %s92
      %s109 = sphi 0, %s93
      %s113 = sphi 0, %s113
      %s115 = sphi 0, %s113
      %s116 = sphi 0, %s115
      %s130 = sphi 0, %s116
      %s134 = sphi 0, %s134
      %s136 = sphi 0, %s134
      %s137 = sphi 0, %s136
      %s151 = sphi 0, %s137
      %s155 = sphi 0, %s155
      %s157 = sphi 0, %s155
      %s158 = sphi 0, %s157
      %s172 = sphi 0, %s158
      %s176 = sphi 0, %s176
      %s178 = sphi 0, %s176
      %s179 = sphi 0, %s178
      %s193 = sphi 0, %s179
      %s197 = sphi 0, %s197
      %s199 = sphi 0, %s197
      %s200 = sphi 0, %s199
      %s214 = sphi 0, %s200
      %s218 = sphi 0, %s218
      %s220 = sphi 0, %s218
      %s221 = sphi 0, %s220
      %s235 = sphi 0, %s221
      %s239 = sphi 0, %s239
      %s241 = sphi 0, %s239
      %s242 = sphi 0, %s241
      %s256 = sphi 0, %s242
      %s262 = sphi 0, %s264
      %s265 = sphi 0, %s262
      %s266 = sphi 0, %s265
      %s282 = sphi 0, %s266
      %s288 = sphi 0, %s290
      %s291 = sphi 0, %s288
      %s292 = sphi 0, %s291
      %s308 = sphi 0, %s292
    $region4: #{tpu_custom_call.1} parent=1 // loop_header_branch
      %30 = sbr.rel (%p28) target = $region8
    $region5: #{tpu_custom_call.1} parent=1 // loop_body
      %s32 = ssub.s32 %s27, 1
      %s33 = ssub.s32 %s27, 2
      %s34 = sadd.s32 %s27, 1
      %s35 = ssub.s32 %s27, %s34
      %p36 = scmp.eq.s32.totalorder %s35, 0
      %s38 = sadd.s32 %s37, 1
      %s39 = scalar_select %p36, %s37, %s38
      %p42 = pneg %p36
      %p43 = scmp.eq.s32.totalorder %s27, 1
      %p44 = por %p42, %p43
      %p45 = scmp.ne.s32.totalorder %s37, %s40
      %p46 = scmp.eq.s32.totalorder %s27, 0
      %p47 = por %p45, %p46
      %p48 = scmp.ne.s32.totalorder %s37, %s40
      %p49 = scmp.eq.s32.totalorder %s32, 1
      %p50 = por %p48, %p49
      %p51 = scmp.ne.s32.totalorder %s40, %s41
      %p52 = scmp.eq.s32.totalorder %s32, 0
      %p53 = por %p51, %p52
      %p54 = scmp.ne.s32.totalorder %s40, %s41
      %p55 = scmp.eq.s32.totalorder %s33, 1
      %p56 = por %p54, %p55
      %p58 = scmp.ne.s32.totalorder %s41, %s57
      %p59 = scmp.eq.s32.totalorder %s33, 0
      %p60 = por %p58, %p59
      %s61 = ssub.s32 %s27, %s34
      %p62 = scmp.eq.s32.totalorder %s61, 0
      %s64 = sadd.s32 %s63, 1
      %s65 = scalar_select %p62, %s63, %s64
      %p68 = pneg %p62
      %p69 = scmp.eq.s32.totalorder %s27, 1
      %p70 = por %p68, %p69
      %p71 = scmp.ne.s32.totalorder %s63, %s66
      %p72 = scmp.eq.s32.totalorder %s27, 0
      %p73 = por %p71, %p72
      %p74 = scmp.ne.s32.totalorder %s63, %s66
      %p75 = scmp.eq.s32.totalorder %s32, 1
      %p76 = por %p74, %p75
      %p77 = scmp.ne.s32.totalorder %s66, %s67
      %p78 = scmp.eq.s32.totalorder %s32, 0
      %p79 = por %p77, %p78
      %p80 = scmp.ne.s32.totalorder %s66, %s67
      %p81 = scmp.eq.s32.totalorder %s33, 1
      %p82 = por %p80, %p81
      %p84 = scmp.ne.s32.totalorder %s67, %s83
      %p85 = scmp.eq.s32.totalorder %s33, 0
      %p86 = por %p84, %p85
      %s87 = ssub.s32 %s27, %s34
      %p88 = scmp.eq.s32.totalorder %s87, 0
      %s90 = sadd.s32 %s89, 1
      %s91 = scalar_select %p88, %s89, %s90
      %p94 = pneg %p88
      %p95 = scmp.eq.s32.totalorder %s27, 1
      %p96 = por %p94, %p95
      %p97 = scmp.ne.s32.totalorder %s89, %s92
      %p98 = scmp.eq.s32.totalorder %s27, 0
      %p99 = por %p97, %p98
      %p100 = scmp.ne.s32.totalorder %s89, %s92
      %p101 = scmp.eq.s32.totalorder %s32, 1
      %p102 = por %p100, %p101
      %p103 = scmp.ne.s32.totalorder %s92, %s93
      %p104 = scmp.eq.s32.totalorder %s32, 0
      %p105 = por %p103, %p104
      %p106 = scmp.ne.s32.totalorder %s92, %s93
      %p107 = scmp.eq.s32.totalorder %s33, 1
      %p108 = por %p106, %p107
      %p110 = scmp.ne.s32.totalorder %s93, %s109
      %p111 = scmp.eq.s32.totalorder %s33, 0
      %p112 = por %p110, %p111
      %s114 = sadd.s32 %s113, 1
      %p117 = scmp.eq.s32.totalorder %s27, 1
      %p118 = scmp.ne.s32.totalorder %s113, %s115
      %p119 = scmp.eq.s32.totalorder %s27, 0
      %p120 = por %p118, %p119
      %p121 = scmp.ne.s32.totalorder %s113, %s115
      %p122 = scmp.eq.s32.totalorder %s32, 1
      %p123 = por %p121, %p122
      %p124 = scmp.ne.s32.totalorder %s115, %s116
      %p125 = scmp.eq.s32.totalorder %s32, 0
      %p126 = por %p124, %p125
      %p127 = scmp.ne.s32.totalorder %s115, %s116
      %p128 = scmp.eq.s32.totalorder %s33, 1
      %p129 = por %p127, %p128
      %p131 = scmp.ne.s32.totalorder %s116, %s130
      %p132 = scmp.eq.s32.totalorder %s33, 0
      %p133 = por %p131, %p132
      %s135 = sadd.s32 %s134, 1
      %p138 = scmp.eq.s32.totalorder %s27, 1
      %p139 = scmp.ne.s32.totalorder %s134, %s136
      %p140 = scmp.eq.s32.totalorder %s27, 0
      %p141 = por %p139, %p140
      %p142 = scmp.ne.s32.totalorder %s134, %s136
      %p143 = scmp.eq.s32.totalorder %s32, 1
      %p144 = por %p142, %p143
      %p145 = scmp.ne.s32.totalorder %s136, %s137
      %p146 = scmp.eq.s32.totalorder %s32, 0
      %p147 = por %p145, %p146
      %p148 = scmp.ne.s32.totalorder %s136, %s137
      %p149 = scmp.eq.s32.totalorder %s33, 1
      %p150 = por %p148, %p149
      %p152 = scmp.ne.s32.totalorder %s137, %s151
      %p153 = scmp.eq.s32.totalorder %s33, 0
      %p154 = por %p152, %p153
      %s156 = sadd.s32 %s155, 1
      %p159 = scmp.eq.s32.totalorder %s27, 1
      %p160 = scmp.ne.s32.totalorder %s155, %s157
      %p161 = scmp.eq.s32.totalorder %s27, 0
      %p162 = por %p160, %p161
      %p163 = scmp.ne.s32.totalorder %s155, %s157
      %p164 = scmp.eq.s32.totalorder %s32, 1
      %p165 = por %p163, %p164
      %p166 = scmp.ne.s32.totalorder %s157, %s158
      %p167 = scmp.eq.s32.totalorder %s32, 0
      %p168 = por %p166, %p167
      %p169 = scmp.ne.s32.totalorder %s157, %s158
      %p170 = scmp.eq.s32.totalorder %s33, 1
      %p171 = por %p169, %p170
      %p173 = scmp.ne.s32.totalorder %s158, %s172
      %p174 = scmp.eq.s32.totalorder %s33, 0
      %p175 = por %p173, %p174
      %s177 = sadd.s32 %s176, 1
      %p180 = scmp.eq.s32.totalorder %s27, 1
      %p181 = scmp.ne.s32.totalorder %s176, %s178
      %p182 = scmp.eq.s32.totalorder %s27, 0
      %p183 = por %p181, %p182
      %p184 = scmp.ne.s32.totalorder %s176, %s178
      %p185 = scmp.eq.s32.totalorder %s32, 1
      %p186 = por %p184, %p185
      %p187 = scmp.ne.s32.totalorder %s178, %s179
      %p188 = scmp.eq.s32.totalorder %s32, 0
      %p189 = por %p187, %p188
      %p190 = scmp.ne.s32.totalorder %s178, %s179
      %p191 = scmp.eq.s32.totalorder %s33, 1
      %p192 = por %p190, %p191
      %p194 = scmp.ne.s32.totalorder %s179, %s193
      %p195 = scmp.eq.s32.totalorder %s33, 0
      %p196 = por %p194, %p195
      %s198 = sadd.s32 %s197, 1
      %p201 = scmp.eq.s32.totalorder %s27, 1
      %p202 = scmp.ne.s32.totalorder %s197, %s199
      %p203 = scmp.eq.s32.totalorder %s27, 0
      %p204 = por %p202, %p203
      %p205 = scmp.ne.s32.totalorder %s197, %s199
      %p206 = scmp.eq.s32.totalorder %s32, 1
      %p207 = por %p205, %p206
      %p208 = scmp.ne.s32.totalorder %s199, %s200
      %p209 = scmp.eq.s32.totalorder %s32, 0
      %p210 = por %p208, %p209
      %p211 = scmp.ne.s32.totalorder %s199, %s200
      %p212 = scmp.eq.s32.totalorder %s33, 1
      %p213 = por %p211, %p212
      %p215 = scmp.ne.s32.totalorder %s200, %s214
      %p216 = scmp.eq.s32.totalorder %s33, 0
      %p217 = por %p215, %p216
      %s219 = sadd.s32 %s218, 1
      %p222 = scmp.eq.s32.totalorder %s27, 1
      %p223 = scmp.ne.s32.totalorder %s218, %s220
      %p224 = scmp.eq.s32.totalorder %s27, 0
      %p225 = por %p223, %p224
      %p226 = scmp.ne.s32.totalorder %s218, %s220
      %p227 = scmp.eq.s32.totalorder %s32, 1
      %p228 = por %p226, %p227
      %p229 = scmp.ne.s32.totalorder %s220, %s221
      %p230 = scmp.eq.s32.totalorder %s32, 0
      %p231 = por %p229, %p230
      %p232 = scmp.ne.s32.totalorder %s220, %s221
      %p233 = scmp.eq.s32.totalorder %s33, 1
      %p234 = por %p232, %p233
      %p236 = scmp.ne.s32.totalorder %s221, %s235
      %p237 = scmp.eq.s32.totalorder %s33, 0
      %p238 = por %p236, %p237
      %s240 = sadd.s32 %s239, 1
      %p243 = scmp.eq.s32.totalorder %s27, 1
      %p244 = scmp.ne.s32.totalorder %s239, %s241
      %p245 = scmp.eq.s32.totalorder %s27, 0
      %p246 = por %p244, %p245
      %p247 = scmp.ne.s32.totalorder %s239, %s241
      %p248 = scmp.eq.s32.totalorder %s32, 1
      %p249 = por %p247, %p248
      %p250 = scmp.ne.s32.totalorder %s241, %s242
      %p251 = scmp.eq.s32.totalorder %s32, 0
      %p252 = por %p250, %p251
      %p253 = scmp.ne.s32.totalorder %s241, %s242
      %p254 = scmp.eq.s32.totalorder %s33, 1
      %p255 = por %p253, %p254
      %p257 = scmp.ne.s32.totalorder %s242, %s256
      %p258 = scmp.eq.s32.totalorder %s33, 0
      %p259 = por %p257, %p258
      %s260 = ssub.s32 %s27, %s34
      %p261 = scmp.eq.s32.totalorder %s260, 0
      %s263 = sadd.s32 %s262, 1
      %s264 = scalar_select %p261, %s262, %s263
      %p267 = pneg %p261
      %p268 = scmp.eq.s32.totalorder %s27, 1
      %p269 = por %p267, %p268
      %p270 = scmp.ne.s32.totalorder %s262, %s265
      %p271 = scmp.eq.s32.totalorder %s27, 0
      %p272 = por %p270, %p271
      %p273 = scmp.ne.s32.totalorder %s262, %s265
      %p274 = scmp.eq.s32.totalorder %s32, 1
      %p275 = por %p273, %p274
      %p276 = scmp.ne.s32.totalorder %s265, %s266
      %p277 = scmp.eq.s32.totalorder %s32, 0
      %p278 = por %p276, %p277
      %p279 = scmp.ne.s32.totalorder %s265, %s266
      %p280 = scmp.eq.s32.totalorder %s33, 1
      %p281 = por %p279, %p280
      %p283 = scmp.ne.s32.totalorder %s266, %s282
      %p284 = scmp.eq.s32.totalorder %s33, 0
      %p285 = por %p283, %p284
      %s286 = ssub.s32 %s27, %s34
      %p287 = scmp.eq.s32.totalorder %s286, 0
      %s289 = sadd.s32 %s288, 1
      %s290 = scalar_select %p287, %s288, %s289
      %p293 = pneg %p287
      %p294 = scmp.eq.s32.totalorder %s27, 1
      %p295 = por %p293, %p294
      %p296 = scmp.ne.s32.totalorder %s288, %s291
      %p297 = scmp.eq.s32.totalorder %s27, 0
      %p298 = por %p296, %p297
      %p299 = scmp.ne.s32.totalorder %s288, %s291
      %p300 = scmp.eq.s32.totalorder %s32, 1
      %p301 = por %p299, %p300
      %p302 = scmp.ne.s32.totalorder %s291, %s292
      %p303 = scmp.eq.s32.totalorder %s32, 0
      %p304 = por %p302, %p303
      %p305 = scmp.ne.s32.totalorder %s291, %s292
      %p306 = scmp.eq.s32.totalorder %s33, 1
      %p307 = por %p305, %p306
      %p309 = scmp.ne.s32.totalorder %s292, %s308
      %p310 = scmp.eq.s32.totalorder %s33, 0
      %p311 = por %p309, %p310
      %p312 = scmp.le.s32.totalorder 1, %s27
      %p313 = scmp.lt.s32.totalorder %s27, 3
      %p314 = pnand %p312, %p313
      %p315 = pneg %p314
      // Predicated region
      $region9: #{tpu_custom_call.1} parent=5 // pred_check
        _
      $region10: #{tpu_custom_call.1} parent=5 // pred_check_branch
        %317 = sbr.rel (%p314) target = $region12
      $region11: #{tpu_custom_call.1} parent=5 // pred_region
        %s318 = ssub.s32 %s27, 1
        // Predicated region
        $region13: #{tpu_custom_call.1} parent=11 // pred_check
          %p319 = pneg %p126
        $region14: #{tpu_custom_call.1} parent=11 // pred_check_branch
          %321 = sbr.rel (%p319) target = $region16
        $region15: #{tpu_custom_call.1} parent=11 // pred_region
          _
        $region16: #{tpu_custom_call.1} parent=11 // pred_fallthru
          _
        // Predicated region
        $region17: #{tpu_custom_call.1} parent=11 // pred_check
          %p322 = pneg %p147
        $region18: #{tpu_custom_call.1} parent=11 // pred_check_branch
          %324 = sbr.rel (%p322) target = $region20
        $region19: #{tpu_custom_call.1} parent=11 // pred_region
          _
        $region20: #{tpu_custom_call.1} parent=11 // pred_fallthru
          _
        // Predicated region
        $region21: #{tpu_custom_call.1} parent=11 // pred_check
          %p325 = pneg %p168
        $region22: #{tpu_custom_call.1} parent=11 // pred_check_branch
          %327 = sbr.rel (%p325) target = $region24
        $region23: #{tpu_custom_call.1} parent=11 // pred_region
          _
        $region24: #{tpu_custom_call.1} parent=11 // pred_fallthru
          _
        // Predicated region
        $region25: #{tpu_custom_call.1} parent=11 // pred_check
          %p328 = pneg %p189
        $region26: #{tpu_custom_call.1} parent=11 // pred_check_branch
          %330 = sbr.rel (%p328) target = $region28
        $region27: #{tpu_custom_call.1} parent=11 // pred_region
          _
        $region28: #{tpu_custom_call.1} parent=11 // pred_fallthru
          _
        // Predicated region
        $region29: #{tpu_custom_call.1} parent=11 // pred_check
          %p331 = pneg %p210
        $region30: #{tpu_custom_call.1} parent=11 // pred_check_branch
          %333 = sbr.rel (%p331) target = $region32
        $region31: #{tpu_custom_call.1} parent=11 // pred_region
          _
        $region32: #{tpu_custom_call.1} parent=11 // pred_fallthru
          _
        // Predicated region
        $region33: #{tpu_custom_call.1} parent=11 // pred_check
          %p334 = pneg %p231
        $region34: #{tpu_custom_call.1} parent=11 // pred_check_branch
          %336 = sbr.rel (%p334) target = $region36
        $region35: #{tpu_custom_call.1} parent=11 // pred_region
          _
        $region36: #{tpu_custom_call.1} parent=11 // pred_fallthru
          _
        // Predicated region
        $region37: #{tpu_custom_call.1} parent=11 // pred_check
          %p337 = pneg %p252
        $region38: #{tpu_custom_call.1} parent=11 // pred_check_branch
          %339 = sbr.rel (%p337) target = $region40
        $region39: #{tpu_custom_call.1} parent=11 // pred_region
          _
        $region40: #{tpu_custom_call.1} parent=11 // pred_fallthru
          _
      $region12: #{tpu_custom_call.1} parent=5 // pred_fallthru
        _
      %p340 = scmp.lt.s32.totalorder %s27, 2
      // Predicated region
      $region41: #{tpu_custom_call.1} parent=5 // pred_check
        %p341 = pneg %p340
      $region42: #{tpu_custom_call.1} parent=5 // pred_check_branch
        %343 = sbr.rel (%p341) target = $region44
      $region43: #{tpu_custom_call.1} parent=5 // pred_region
        // Predicated region
        $region45: #{tpu_custom_call.1} parent=43 // pred_check
          %p344 = pneg %p47
        $region46: #{tpu_custom_call.1} parent=43 // pred_check_branch
          %346 = sbr.rel (%p344) target = $region48
        $region47: #{tpu_custom_call.1} parent=43 // pred_region
          %p347 = scmp.lt.s32.totalorder %s27, 1
          %s348 = scalar_select %p347, %s27, 1
          %s349 = smul.addr %s348, 8
          %s350 = scalar_lea.vmem %s0, %s349
        $region48: #{tpu_custom_call.1} parent=43 // pred_fallthru
          _
        // Predicated region
        $region49: #{tpu_custom_call.1} parent=43 // pred_check
          %p351 = pneg %p73
        $region50: #{tpu_custom_call.1} parent=43 // pred_check_branch
          %353 = sbr.rel (%p351) target = $region52
        $region51: #{tpu_custom_call.1} parent=43 // pred_region
          %p354 = scmp.lt.s32.totalorder %s27, 1
          %s355 = scalar_select %p354, %s27, 1
          %s356 = smul.addr %s355, 8
          %s357 = scalar_lea.vmem %s1, %s356
        $region52: #{tpu_custom_call.1} parent=43 // pred_fallthru
          _
        // Predicated region
        $region53: #{tpu_custom_call.1} parent=43 // pred_check
          %p358 = pneg %p99
        $region54: #{tpu_custom_call.1} parent=43 // pred_check_branch
          %360 = sbr.rel (%p358) target = $region56
        $region55: #{tpu_custom_call.1} parent=43 // pred_region
          %s361 = sand.u32 %s89, 1
          %s362 = scalar_lea.sflag [#allocation3], %s361
          %s363 = sand.u32 %s89, 1
          %s364 = smul.addr %s363, 1024
          %s365 = scalar_lea.vmem [#allocation2], %s364
          %s366 = smul.u32 8, %s27
          %s368 = ssub.s32 16384, 16384
          %369 = vsyncadd %s362, %s368
          %s370 = smul.addr %s366, 16
          %s371 = smul.addr %s370, 128
          %s372 = scalar_lea.hbm %s2, %s371
          %s373 = sshll.u32 %s365, 4
          %s374 = int_to_ptr.vmem [resolvable:$true] %s373
          %379 = dma.hbm_to_vmem [thread:$0]  %s372, 16384, %s374, %s362, 128, 128, 8
        $region56: #{tpu_custom_call.1} parent=43 // pred_fallthru
          _
      $region44: #{tpu_custom_call.1} parent=5 // pred_fallthru
        _
      %p380 = scmp.le.s32.totalorder 1, %s27
      %p381 = scmp.lt.s32.totalorder %s27, 3
      %p382 = pnand %p380, %p381
      %p383 = pneg %p382
      // Predicated region
      $region57: #{tpu_custom_call.1} parent=5 // pred_check
        _
      $region58: #{tpu_custom_call.1} parent=5 // pred_check_branch
        %385 = sbr.rel (%p382) target = $region60
      $region59: #{tpu_custom_call.1} parent=5 // pred_region
        %s386 = ssub.s32 %s27, 1
        %s387 = sand.u32 %s92, 1
        %s388 = scalar_lea.sflag [#allocation3], %s387
        %s389 = sand.u32 %s92, 1
        %s390 = smul.addr %s389, 1024
        %s391 = scalar_lea.vmem [#allocation2], %s390
        // Predicated region
        $region61: #{tpu_custom_call.1} parent=59 // pred_check
          %p392 = pneg %p105
        $region62: #{tpu_custom_call.1} parent=59 // pred_check_branch
          %394 = sbr.rel (%p392) target = $region64
        $region63: #{tpu_custom_call.1} parent=59 // pred_region
          %395 = dma.done %s388, 16384
        $region64: #{tpu_custom_call.1} parent=59 // pred_fallthru
          _
        %p396 = scmp.lt.s32.totalorder %s32, 1
        %s397 = scalar_select %p396, %s32, 1
        %s398 = smul.addr %s397, 8
        %s399 = scalar_lea.vmem %s0, %s398
        %p400 = pneg %p53
        %p401 = pneg %p50
        %p402 = scmp.lt.s32.totalorder %s32, 1
        %s403 = scalar_select %p402, %s32, 1
        %s404 = smul.addr %s403, 8
        %s405 = scalar_lea.vmem %s1, %s404
        %p406 = pneg %p79
        %p407 = pneg %p76
        %s408 = sand.u32 %s92, 1
        %s409 = scalar_lea.sflag [#allocation3], %s408
        %s410 = sand.u32 %s92, 1
        %s411 = smul.addr %s410, 1024
        %s412 = scalar_lea.vmem [#allocation2], %s411
        %p413 = pneg %p105
        %p414 = pneg %p102
        %p415 = pneg %p126
        %p416 = pneg %p123
        %p417 = pneg %p147
        %p418 = pneg %p144
        %p419 = pneg %p168
        %p420 = pneg %p165
        %p421 = pneg %p189
        %p422 = pneg %p186
        %p423 = pneg %p210
        %p424 = pneg %p207
        %p425 = pneg %p231
        %p426 = pneg %p228
        %p427 = pneg %p252
        %p428 = pneg %p249
        %p429 = pneg %p278
        %p430 = pneg %p275
        %s431 = sand.u32 %s265, 1
        %s432 = scalar_lea.sflag [#allocation4], %s431
        %s433 = sand.u32 %s265, 1
        %s434 = smul.addr %s433, 8
        %s435 = scalar_lea.vmem [#allocation5], %s434
        %p436 = pneg %p304
        %p437 = pneg %p301
        %s438 = sand.u32 %s291, 1
        %s439 = scalar_lea.sflag [#allocation7], %s438
        %s440 = sand.u32 %s291, 1
        %s441 = smul.addr %s440, 1024
        %s442 = scalar_lea.vmem [#allocation6], %s441
        %p443 = scmp.lt.s32.totalorder %s32, 1
        %s444 = scalar_select %p443, %s32, 1
        %s445 = smul.addr %s444, 8
        %s446 = scalar_lea.vmem %s0, %s445
        %p447 = scmp.lt.s32.totalorder %s32, 1
        %s448 = scalar_select %p447, %s32, 1
        %s449 = smul.addr %s448, 8
        %s450 = scalar_lea.vmem %s1, %s449
        %s451 = smul.u32 8, %s32
        %s452 = smul.u32 8, %s32
        %v453 = vld [vmem:[%s446] sm:$0xff]
        %v454 = vld [vmem:[%s450] sm:$0xff]
        %v455 = vld [vmem:[%s5] sm:$0xff]
        %v456 = vld [vmem:[%s5 + $0x8] sm:$0xff]
        %v457 = vld [vmem:[%s5 + $0x10] sm:$0xff]
        %v458 = vld [vmem:[%s5 + $0x18] sm:$0xff]
        %v459 = vld [vmem:[%s5 + $0x20] sm:$0xff]
        %v460 = vld [vmem:[%s5 + $0x28] sm:$0xff]
        %v461 = vld [vmem:[%s5 + $0x30] sm:$0xff]
        %v462 = vld [vmem:[%s5 + $0x38] sm:$0xff]
        %v463 = vld [vmem:[%s6] sm:$0x3]
        %v465 = vlaneseq
        %v466 = vshrl.u32 %v465, 7
        %v467 = vsub.s32 0, %v466
        %v468 = vrot.slane %v463, %v467
        %v469 = vlaneseq
        %v470 = vshrl.u32 %v469, 7
        %v471 = vsub.s32 1, %v470
        %v472 = vrot.slane %v463, %v471
        %vm475 = vcmask 261120
        %v477 = vsel %vm475, %v454, 0
        %479 = vmatprep.subr.mxu0 0.0
        %480 = vmatpush1.msra.mxu0 0.0
        %481 = vmatprep.subr.mxu0 0.0
        %482 = vmatpush1.msra.mxu0 0.0
        %483 = vmatprep.subr.mxu0 0.0
        %484 = vmatpush1.msra.mxu0 0.0
        %485 = vmatprep.subr.mxu0 0.0
        %486 = vmatpush1.msra.mxu0 0.0
        %487 = vmatprep.subr.mxu0 0.0
        %488 = vmatpush1.msra.mxu0 0.0
        %489 = vmatprep.subr.mxu0 0.0
        %490 = vmatpush1.msra.mxu0 0.0
        %491 = vmatprep.subr.mxu0 0.0
        %492 = vmatpush1.msra.mxu0 0.0
        %493 = vmatprep.subr.mxu0 0.0
        %494 = vmatpush1.msra.mxu0 0.0
        %495 = vmatprep.subr.mxu0 0.0
        %496 = vmatpush1.msra.mxu0 0.0
        %497 = vmatprep.subr.mxu0 0.0
        %498 = vmatpush1.msra.mxu0 0.0
        %499 = vmatprep.subr.mxu0 0.0
        %500 = vmatpush1.msra.mxu0 0.0
        %501 = vmatprep.subr.mxu0 0.0
        %502 = vmatpush1.msra.mxu0 0.0
        %503 = vmatprep.subr.mxu0 %v462
        %504 = vmatpush1.msra.mxu0 %v461
        %505 = vmatprep.subr.mxu0 %v460
        %506 = vmatpush1.msra.mxu0 %v459
        %507 = vmatprep.subr.mxu0 %v458
        %508 = vmatpush1.msra.mxu0 %v457
        %509 = vmatprep.subr.mxu0 %v456
        %510 = vmatpush1.msra.mxu0 %v455
        %511 = vmatprep.subr.mxu0 0.0
        %512 = vmatpush2.msra.mxu0 0.0
        %513 = vmatprep.subr.mxu0 0.0
        %514 = vmatpush2.msra.mxu0 0.0
        %515 = vmatprep.subr.mxu0 0.0
        %516 = vmatpush2.msra.mxu0 0.0
        %517 = vmatprep.subr.mxu0 0.0
        %518 = vmatpush2.msra.mxu0 0.0
        %519 = vmatprep.subr.mxu0 0.0
        %520 = vmatpush2.msra.mxu0 0.0
        %521 = vmatprep.subr.mxu0 0.0
        %522 = vmatpush2.msra.mxu0 0.0
        %523 = vmatprep.subr.mxu0 0.0
        %524 = vmatpush2.msra.mxu0 0.0
        %525 = vmatprep.subr.mxu0 0.0
        %526 = vmatpush2.msra.mxu0 0.0
        %527 = vmatprep.subr.mxu0 0.0
        %528 = vmatpush2.msra.mxu0 0.0
        %529 = vmatprep.subr.mxu0 0.0
        %530 = vmatpush2.msra.mxu0 0.0
        %531 = vmatprep.subr.mxu0 0.0
        %532 = vmatpush2.msra.mxu0 0.0
        %533 = vmatprep.subr.mxu0 0.0
        %534 = vmatpush2.msra.mxu0 0.0
        %535 = vmatprep.subr.mxu0 0.0
        %536 = vmatpush2.msra.mxu0 0.0
        %537 = vmatprep.subr.mxu0 0.0
        %538 = vmatpush2.msra.mxu0 0.0
        %539 = vmatprep.subr.mxu0 0.0
        %540 = vmatpush2.msra.mxu0 0.0
        %541 = vmatprep.subr.mxu0 0.0
        %542 = vmatpush2.msra.mxu0 0.0
        %543 = vmatprep.mubr.f32.mxu0 0.0
        %544 = vmatmul.mubr.f32.gmra.mxu0 %v477
        %v545 = vpop.f32.mrf.mxu0
        %v546 = vadd.f32 %v468, %v545
        %v547 = vpop.f32.mrf.mxu0
        %v548 = vadd.f32 %v472, %v547
        %549 = vdwg.mxu0
        %v550 = vld [vmem:[%s3] sm:$0xff]
        %v551 = vld [vmem:[%s3 + $0x8] sm:$0xff]
        %v552 = vld [vmem:[%s3 + $0x10] sm:$0xff]
        %v553 = vld [vmem:[%s3 + $0x18] sm:$0xff]
        %v554 = vld [vmem:[%s4] sm:$0x1]
        %v556 = vlaneseq
        %v557 = vshrl.u32 %v556, 7
        %v558 = vsub.s32 0, %v557
        %v559 = vrot.slane %v554, %v558
        %v562 = vsel %vm475, %v453, 0
        %564 = vmatprep.subr.mxu0 0.0
        %565 = vmatpush1.msra.mxu0 0.0
        %566 = vmatprep.subr.mxu0 0.0
        %567 = vmatpush1.msra.mxu0 0.0
        %568 = vmatprep.subr.mxu0 0.0
        %569 = vmatpush1.msra.mxu0 0.0
        %570 = vmatprep.subr.mxu0 0.0
        %571 = vmatpush1.msra.mxu0 0.0
        %572 = vmatprep.subr.mxu0 0.0
        %573 = vmatpush1.msra.mxu0 0.0
        %574 = vmatprep.subr.mxu0 0.0
        %575 = vmatpush1.msra.mxu0 0.0
        %576 = vmatprep.subr.mxu0 0.0
        %577 = vmatpush1.msra.mxu0 0.0
        %578 = vmatprep.subr.mxu0 0.0
        %579 = vmatpush1.msra.mxu0 0.0
        %580 = vmatprep.subr.mxu0 0.0
        %581 = vmatpush1.msra.mxu0 0.0
        %582 = vmatprep.subr.mxu0 0.0
        %583 = vmatpush1.msra.mxu0 0.0
        %584 = vmatprep.subr.mxu0 0.0
        %585 = vmatpush1.msra.mxu0 0.0
        %586 = vmatprep.subr.mxu0 0.0
        %587 = vmatpush1.msra.mxu0 0.0
        %588 = vmatprep.subr.mxu0 0.0
        %589 = vmatpush1.msra.mxu0 %v553
        %590 = vmatprep.subr.mxu0 0.0
        %591 = vmatpush1.msra.mxu0 %v552
        %592 = vmatprep.subr.mxu0 0.0
        %593 = vmatpush1.msra.mxu0 %v551
        %594 = vmatprep.subr.mxu0 0.0
        %595 = vmatpush1.msra.mxu0 %v550
        %596 = vmatprep.subr.mxu0 0.0
        %597 = vmatpush2.msra.mxu0 0.0
        %598 = vmatprep.subr.mxu0 0.0
        %599 = vmatpush2.msra.mxu0 0.0
        %600 = vmatprep.subr.mxu0 0.0
        %601 = vmatpush2.msra.mxu0 0.0
        %602 = vmatprep.subr.mxu0 0.0
        %603 = vmatpush2.msra.mxu0 0.0
        %604 = vmatprep.subr.mxu0 0.0
        %605 = vmatpush2.msra.mxu0 0.0
        %606 = vmatprep.subr.mxu0 0.0
        %607 = vmatpush2.msra.mxu0 0.0
        %608 = vmatprep.subr.mxu0 0.0
        %609 = vmatpush2.msra.mxu0 0.0
        %610 = vmatprep.subr.mxu0 0.0
        %611 = vmatpush2.msra.mxu0 0.0
        %612 = vmatprep.subr.mxu0 0.0
        %613 = vmatpush2.msra.mxu0 0.0
        %614 = vmatprep.subr.mxu0 0.0
        %615 = vmatpush2.msra.mxu0 0.0
        %616 = vmatprep.subr.mxu0 0.0
        %617 = vmatpush2.msra.mxu0 0.0
        %618 = vmatprep.subr.mxu0 0.0
        %619 = vmatpush2.msra.mxu0 0.0
        %620 = vmatprep.subr.mxu0 0.0
        %621 = vmatpush2.msra.mxu0 0.0
        %622 = vmatprep.subr.mxu0 0.0
        %623 = vmatpush2.msra.mxu0 0.0
        %624 = vmatprep.subr.mxu0 0.0
        %625 = vmatpush2.msra.mxu0 0.0
        %626 = vmatprep.subr.mxu0 0.0
        %627 = vmatpush2.msra.mxu0 0.0
        %628 = vmatprep.mubr.f32.mxu0 0.0
        %629 = vmatmul.mubr.f32.gmra.mxu0 %v562
        %v630 = vpop.f32.mrf.mxu0
        %v631 = vadd.f32 %v559, %v630
        %v632 = vpop.f32.mrf.mxu0
        %633 = vdwg.mxu0
        %v634 = vxor.u32 %v631, 2147483648
        %v635 = vmul.f32 %v634, 1.442695
        %v636 = vpow.pop %v635
        %v637 = vadd.f32 %v636, 1.0
        %v638 = vrcp.pop %v637
        %v639 = vmul.f32 1.0, %v638
        %v640 = vmax.f32 %v631, 0.0
        %v641 = vmax.f32 %v548, 0.0
        %v642 = vsub.f32 0.0, %v631
        %v643 = vsub.f32 0.0, %v548
        %v644 = vmax.f32 %v642, 0.0
        %v645 = vmax.f32 %v643, 0.0
        %648 = vrot.lane.b32.xlu0 %v644, 32
        %v649 = vpop.permute.xlu0 %648
        %650 = vrot.lane.b32.xlu0 %v645, 32
        %v651 = vpop.permute.xlu0 %650
        %v654 = vsel %vm475, %v640, %v649
        %v655 = vsel %vm475, %v641, %v651
        %658 = vrot.lane.b32.xlu0 %v654, 65
        %v659 = vpop.permute.xlu0 %658
        %660 = vrot.lane.b32.xlu0 %v655, 65
        %v661 = vpop.permute.xlu0 %660
        %664 = vrot.lane.b32.xlu0 %v654, 1
        %v665 = vpop.permute.xlu0 %664
        %666 = vrot.lane.b32.xlu0 %v655, 1
        %v667 = vpop.permute.xlu0 %666
        %vm670 = vcmask 7168
        %v671 = vsel %vm670, %v659, %v665
        %v672 = vsel %vm670, %v661, %v667
        %673 = vrot.lane.b32.xlu0 %v654, 66
        %v674 = vpop.permute.xlu0 %673
        %675 = vrot.lane.b32.xlu0 %v655, 66
        %v676 = vpop.permute.xlu0 %675
        %679 = vrot.lane.b32.xlu0 %v654, 2
        %v680 = vpop.permute.xlu0 %679
        %681 = vrot.lane.b32.xlu0 %v655, 2
        %v682 = vpop.permute.xlu0 %681
        %vm685 = vcmask 15360
        %v686 = vsel %vm685, %v674, %v680
        %v687 = vsel %vm685, %v676, %v682
        %690 = vrot.lane.b32.xlu0 %v686, 64
        %v691 = vpop.permute.xlu0 %690
        %692 = vrot.lane.b32.xlu0 %v687, 64
        %v693 = vpop.permute.xlu0 %692
        %vm696 = vcmask 523264
        %v697 = vsel %vm696, %v671, %v691
        %v698 = vsel %vm696, %v672, %v693
        %699 = vrot.lane.b32.xlu0 %v654, 64
        %v700 = vpop.permute.xlu0 %699
        %701 = vrot.lane.b32.xlu0 %v655, 64
        %v702 = vpop.permute.xlu0 %701
        %v705 = vsel %vm696, %v654, %v700
        %v706 = vsel %vm696, %v655, %v702
        %v707 = vmul.f32 %v705, %v697
        %v708 = vmul.f32 %v706, %v698
        %709 = vadd.xlane.f32.xlu0 %v708
        %v710 = vpop.xlane.xlu0 %709
        %v711 = vld [vmem:[%s9] sm:$0xff]
        %v712 = vld [vmem:[%s9 + $0x8] sm:$0xff]
        %v713 = vld [vmem:[%s9 + $0x10] sm:$0xff]
        %v714 = vld [vmem:[%s9 + $0x18] sm:$0xff]
        %v715 = vld [vmem:[%s9 + $0x20] sm:$0xff]
        %v716 = vld [vmem:[%s9 + $0x28] sm:$0xff]
        %v717 = vld [vmem:[%s9 + $0x30] sm:$0xff]
        %v718 = vld [vmem:[%s9 + $0x38] sm:$0xff]
        %v719 = vld [vmem:[%s9 + $0x40] sm:$0xff]
        %v720 = vld [vmem:[%s9 + $0x48] sm:$0xff]
        %v721 = vld [vmem:[%s9 + $0x50] sm:$0xff]
        %v722 = vld [vmem:[%s9 + $0x58] sm:$0xff]
        %v723 = vld [vmem:[%s9 + $0x60] sm:$0xff]
        %v724 = vld [vmem:[%s9 + $0x68] sm:$0xff]
        %v725 = vld [vmem:[%s9 + $0x70] sm:$0xff]
        %v726 = vld [vmem:[%s9 + $0x78] sm:$0xff]
        %v727 = vld [vmem:[%s7] sm:$0xff]
        %v728 = vld [vmem:[%s7 + $0x8] sm:$0xff]
        %v729 = vld [vmem:[%s7 + $0x10] sm:$0xff]
        %v730 = vld [vmem:[%s7 + $0x18] sm:$0xff]
        %v731 = vld [vmem:[%s7 + $0x20] sm:$0xff]
        %v732 = vld [vmem:[%s7 + $0x28] sm:$0xff]
        %v733 = vld [vmem:[%s7 + $0x30] sm:$0xff]
        %v734 = vld [vmem:[%s7 + $0x38] sm:$0xff]
        %v735 = vld [vmem:[%s7 + $0x40] sm:$0xff]
        %v736 = vld [vmem:[%s7 + $0x48] sm:$0xff]
        %v737 = vld [vmem:[%s7 + $0x50] sm:$0xff]
        %v738 = vld [vmem:[%s7 + $0x58] sm:$0xff]
        %v739 = vld [vmem:[%s7 + $0x60] sm:$0xff]
        %v740 = vld [vmem:[%s7 + $0x68] sm:$0xff]
        %v741 = vld [vmem:[%s7 + $0x70] sm:$0xff]
        %v742 = vld [vmem:[%s7 + $0x78] sm:$0xff]
        %v743 = vld [vmem:[%s391] sm:$0xff]
        %v744 = vld [vmem:[%s391 + $0x8] sm:$0xff]
        %v745 = vld [vmem:[%s391 + $0x10] sm:$0xff]
        %v746 = vld [vmem:[%s391 + $0x18] sm:$0xff]
        %v747 = vld [vmem:[%s391 + $0x20] sm:$0xff]
        %v748 = vld [vmem:[%s391 + $0x28] sm:$0xff]
        %v749 = vld [vmem:[%s391 + $0x30] sm:$0xff]
        %v750 = vld [vmem:[%s391 + $0x38] sm:$0xff]
        %v751 = vld [vmem:[%s391 + $0x40] sm:$0xff]
        %v752 = vld [vmem:[%s391 + $0x48] sm:$0xff]
        %v753 = vld [vmem:[%s391 + $0x50] sm:$0xff]
        %v754 = vld [vmem:[%s391 + $0x58] sm:$0xff]
        %v755 = vld [vmem:[%s391 + $0x60] sm:$0xff]
        %v756 = vld [vmem:[%s391 + $0x68] sm:$0xff]
        %v757 = vld [vmem:[%s391 + $0x70] sm:$0xff]
        %v758 = vld [vmem:[%s391 + $0x78] sm:$0xff]
        %v759 = vadd.f32 %v743, %v744
        %v760 = vadd.f32 %v759, %v745
        %v761 = vadd.f32 %v760, %v746
        %v762 = vadd.f32 %v761, %v747
        %v763 = vadd.f32 %v762, %v748
        %v764 = vadd.f32 %v763, %v749
        %v765 = vadd.f32 %v764, %v750
        %v766 = vadd.f32 %v765, %v751
        %v767 = vadd.f32 %v766, %v752
        %v768 = vadd.f32 %v767, %v753
        %v769 = vadd.f32 %v768, %v754
        %v770 = vadd.f32 %v769, %v755
        %v771 = vadd.f32 %v770, %v756
        %v772 = vadd.f32 %v771, %v757
        %v773 = vadd.f32 %v772, %v758
        %v774 = vrot.slane %v773, 4
        %v775 = vadd.f32 %v773, %v774
        %v776 = vrot.slane %v775, 2
        %v777 = vadd.f32 %v775, %v776
        %v778 = vrot.slane %v777, 1
        %v779 = vadd.f32 %v777, %v778
        %v780 = vmul.f32 %v708, %v779
        %v781 = vsub.f32 %v546, %v780
        %783 = vset.pattern.permute.xlu0 32
        %784 = vperm.xlu0 %783, %v639
        %v785 = vpop.permute.xlu0 %784
        %v787 = vmul.f32 %v785, %v781
        %v788 = vlaneseq
        %v789 = vshrl.u32 %v788, 7
        %v790 = vsub.s32 0, %v789
        %v791 = vrot.slane %v787, %v790
        %v792 = vmul.f32 %v711, %v791
        %v793 = vmul.f32 %v712, %v791
        %v794 = vmul.f32 %v713, %v791
        %v795 = vmul.f32 %v714, %v791
        %v796 = vmul.f32 %v715, %v791
        %v797 = vmul.f32 %v716, %v791
        %v798 = vmul.f32 %v717, %v791
        %v799 = vmul.f32 %v718, %v791
        %v800 = vmul.f32 %v719, %v791
        %v801 = vmul.f32 %v720, %v791
        %v802 = vmul.f32 %v721, %v791
        %v803 = vmul.f32 %v722, %v791
        %v804 = vmul.f32 %v723, %v791
        %v805 = vmul.f32 %v724, %v791
        %v806 = vmul.f32 %v725, %v791
        %v807 = vmul.f32 %v726, %v791
        %808 = vadd.xlane.f32.xlu0 %v792
        %v809 = vpop.xlane.xlu0 %808
        %810 = vadd.xlane.f32.xlu0 %v793
        %v811 = vpop.xlane.xlu0 %810
        %812 = vadd.xlane.f32.xlu0 %v794
        %v813 = vpop.xlane.xlu0 %812
        %814 = vadd.xlane.f32.xlu0 %v795
        %v815 = vpop.xlane.xlu0 %814
        %816 = vadd.xlane.f32.xlu0 %v796
        %v817 = vpop.xlane.xlu0 %816
        %818 = vadd.xlane.f32.xlu0 %v797
        %v819 = vpop.xlane.xlu0 %818
        %820 = vadd.xlane.f32.xlu0 %v798
        %v821 = vpop.xlane.xlu0 %820
        %822 = vadd.xlane.f32.xlu0 %v799
        %v823 = vpop.xlane.xlu0 %822
        %824 = vadd.xlane.f32.xlu0 %v800
        %v825 = vpop.xlane.xlu0 %824
        %826 = vadd.xlane.f32.xlu0 %v801
        %v827 = vpop.xlane.xlu0 %826
        %828 = vadd.xlane.f32.xlu0 %v802
        %v829 = vpop.xlane.xlu0 %828
        %830 = vadd.xlane.f32.xlu0 %v803
        %v831 = vpop.xlane.xlu0 %830
        %832 = vadd.xlane.f32.xlu0 %v804
        %v833 = vpop.xlane.xlu0 %832
        %834 = vadd.xlane.f32.xlu0 %v805
        %v835 = vpop.xlane.xlu0 %834
        %836 = vadd.xlane.f32.xlu0 %v806
        %v837 = vpop.xlane.xlu0 %836
        %838 = vadd.xlane.f32.xlu0 %v807
        %v839 = vpop.xlane.xlu0 %838
        %v840 = vlaneseq
        %v841 = vshrl.u32 %v840, 7
        %v842 = vsub.s32 0, %v841
        %v843 = vrot.slane %v708, %v842
        %v844 = vmul.f32 %v809, %v843
        %v845 = vmul.f32 %v811, %v843
        %v846 = vmul.f32 %v813, %v843
        %v847 = vmul.f32 %v815, %v843
        %v848 = vmul.f32 %v817, %v843
        %v849 = vmul.f32 %v819, %v843
        %v850 = vmul.f32 %v821, %v843
        %v851 = vmul.f32 %v823, %v843
        %v852 = vmul.f32 %v825, %v843
        %v853 = vmul.f32 %v827, %v843
        %v854 = vmul.f32 %v829, %v843
        %v855 = vmul.f32 %v831, %v843
        %v856 = vmul.f32 %v833, %v843
        %v857 = vmul.f32 %v835, %v843
        %v858 = vmul.f32 %v837, %v843
        %v859 = vmul.f32 %v839, %v843
        %v860 = vadd.f32 %v743, %v844
        %v861 = vadd.f32 %v744, %v845
        %v862 = vadd.f32 %v745, %v846
        %v863 = vadd.f32 %v746, %v847
        %v864 = vadd.f32 %v747, %v848
        %v865 = vadd.f32 %v748, %v849
        %v866 = vadd.f32 %v749, %v850
        %v867 = vadd.f32 %v750, %v851
        %v868 = vadd.f32 %v751, %v852
        %v869 = vadd.f32 %v752, %v853
        %v870 = vadd.f32 %v753, %v854
        %v871 = vadd.f32 %v754, %v855
        %v872 = vadd.f32 %v755, %v856
        %v873 = vadd.f32 %v756, %v857
        %v874 = vadd.f32 %v757, %v858
        %v875 = vadd.f32 %v758, %v859
        %876 = vst [vmem:[%s442] sm:$0xff] %v860
        %877 = vst [vmem:[%s442 + $0x8] sm:$0xff] %v861
        %878 = vst [vmem:[%s442 + $0x10] sm:$0xff] %v862
        %879 = vst [vmem:[%s442 + $0x18] sm:$0xff] %v863
        %880 = vst [vmem:[%s442 + $0x20] sm:$0xff] %v864
        %881 = vst [vmem:[%s442 + $0x28] sm:$0xff] %v865
        %882 = vst [vmem:[%s442 + $0x30] sm:$0xff] %v866
        %883 = vst [vmem:[%s442 + $0x38] sm:$0xff] %v867
        %884 = vst [vmem:[%s442 + $0x40] sm:$0xff] %v868
        %885 = vst [vmem:[%s442 + $0x48] sm:$0xff] %v869
        %886 = vst [vmem:[%s442 + $0x50] sm:$0xff] %v870
        %887 = vst [vmem:[%s442 + $0x58] sm:$0xff] %v871
        %888 = vst [vmem:[%s442 + $0x60] sm:$0xff] %v872
        %889 = vst [vmem:[%s442 + $0x68] sm:$0xff] %v873
        %890 = vst [vmem:[%s442 + $0x70] sm:$0xff] %v874
        %891 = vst [vmem:[%s442 + $0x78] sm:$0xff] %v875
        %892 = vadd.xlane.f32.xlu0 %v743
        %v893 = vpop.xlane.xlu0 %892
        %894 = vadd.xlane.f32.xlu0 %v744
        %v895 = vpop.xlane.xlu0 %894
        %896 = vadd.xlane.f32.xlu0 %v745
        %v897 = vpop.xlane.xlu0 %896
        %898 = vadd.xlane.f32.xlu0 %v746
        %v899 = vpop.xlane.xlu0 %898
        %900 = vadd.xlane.f32.xlu0 %v747
        %v901 = vpop.xlane.xlu0 %900
        %902 = vadd.xlane.f32.xlu0 %v748
        %v903 = vpop.xlane.xlu0 %902
        %904 = vadd.xlane.f32.xlu0 %v749
        %v905 = vpop.xlane.xlu0 %904
        %906 = vadd.xlane.f32.xlu0 %v750
        %v907 = vpop.xlane.xlu0 %906
        %908 = vadd.xlane.f32.xlu0 %v751
        %v909 = vpop.xlane.xlu0 %908
        %910 = vadd.xlane.f32.xlu0 %v752
        %v911 = vpop.xlane.xlu0 %910
        %912 = vadd.xlane.f32.xlu0 %v753
        %v913 = vpop.xlane.xlu0 %912
        %914 = vadd.xlane.f32.xlu0 %v754
        %v915 = vpop.xlane.xlu0 %914
        %916 = vadd.xlane.f32.xlu0 %v755
        %v917 = vpop.xlane.xlu0 %916
        %918 = vadd.xlane.f32.xlu0 %v756
        %v919 = vpop.xlane.xlu0 %918
        %920 = vadd.xlane.f32.xlu0 %v757
        %v921 = vpop.xlane.xlu0 %920
        %922 = vadd.xlane.f32.xlu0 %v758
        %v923 = vpop.xlane.xlu0 %922
        %v924 = vlaneseq
        %v925 = vshrl.u32 %v924, 7
        %v926 = vsub.s32 0, %v925
        %v927 = vrot.slane %v710, %v926
        %v928 = vmul.f32 %v809, %v927
        %v929 = vmul.f32 %v811, %v927
        %v930 = vmul.f32 %v813, %v927
        %v931 = vmul.f32 %v815, %v927
        %v932 = vmul.f32 %v817, %v927
        %v933 = vmul.f32 %v819, %v927
        %v934 = vmul.f32 %v821, %v927
        %v935 = vmul.f32 %v823, %v927
        %v936 = vmul.f32 %v825, %v927
        %v937 = vmul.f32 %v827, %v927
        %v938 = vmul.f32 %v829, %v927
        %v939 = vmul.f32 %v831, %v927
        %v940 = vmul.f32 %v833, %v927
        %v941 = vmul.f32 %v835, %v927
        %v942 = vmul.f32 %v837, %v927
        %v943 = vmul.f32 %v839, %v927
        %v944 = vadd.f32 %v893, %v928
        %v945 = vadd.f32 %v895, %v929
        %v946 = vadd.f32 %v897, %v930
        %v947 = vadd.f32 %v899, %v931
        %v948 = vadd.f32 %v901, %v932
        %v949 = vadd.f32 %v903, %v933
        %v950 = vadd.f32 %v905, %v934
        %v951 = vadd.f32 %v907, %v935
        %v952 = vadd.f32 %v909, %v936
        %v953 = vadd.f32 %v911, %v937
        %v954 = vadd.f32 %v913, %v938
        %v955 = vadd.f32 %v915, %v939
        %v956 = vadd.f32 %v917, %v940
        %v957 = vadd.f32 %v919, %v941
        %v958 = vadd.f32 %v921, %v942
        %v959 = vadd.f32 %v923, %v943
        %v960 = vmul.f32 %v944, %v727
        %v961 = vmul.f32 %v945, %v728
        %v962 = vmul.f32 %v946, %v729
        %v963 = vmul.f32 %v947, %v730
        %v964 = vmul.f32 %v948, %v731
        %v965 = vmul.f32 %v949, %v732
        %v966 = vmul.f32 %v950, %v733
        %v967 = vmul.f32 %v951, %v734
        %v968 = vmul.f32 %v952, %v735
        %v969 = vmul.f32 %v953, %v736
        %v970 = vmul.f32 %v954, %v737
        %v971 = vmul.f32 %v955, %v738
        %v972 = vmul.f32 %v956, %v739
        %v973 = vmul.f32 %v957, %v740
        %v974 = vmul.f32 %v958, %v741
        %v975 = vmul.f32 %v959, %v742
        %976 = vmatprep.subr.mxu0 0.0
        %977 = vmatpush1.msra.mxu0 %v975
        %978 = vmatprep.subr.mxu0 0.0
        %979 = vmatpush1.msra.mxu0 %v974
        %980 = vmatprep.subr.mxu0 0.0
        %981 = vmatpush1.msra.mxu0 %v973
        %982 = vmatprep.subr.mxu0 0.0
        %983 = vmatpush1.msra.mxu0 %v972
        %984 = vmatprep.subr.mxu0 0.0
        %985 = vmatpush1.msra.mxu0 %v971
        %986 = vmatprep.subr.mxu0 0.0
        %987 = vmatpush1.msra.mxu0 %v970
        %988 = vmatprep.subr.mxu0 0.0
        %989 = vmatpush1.msra.mxu0 %v969
        %990 = vmatprep.subr.mxu0 0.0
        %991 = vmatpush1.msra.mxu0 %v968
        %992 = vmatprep.subr.mxu0 0.0
        %993 = vmatpush1.msra.mxu0 %v967
        %994 = vmatprep.subr.mxu0 0.0
        %995 = vmatpush1.msra.mxu0 %v966
        %996 = vmatprep.subr.mxu0 0.0
        %997 = vmatpush1.msra.mxu0 %v965
        %998 = vmatprep.subr.mxu0 0.0
        %999 = vmatpush1.msra.mxu0 %v964
        %1000 = vmatprep.subr.mxu0 0.0
        %1001 = vmatpush1.msra.mxu0 %v963
        %1002 = vmatprep.subr.mxu0 0.0
        %1003 = vmatpush1.msra.mxu0 %v962
        %1004 = vmatprep.subr.mxu0 0.0
        %1005 = vmatpush1.msra.mxu0 %v961
        %1006 = vmatprep.subr.mxu0 0.0
        %1007 = vmatpush1.msra.mxu0 %v960
        %1008 = vmatprep.subr.mxu0 0.0
        %1009 = vmatpush2.msra.mxu0 0.0
        %1010 = vmatprep.subr.mxu0 0.0
        %1011 = vmatpush2.msra.mxu0 0.0
        %1012 = vmatprep.subr.mxu0 0.0
        %1013 = vmatpush2.msra.mxu0 0.0
        %1014 = vmatprep.subr.mxu0 0.0
        %1015 = vmatpush2.msra.mxu0 0.0
        %1016 = vmatprep.subr.mxu0 0.0
        %1017 = vmatpush2.msra.mxu0 0.0
        %1018 = vmatprep.subr.mxu0 0.0
        %1019 = vmatpush2.msra.mxu0 0.0
        %1020 = vmatprep.subr.mxu0 0.0
        %1021 = vmatpush2.msra.mxu0 0.0
        %1022 = vmatprep.subr.mxu0 0.0
        %1023 = vmatpush2.msra.mxu0 0.0
        %1024 = vmatprep.subr.mxu0 0.0
        %1025 = vmatpush2.msra.mxu0 0.0
        %1026 = vmatprep.subr.mxu0 0.0
        %1027 = vmatpush2.msra.mxu0 0.0
        %1028 = vmatprep.subr.mxu0 0.0
        %1029 = vmatpush2.msra.mxu0 0.0
        %1030 = vmatprep.subr.mxu0 0.0
        %1031 = vmatpush2.msra.mxu0 0.0
        %1032 = vmatprep.subr.mxu0 0.0
        %1033 = vmatpush2.msra.mxu0 0.0
        %1034 = vmatprep.subr.mxu0 0.0
        %1035 = vmatpush2.msra.mxu0 0.0
        %1036 = vmatprep.subr.mxu0 0.0
        %1037 = vmatpush2.msra.mxu0 0.0
        %1038 = vmatprep.subr.mxu0 0.0
        %1039 = vmatpush2.msra.mxu0 0.0
        %1040 = vmatprep.mubr.f32.mxu0 0.0
        %1041 = vmatmul.mubr.f32.gmra.mxu0 %v707
        %v1042 = vpop.f32.mrf.mxu0
        %v1043 = vadd.f32 0.0, %v1042
        %v1044 = vpop.f32.mrf.mxu0
        %1045 = vdwg.mxu0
        %s1046 = scalar_lea.vmem %s391, 128 [#allocation2]
        %v1047 = vld [vmem:[%s1046] sm:$0xff]
        %v1048 = vld [vmem:[%s1046 + $0x8] sm:$0xff]
        %v1049 = vld [vmem:[%s1046 + $0x10] sm:$0xff]
        %v1050 = vld [vmem:[%s1046 + $0x18] sm:$0xff]
        %v1051 = vld [vmem:[%s1046 + $0x20] sm:$0xff]
        %v1052 = vld [vmem:[%s1046 + $0x28] sm:$0xff]
        %v1053 = vld [vmem:[%s1046 + $0x30] sm:$0xff]
        %v1054 = vld [vmem:[%s1046 + $0x38] sm:$0xff]
        %v1055 = vld [vmem:[%s1046 + $0x40] sm:$0xff]
        %v1056 = vld [vmem:[%s1046 + $0x48] sm:$0xff]
        %v1057 = vld [vmem:[%s1046 + $0x50] sm:$0xff]
        %v1058 = vld [vmem:[%s1046 + $0x58] sm:$0xff]
        %v1059 = vld [vmem:[%s1046 + $0x60] sm:$0xff]
        %v1060 = vld [vmem:[%s1046 + $0x68] sm:$0xff]
        %v1061 = vld [vmem:[%s1046 + $0x70] sm:$0xff]
        %v1062 = vld [vmem:[%s1046 + $0x78] sm:$0xff]
        %v1063 = vadd.f32 %v1047, %v1048
        %v1064 = vadd.f32 %v1063, %v1049
        %v1065 = vadd.f32 %v1064, %v1050
        %v1066 = vadd.f32 %v1065, %v1051
        %v1067 = vadd.f32 %v1066, %v1052
        %v1068 = vadd.f32 %v1067, %v1053
        %v1069 = vadd.f32 %v1068, %v1054
        %v1070 = vadd.f32 %v1069, %v1055
        %v1071 = vadd.f32 %v1070, %v1056
        %v1072 = vadd.f32 %v1071, %v1057
        %v1073 = vadd.f32 %v1072, %v1058
        %v1074 = vadd.f32 %v1073, %v1059
        %v1075 = vadd.f32 %v1074, %v1060
        %v1076 = vadd.f32 %v1075, %v1061
        %v1077 = vadd.f32 %v1076, %v1062
        %v1078 = vrot.slane %v1077, 4
        %v1079 = vadd.f32 %v1077, %v1078
        %v1080 = vrot.slane %v1079, 2
        %v1081 = vadd.f32 %v1079, %v1080
        %v1082 = vrot.slane %v1081, 1
        %v1083 = vadd.f32 %v1081, %v1082
        %v1084 = vmul.f32 %v708, %v1083
        %v1085 = vsub.f32 %v546, %v1084
        %v1086 = vmul.f32 %v785, %v1085
        %v1087 = vlaneseq
        %v1088 = vshrl.u32 %v1087, 7
        %v1089 = vsub.s32 1, %v1088
        %v1090 = vrot.slane %v1086, %v1089
        %v1091 = vmul.f32 %v711, %v1090
        %v1092 = vmul.f32 %v712, %v1090
        %v1093 = vmul.f32 %v713, %v1090
        %v1094 = vmul.f32 %v714, %v1090
        %v1095 = vmul.f32 %v715, %v1090
        %v1096 = vmul.f32 %v716, %v1090
        %v1097 = vmul.f32 %v717, %v1090
        %v1098 = vmul.f32 %v718, %v1090
        %v1099 = vmul.f32 %v719, %v1090
        %v1100 = vmul.f32 %v720, %v1090
        %v1101 = vmul.f32 %v721, %v1090
        %v1102 = vmul.f32 %v722, %v1090
        %v1103 = vmul.f32 %v723, %v1090
        %v1104 = vmul.f32 %v724, %v1090
        %v1105 = vmul.f32 %v725, %v1090
        %v1106 = vmul.f32 %v726, %v1090
        %1107 = vadd.xlane.f32.xlu0 %v1091
        %v1108 = vpop.xlane.xlu0 %1107
        %1109 = vadd.xlane.f32.xlu0 %v1092
        %v1110 = vpop.xlane.xlu0 %1109
        %1111 = vadd.xlane.f32.xlu0 %v1093
        %v1112 = vpop.xlane.xlu0 %1111
        %1113 = vadd.xlane.f32.xlu0 %v1094
        %v1114 = vpop.xlane.xlu0 %1113
        %1115 = vadd.xlane.f32.xlu0 %v1095
        %v1116 = vpop.xlane.xlu0 %1115
        %1117 = vadd.xlane.f32.xlu0 %v1096
        %v1118 = vpop.xlane.xlu0 %1117
        %1119 = vadd.xlane.f32.xlu0 %v1097
        %v1120 = vpop.xlane.xlu0 %1119
        %1121 = vadd.xlane.f32.xlu0 %v1098
        %v1122 = vpop.xlane.xlu0 %1121
        %1123 = vadd.xlane.f32.xlu0 %v1099
        %v1124 = vpop.xlane.xlu0 %1123
        %1125 = vadd.xlane.f32.xlu0 %v1100
        %v1126 = vpop.xlane.xlu0 %1125
        %1127 = vadd.xlane.f32.xlu0 %v1101
        %v1128 = vpop.xlane.xlu0 %1127
        %1129 = vadd.xlane.f32.xlu0 %v1102
        %v1130 = vpop.xlane.xlu0 %1129
        %1131 = vadd.xlane.f32.xlu0 %v1103
        %v1132 = vpop.xlane.xlu0 %1131
        %1133 = vadd.xlane.f32.xlu0 %v1104
        %v1134 = vpop.xlane.xlu0 %1133
        %1135 = vadd.xlane.f32.xlu0 %v1105
        %v1136 = vpop.xlane.xlu0 %1135
        %1137 = vadd.xlane.f32.xlu0 %v1106
        %v1138 = vpop.xlane.xlu0 %1137
        %v1139 = vlaneseq
        %v1140 = vshrl.u32 %v1139, 7
        %v1141 = vsub.s32 1, %v1140
        %v1142 = vrot.slane %v708, %v1141
        %v1143 = vmul.f32 %v1108, %v1142
        %v1144 = vmul.f32 %v1110, %v1142
        %v1145 = vmul.f32 %v1112, %v1142
        %v1146 = vmul.f32 %v1114, %v1142
        %v1147 = vmul.f32 %v1116, %v1142
        %v1148 = vmul.f32 %v1118, %v1142
        %v1149 = vmul.f32 %v1120, %v1142
        %v1150 = vmul.f32 %v1122, %v1142
        %v1151 = vmul.f32 %v1124, %v1142
        %v1152 = vmul.f32 %v1126, %v1142
        %v1153 = vmul.f32 %v1128, %v1142
        %v1154 = vmul.f32 %v1130, %v1142
        %v1155 = vmul.f32 %v1132, %v1142
        %v1156 = vmul.f32 %v1134, %v1142
        %v1157 = vmul.f32 %v1136, %v1142
        %v1158 = vmul.f32 %v1138, %v1142
        %v1159 = vadd.f32 %v1047, %v1143
        %v1160 = vadd.f32 %v1048, %v1144
        %v1161 = vadd.f32 %v1049, %v1145
        %v1162 = vadd.f32 %v1050, %v1146
        %v1163 = vadd.f32 %v1051, %v1147
        %v1164 = vadd.f32 %v1052, %v1148
        %v1165 = vadd.f32 %v1053, %v1149
        %v1166 = vadd.f32 %v1054, %v1150
        %v1167 = vadd.f32 %v1055, %v1151
        %v1168 = vadd.f32 %v1056, %v1152
        %v1169 = vadd.f32 %v1057, %v1153
        %v1170 = vadd.f32 %v1058, %v1154
        %v1171 = vadd.f32 %v1059, %v1155
        %v1172 = vadd.f32 %v1060, %v1156
        %v1173 = vadd.f32 %v1061, %v1157
        %v1174 = vadd.f32 %v1062, %v1158
        %s1175 = scalar_lea.vmem %s442, 128 [#allocation6]
        %1176 = vst [vmem:[%s1175] sm:$0xff] %v1159
        %1177 = vst [vmem:[%s1175 + $0x8] sm:$0xff] %v1160
        %1178 = vst [vmem:[%s1175 + $0x10] sm:$0xff] %v1161
        %1179 = vst [vmem:[%s1175 + $0x18] sm:$0xff] %v1162
        %1180 = vst [vmem:[%s1175 + $0x20] sm:$0xff] %v1163
        %1181 = vst [vmem:[%s1175 + $0x28] sm:$0xff] %v1164
        %1182 = vst [vmem:[%s1175 + $0x30] sm:$0xff] %v1165
        %1183 = vst [vmem:[%s1175 + $0x38] sm:$0xff] %v1166
        %1184 = vst [vmem:[%s1175 + $0x40] sm:$0xff] %v1167
        %1185 = vst [vmem:[%s1175 + $0x48] sm:$0xff] %v1168
        %1186 = vst [vmem:[%s1175 + $0x50] sm:$0xff] %v1169
        %1187 = vst [vmem:[%s1175 + $0x58] sm:$0xff] %v1170
        %1188 = vst [vmem:[%s1175 + $0x60] sm:$0xff] %v1171
        %1189 = vst [vmem:[%s1175 + $0x68] sm:$0xff] %v1172
        %1190 = vst [vmem:[%s1175 + $0x70] sm:$0xff] %v1173
        %1191 = vst [vmem:[%s1175 + $0x78] sm:$0xff] %v1174
        %1192 = vadd.xlane.f32.xlu0 %v1047
        %v1193 = vpop.xlane.xlu0 %1192
        %1194 = vadd.xlane.f32.xlu0 %v1048
        %v1195 = vpop.xlane.xlu0 %1194
        %1196 = vadd.xlane.f32.xlu0 %v1049
        %v1197 = vpop.xlane.xlu0 %1196
        %1198 = vadd.xlane.f32.xlu0 %v1050
        %v1199 = vpop.xlane.xlu0 %1198
        %1200 = vadd.xlane.f32.xlu0 %v1051
        %v1201 = vpop.xlane.xlu0 %1200
        %1202 = vadd.xlane.f32.xlu0 %v1052
        %v1203 = vpop.xlane.xlu0 %1202
        %1204 = vadd.xlane.f32.xlu0 %v1053
        %v1205 = vpop.xlane.xlu0 %1204
        %1206 = vadd.xlane.f32.xlu0 %v1054
        %v1207 = vpop.xlane.xlu0 %1206
        %1208 = vadd.xlane.f32.xlu0 %v1055
        %v1209 = vpop.xlane.xlu0 %1208
        %1210 = vadd.xlane.f32.xlu0 %v1056
        %v1211 = vpop.xlane.xlu0 %1210
        %1212 = vadd.xlane.f32.xlu0 %v1057
        %v1213 = vpop.xlane.xlu0 %1212
        %1214 = vadd.xlane.f32.xlu0 %v1058
        %v1215 = vpop.xlane.xlu0 %1214
        %1216 = vadd.xlane.f32.xlu0 %v1059
        %v1217 = vpop.xlane.xlu0 %1216
        %1218 = vadd.xlane.f32.xlu0 %v1060
        %v1219 = vpop.xlane.xlu0 %1218
        %1220 = vadd.xlane.f32.xlu0 %v1061
        %v1221 = vpop.xlane.xlu0 %1220
        %1222 = vadd.xlane.f32.xlu0 %v1062
        %v1223 = vpop.xlane.xlu0 %1222
        %v1224 = vlaneseq
        %v1225 = vshrl.u32 %v1224, 7
        %v1226 = vsub.s32 1, %v1225
        %v1227 = vrot.slane %v710, %v1226
        %v1228 = vmul.f32 %v1108, %v1227
        %v1229 = vmul.f32 %v1110, %v1227
        %v1230 = vmul.f32 %v1112, %v1227
        %v1231 = vmul.f32 %v1114, %v1227
        %v1232 = vmul.f32 %v1116, %v1227
        %v1233 = vmul.f32 %v1118, %v1227
        %v1234 = vmul.f32 %v1120, %v1227
        %v1235 = vmul.f32 %v1122, %v1227
        %v1236 = vmul.f32 %v1124, %v1227
        %v1237 = vmul.f32 %v1126, %v1227
        %v1238 = vmul.f32 %v1128, %v1227
        %v1239 = vmul.f32 %v1130, %v1227
        %v1240 = vmul.f32 %v1132, %v1227
        %v1241 = vmul.f32 %v1134, %v1227
        %v1242 = vmul.f32 %v1136, %v1227
        %v1243 = vmul.f32 %v1138, %v1227
        %v1244 = vadd.f32 %v1193, %v1228
        %v1245 = vadd.f32 %v1195, %v1229
        %v1246 = vadd.f32 %v1197, %v1230
        %v1247 = vadd.f32 %v1199, %v1231
        %v1248 = vadd.f32 %v1201, %v1232
        %v1249 = vadd.f32 %v1203, %v1233
        %v1250 = vadd.f32 %v1205, %v1234
        %v1251 = vadd.f32 %v1207, %v1235
        %v1252 = vadd.f32 %v1209, %v1236
        %v1253 = vadd.f32 %v1211, %v1237
        %v1254 = vadd.f32 %v1213, %v1238
        %v1255 = vadd.f32 %v1215, %v1239
        %v1256 = vadd.f32 %v1217, %v1240
        %v1257 = vadd.f32 %v1219, %v1241
        %v1258 = vadd.f32 %v1221, %v1242
        %v1259 = vadd.f32 %v1223, %v1243
        %v1260 = vmul.f32 %v1244, %v727
        %v1261 = vmul.f32 %v1245, %v728
        %v1262 = vmul.f32 %v1246, %v729
        %v1263 = vmul.f32 %v1247, %v730
        %v1264 = vmul.f32 %v1248, %v731
        %v1265 = vmul.f32 %v1249, %v732
        %v1266 = vmul.f32 %v1250, %v733
        %v1267 = vmul.f32 %v1251, %v734
        %v1268 = vmul.f32 %v1252, %v735
        %v1269 = vmul.f32 %v1253, %v736
        %v1270 = vmul.f32 %v1254, %v737
        %v1271 = vmul.f32 %v1255, %v738
        %v1272 = vmul.f32 %v1256, %v739
        %v1273 = vmul.f32 %v1257, %v740
        %v1274 = vmul.f32 %v1258, %v741
        %v1275 = vmul.f32 %v1259, %v742
        %v1277 = vrot.slane %v707, 1
        %1279 = vmatprep.subr.mxu0 0.0
        %1280 = vmatpush1.msra.mxu0 %v1275
        %1281 = vmatprep.subr.mxu0 0.0
        %1282 = vmatpush1.msra.mxu0 %v1274
        %1283 = vmatprep.subr.mxu0 0.0
        %1284 = vmatpush1.msra.mxu0 %v1273
        %1285 = vmatprep.subr.mxu0 0.0
        %1286 = vmatpush1.msra.mxu0 %v1272
        %1287 = vmatprep.subr.mxu0 0.0
        %1288 = vmatpush1.msra.mxu0 %v1271
        %1289 = vmatprep.subr.mxu0 0.0
        %1290 = vmatpush1.msra.mxu0 %v1270
        %1291 = vmatprep.subr.mxu0 0.0
        %1292 = vmatpush1.msra.mxu0 %v1269
        %1293 = vmatprep.subr.mxu0 0.0
        %1294 = vmatpush1.msra.mxu0 %v1268
        %1295 = vmatprep.subr.mxu0 0.0
        %1296 = vmatpush1.msra.mxu0 %v1267
        %1297 = vmatprep.subr.mxu0 0.0
        %1298 = vmatpush1.msra.mxu0 %v1266
        %1299 = vmatprep.subr.mxu0 0.0
        %1300 = vmatpush1.msra.mxu0 %v1265
        %1301 = vmatprep.subr.mxu0 0.0
        %1302 = vmatpush1.msra.mxu0 %v1264
        %1303 = vmatprep.subr.mxu0 0.0
        %1304 = vmatpush1.msra.mxu0 %v1263
        %1305 = vmatprep.subr.mxu0 0.0
        %1306 = vmatpush1.msra.mxu0 %v1262
        %1307 = vmatprep.subr.mxu0 0.0
        %1308 = vmatpush1.msra.mxu0 %v1261
        %1309 = vmatprep.subr.mxu0 0.0
        %1310 = vmatpush1.msra.mxu0 %v1260
        %1311 = vmatprep.subr.mxu0 0.0
        %1312 = vmatpush2.msra.mxu0 0.0
        %1313 = vmatprep.subr.mxu0 0.0
        %1314 = vmatpush2.msra.mxu0 0.0
        %1315 = vmatprep.subr.mxu0 0.0
        %1316 = vmatpush2.msra.mxu0 0.0
        %1317 = vmatprep.subr.mxu0 0.0
        %1318 = vmatpush2.msra.mxu0 0.0
        %1319 = vmatprep.subr.mxu0 0.0
        %1320 = vmatpush2.msra.mxu0 0.0
        %1321 = vmatprep.subr.mxu0 0.0
        %1322 = vmatpush2.msra.mxu0 0.0
        %1323 = vmatprep.subr.mxu0 0.0
        %1324 = vmatpush2.msra.mxu0 0.0
        %1325 = vmatprep.subr.mxu0 0.0
        %1326 = vmatpush2.msra.mxu0 0.0
        %1327 = vmatprep.subr.mxu0 0.0
        %1328 = vmatpush2.msra.mxu0 0.0
        %1329 = vmatprep.subr.mxu0 0.0
        %1330 = vmatpush2.msra.mxu0 0.0
        %1331 = vmatprep.subr.mxu0 0.0
        %1332 = vmatpush2.msra.mxu0 0.0
        %1333 = vmatprep.subr.mxu0 0.0
        %1334 = vmatpush2.msra.mxu0 0.0
        %1335 = vmatprep.subr.mxu0 0.0
        %1336 = vmatpush2.msra.mxu0 0.0
        %1337 = vmatprep.subr.mxu0 0.0
        %1338 = vmatpush2.msra.mxu0 0.0
        %1339 = vmatprep.subr.mxu0 0.0
        %1340 = vmatpush2.msra.mxu0 0.0
        %1341 = vmatprep.subr.mxu0 0.0
        %1342 = vmatpush2.msra.mxu0 0.0
        %1343 = vmatprep.mubr.f32.mxu0 0.0
        %1344 = vmatmul.mubr.f32.gmra.mxu0 %v1277
        %v1345 = vpop.f32.mrf.mxu0
        %v1346 = vadd.f32 0.0, %v1345
        %v1347 = vpop.f32.mrf.mxu0
        %1348 = vdwg.mxu0
        %s1349 = scalar_lea.vmem %s391, 256 [#allocation2]
        %v1350 = vld [vmem:[%s1349] sm:$0xff]
        %v1351 = vld [vmem:[%s1349 + $0x8] sm:$0xff]
        %v1352 = vld [vmem:[%s1349 + $0x10] sm:$0xff]
        %v1353 = vld [vmem:[%s1349 + $0x18] sm:$0xff]
        %v1354 = vld [vmem:[%s1349 + $0x20] sm:$0xff]
        %v1355 = vld [vmem:[%s1349 + $0x28] sm:$0xff]
        %v1356 = vld [vmem:[%s1349 + $0x30] sm:$0xff]
        %v1357 = vld [vmem:[%s1349 + $0x38] sm:$0xff]
        %v1358 = vld [vmem:[%s1349 + $0x40] sm:$0xff]
        %v1359 = vld [vmem:[%s1349 + $0x48] sm:$0xff]
        %v1360 = vld [vmem:[%s1349 + $0x50] sm:$0xff]
        %v1361 = vld [vmem:[%s1349 + $0x58] sm:$0xff]
        %v1362 = vld [vmem:[%s1349 + $0x60] sm:$0xff]
        %v1363 = vld [vmem:[%s1349 + $0x68] sm:$0xff]
        %v1364 = vld [vmem:[%s1349 + $0x70] sm:$0xff]
        %v1365 = vld [vmem:[%s1349 + $0x78] sm:$0xff]
        %v1366 = vadd.f32 %v1350, %v1351
        %v1367 = vadd.f32 %v1366, %v1352
        %v1368 = vadd.f32 %v1367, %v1353
        %v1369 = vadd.f32 %v1368, %v1354
        %v1370 = vadd.f32 %v1369, %v1355
        %v1371 = vadd.f32 %v1370, %v1356
        %v1372 = vadd.f32 %v1371, %v1357
        %v1373 = vadd.f32 %v1372, %v1358
        %v1374 = vadd.f32 %v1373, %v1359
        %v1375 = vadd.f32 %v1374, %v1360
        %v1376 = vadd.f32 %v1375, %v1361
        %v1377 = vadd.f32 %v1376, %v1362
        %v1378 = vadd.f32 %v1377, %v1363
        %v1379 = vadd.f32 %v1378, %v1364
        %v1380 = vadd.f32 %v1379, %v1365
        %v1381 = vrot.slane %v1380, 4
        %v1382 = vadd.f32 %v1380, %v1381
        %v1383 = vrot.slane %v1382, 2
        %v1384 = vadd.f32 %v1382, %v1383
        %v1385 = vrot.slane %v1384, 1
        %v1386 = vadd.f32 %v1384, %v1385
        %v1387 = vmul.f32 %v708, %v1386
        %v1388 = vsub.f32 %v546, %v1387
        %v1389 = vmul.f32 %v785, %v1388
        %v1390 = vlaneseq
        %v1391 = vshrl.u32 %v1390, 7
        %v1392 = vsub.s32 2, %v1391
        %v1393 = vrot.slane %v1389, %v1392
        %v1394 = vmul.f32 %v711, %v1393
        %v1395 = vmul.f32 %v712, %v1393
        %v1396 = vmul.f32 %v713, %v1393
        %v1397 = vmul.f32 %v714, %v1393
        %v1398 = vmul.f32 %v715, %v1393
        %v1399 = vmul.f32 %v716, %v1393
        %v1400 = vmul.f32 %v717, %v1393
        %v1401 = vmul.f32 %v718, %v1393
        %v1402 = vmul.f32 %v719, %v1393
        %v1403 = vmul.f32 %v720, %v1393
        %v1404 = vmul.f32 %v721, %v1393
        %v1405 = vmul.f32 %v722, %v1393
        %v1406 = vmul.f32 %v723, %v1393
        %v1407 = vmul.f32 %v724, %v1393
        %v1408 = vmul.f32 %v725, %v1393
        %v1409 = vmul.f32 %v726, %v1393
        %1410 = vadd.xlane.f32.xlu0 %v1394
        %v1411 = vpop.xlane.xlu0 %1410
        %1412 = vadd.xlane.f32.xlu0 %v1395
        %v1413 = vpop.xlane.xlu0 %1412
        %1414 = vadd.xlane.f32.xlu0 %v1396
        %v1415 = vpop.xlane.xlu0 %1414
        %1416 = vadd.xlane.f32.xlu0 %v1397
        %v1417 = vpop.xlane.xlu0 %1416
        %1418 = vadd.xlane.f32.xlu0 %v1398
        %v1419 = vpop.xlane.xlu0 %1418
        %1420 = vadd.xlane.f32.xlu0 %v1399
        %v1421 = vpop.xlane.xlu0 %1420
        %1422 = vadd.xlane.f32.xlu0 %v1400
        %v1423 = vpop.xlane.xlu0 %1422
        %1424 = vadd.xlane.f32.xlu0 %v1401
        %v1425 = vpop.xlane.xlu0 %1424
        %1426 = vadd.xlane.f32.xlu0 %v1402
        %v1427 = vpop.xlane.xlu0 %1426
        %1428 = vadd.xlane.f32.xlu0 %v1403
        %v1429 = vpop.xlane.xlu0 %1428
        %1430 = vadd.xlane.f32.xlu0 %v1404
        %v1431 = vpop.xlane.xlu0 %1430
        %1432 = vadd.xlane.f32.xlu0 %v1405
        %v1433 = vpop.xlane.xlu0 %1432
        %1434 = vadd.xlane.f32.xlu0 %v1406
        %v1435 = vpop.xlane.xlu0 %1434
        %1436 = vadd.xlane.f32.xlu0 %v1407
        %v1437 = vpop.xlane.xlu0 %1436
        %1438 = vadd.xlane.f32.xlu0 %v1408
        %v1439 = vpop.xlane.xlu0 %1438
        %1440 = vadd.xlane.f32.xlu0 %v1409
        %v1441 = vpop.xlane.xlu0 %1440
        %v1442 = vlaneseq
        %v1443 = vshrl.u32 %v1442, 7
        %v1444 = vsub.s32 2, %v1443
        %v1445 = vrot.slane %v708, %v1444
        %v1446 = vmul.f32 %v1411, %v1445
        %v1447 = vmul.f32 %v1413, %v1445
        %v1448 = vmul.f32 %v1415, %v1445
        %v1449 = vmul.f32 %v1417, %v1445
        %v1450 = vmul.f32 %v1419, %v1445
        %v1451 = vmul.f32 %v1421, %v1445
        %v1452 = vmul.f32 %v1423, %v1445
        %v1453 = vmul.f32 %v1425, %v1445
        %v1454 = vmul.f32 %v1427, %v1445
        %v1455 = vmul.f32 %v1429, %v1445
        %v1456 = vmul.f32 %v1431, %v1445
        %v1457 = vmul.f32 %v1433, %v1445
        %v1458 = vmul.f32 %v1435, %v1445
        %v1459 = vmul.f32 %v1437, %v1445
        %v1460 = vmul.f32 %v1439, %v1445
        %v1461 = vmul.f32 %v1441, %v1445
        %v1462 = vadd.f32 %v1350, %v1446
        %v1463 = vadd.f32 %v1351, %v1447
        %v1464 = vadd.f32 %v1352, %v1448
        %v1465 = vadd.f32 %v1353, %v1449
        %v1466 = vadd.f32 %v1354, %v1450
        %v1467 = vadd.f32 %v1355, %v1451
        %v1468 = vadd.f32 %v1356, %v1452
        %v1469 = vadd.f32 %v1357, %v1453
        %v1470 = vadd.f32 %v1358, %v1454
        %v1471 = vadd.f32 %v1359, %v1455
        %v1472 = vadd.f32 %v1360, %v1456
        %v1473 = vadd.f32 %v1361, %v1457
        %v1474 = vadd.f32 %v1362, %v1458
        %v1475 = vadd.f32 %v1363, %v1459
        %v1476 = vadd.f32 %v1364, %v1460
        %v1477 = vadd.f32 %v1365, %v1461
        %s1478 = scalar_lea.vmem %s442, 256 [#allocation6]
        %1479 = vst [vmem:[%s1478] sm:$0xff] %v1462
        %1480 = vst [vmem:[%s1478 + $0x8] sm:$0xff] %v1463
        %1481 = vst [vmem:[%s1478 + $0x10] sm:$0xff] %v1464
        %1482 = vst [vmem:[%s1478 + $0x18] sm:$0xff] %v1465
        %1483 = vst [vmem:[%s1478 + $0x20] sm:$0xff] %v1466
        %1484 = vst [vmem:[%s1478 + $0x28] sm:$0xff] %v1467
        %1485 = vst [vmem:[%s1478 + $0x30] sm:$0xff] %v1468
        %1486 = vst [vmem:[%s1478 + $0x38] sm:$0xff] %v1469
        %1487 = vst [vmem:[%s1478 + $0x40] sm:$0xff] %v1470
        %1488 = vst [vmem:[%s1478 + $0x48] sm:$0xff] %v1471
        %1489 = vst [vmem:[%s1478 + $0x50] sm:$0xff] %v1472
        %1490 = vst [vmem:[%s1478 + $0x58] sm:$0xff] %v1473
        %1491 = vst [vmem:[%s1478 + $0x60] sm:$0xff] %v1474
        %1492 = vst [vmem:[%s1478 + $0x68] sm:$0xff] %v1475
        %1493 = vst [vmem:[%s1478 + $0x70] sm:$0xff] %v1476
        %1494 = vst [vmem:[%s1478 + $0x78] sm:$0xff] %v1477
        %1495 = vadd.xlane.f32.xlu0 %v1350
        %v1496 = vpop.xlane.xlu0 %1495
        %1497 = vadd.xlane.f32.xlu0 %v1351
        %v1498 = vpop.xlane.xlu0 %1497
        %1499 = vadd.xlane.f32.xlu0 %v1352
        %v1500 = vpop.xlane.xlu0 %1499
        %1501 = vadd.xlane.f32.xlu0 %v1353
        %v1502 = vpop.xlane.xlu0 %1501
        %1503 = vadd.xlane.f32.xlu0 %v1354
        %v1504 = vpop.xlane.xlu0 %1503
        %1505 = vadd.xlane.f32.xlu0 %v1355
        %v1506 = vpop.xlane.xlu0 %1505
        %1507 = vadd.xlane.f32.xlu0 %v1356
        %v1508 = vpop.xlane.xlu0 %1507
        %1509 = vadd.xlane.f32.xlu0 %v1357
        %v1510 = vpop.xlane.xlu0 %1509
        %1511 = vadd.xlane.f32.xlu0 %v1358
        %v1512 = vpop.xlane.xlu0 %1511
        %1513 = vadd.xlane.f32.xlu0 %v1359
        %v1514 = vpop.xlane.xlu0 %1513
        %1515 = vadd.xlane.f32.xlu0 %v1360
        %v1516 = vpop.xlane.xlu0 %1515
        %1517 = vadd.xlane.f32.xlu0 %v1361
        %v1518 = vpop.xlane.xlu0 %1517
        %1519 = vadd.xlane.f32.xlu0 %v1362
        %v1520 = vpop.xlane.xlu0 %1519
        %1521 = vadd.xlane.f32.xlu0 %v1363
        %v1522 = vpop.xlane.xlu0 %1521
        %1523 = vadd.xlane.f32.xlu0 %v1364
        %v1524 = vpop.xlane.xlu0 %1523
        %1525 = vadd.xlane.f32.xlu0 %v1365
        %v1526 = vpop.xlane.xlu0 %1525
        %v1527 = vlaneseq
        %v1528 = vshrl.u32 %v1527, 7
        %v1529 = vsub.s32 2, %v1528
        %v1530 = vrot.slane %v710, %v1529
        %v1531 = vmul.f32 %v1411, %v1530
        %v1532 = vmul.f32 %v1413, %v1530
        %v1533 = vmul.f32 %v1415, %v1530
        %v1534 = vmul.f32 %v1417, %v1530
        %v1535 = vmul.f32 %v1419, %v1530
        %v1536 = vmul.f32 %v1421, %v1530
        %v1537 = vmul.f32 %v1423, %v1530
        %v1538 = vmul.f32 %v1425, %v1530
        %v1539 = vmul.f32 %v1427, %v1530
        %v1540 = vmul.f32 %v1429, %v1530
        %v1541 = vmul.f32 %v1431, %v1530
        %v1542 = vmul.f32 %v1433, %v1530
        %v1543 = vmul.f32 %v1435, %v1530
        %v1544 = vmul.f32 %v1437, %v1530
        %v1545 = vmul.f32 %v1439, %v1530
        %v1546 = vmul.f32 %v1441, %v1530
        %v1547 = vadd.f32 %v1496, %v1531
        %v1548 = vadd.f32 %v1498, %v1532
        %v1549 = vadd.f32 %v1500, %v1533
        %v1550 = vadd.f32 %v1502, %v1534
        %v1551 = vadd.f32 %v1504, %v1535
        %v1552 = vadd.f32 %v1506, %v1536
        %v1553 = vadd.f32 %v1508, %v1537
        %v1554 = vadd.f32 %v1510, %v1538
        %v1555 = vadd.f32 %v1512, %v1539
        %v1556 = vadd.f32 %v1514, %v1540
        %v1557 = vadd.f32 %v1516, %v1541
        %v1558 = vadd.f32 %v1518, %v1542
        %v1559 = vadd.f32 %v1520, %v1543
        %v1560 = vadd.f32 %v1522, %v1544
        %v1561 = vadd.f32 %v1524, %v1545
        %v1562 = vadd.f32 %v1526, %v1546
        %v1563 = vmul.f32 %v1547, %v727
        %v1564 = vmul.f32 %v1548, %v728
        %v1565 = vmul.f32 %v1549, %v729
        %v1566 = vmul.f32 %v1550, %v730
        %v1567 = vmul.f32 %v1551, %v731
        %v1568 = vmul.f32 %v1552, %v732
        %v1569 = vmul.f32 %v1553, %v733
        %v1570 = vmul.f32 %v1554, %v734
        %v1571 = vmul.f32 %v1555, %v735
        %v1572 = vmul.f32 %v1556, %v736
        %v1573 = vmul.f32 %v1557, %v737
        %v1574 = vmul.f32 %v1558, %v738
        %v1575 = vmul.f32 %v1559, %v739
        %v1576 = vmul.f32 %v1560, %v740
        %v1577 = vmul.f32 %v1561, %v741
        %v1578 = vmul.f32 %v1562, %v742
        %v1579 = vrot.slane %v707, 2
        %1581 = vmatprep.subr.mxu0 0.0
        %1582 = vmatpush1.msra.mxu0 %v1578
        %1583 = vmatprep.subr.mxu0 0.0
        %1584 = vmatpush1.msra.mxu0 %v1577
        %1585 = vmatprep.subr.mxu0 0.0
        %1586 = vmatpush1.msra.mxu0 %v1576
        %1587 = vmatprep.subr.mxu0 0.0
        %1588 = vmatpush1.msra.mxu0 %v1575
        %1589 = vmatprep.subr.mxu0 0.0
        %1590 = vmatpush1.msra.mxu0 %v1574
        %1591 = vmatprep.subr.mxu0 0.0
        %1592 = vmatpush1.msra.mxu0 %v1573
        %1593 = vmatprep.subr.mxu0 0.0
        %1594 = vmatpush1.msra.mxu0 %v1572
        %1595 = vmatprep.subr.mxu0 0.0
        %1596 = vmatpush1.msra.mxu0 %v1571
        %1597 = vmatprep.subr.mxu0 0.0
        %1598 = vmatpush1.msra.mxu0 %v1570
        %1599 = vmatprep.subr.mxu0 0.0
        %1600 = vmatpush1.msra.mxu0 %v1569
        %1601 = vmatprep.subr.mxu0 0.0
        %1602 = vmatpush1.msra.mxu0 %v1568
        %1603 = vmatprep.subr.mxu0 0.0
        %1604 = vmatpush1.msra.mxu0 %v1567
        %1605 = vmatprep.subr.mxu0 0.0
        %1606 = vmatpush1.msra.mxu0 %v1566
        %1607 = vmatprep.subr.mxu0 0.0
        %1608 = vmatpush1.msra.mxu0 %v1565
        %1609 = vmatprep.subr.mxu0 0.0
        %1610 = vmatpush1.msra.mxu0 %v1564
        %1611 = vmatprep.subr.mxu0 0.0
        %1612 = vmatpush1.msra.mxu0 %v1563
        %1613 = vmatprep.subr.mxu0 0.0
        %1614 = vmatpush2.msra.mxu0 0.0
        %1615 = vmatprep.subr.mxu0 0.0
        %1616 = vmatpush2.msra.mxu0 0.0
        %1617 = vmatprep.subr.mxu0 0.0
        %1618 = vmatpush2.msra.mxu0 0.0
        %1619 = vmatprep.subr.mxu0 0.0
        %1620 = vmatpush2.msra.mxu0 0.0
        %1621 = vmatprep.subr.mxu0 0.0
        %1622 = vmatpush2.msra.mxu0 0.0
        %1623 = vmatprep.subr.mxu0 0.0
        %1624 = vmatpush2.msra.mxu0 0.0
        %1625 = vmatprep.subr.mxu0 0.0
        %1626 = vmatpush2.msra.mxu0 0.0
        %1627 = vmatprep.subr.mxu0 0.0
        %1628 = vmatpush2.msra.mxu0 0.0
        %1629 = vmatprep.subr.mxu0 0.0
        %1630 = vmatpush2.msra.mxu0 0.0
        %1631 = vmatprep.subr.mxu0 0.0
        %1632 = vmatpush2.msra.mxu0 0.0
        %1633 = vmatprep.subr.mxu0 0.0
        %1634 = vmatpush2.msra.mxu0 0.0
        %1635 = vmatprep.subr.mxu0 0.0
        %1636 = vmatpush2.msra.mxu0 0.0
        %1637 = vmatprep.subr.mxu0 0.0
        %1638 = vmatpush2.msra.mxu0 0.0
        %1639 = vmatprep.subr.mxu0 0.0
        %1640 = vmatpush2.msra.mxu0 0.0
        %1641 = vmatprep.subr.mxu0 0.0
        %1642 = vmatpush2.msra.mxu0 0.0
        %1643 = vmatprep.subr.mxu0 0.0
        %1644 = vmatpush2.msra.mxu0 0.0
        %1645 = vmatprep.mubr.f32.mxu0 0.0
        %1646 = vmatmul.mubr.f32.gmra.mxu0 %v1579
        %v1647 = vpop.f32.mrf.mxu0
        %v1648 = vadd.f32 0.0, %v1647
        %v1649 = vpop.f32.mrf.mxu0
        %1650 = vdwg.mxu0
        %s1651 = scalar_lea.vmem %s391, 384 [#allocation2]
        %v1652 = vld [vmem:[%s1651] sm:$0xff]
        %v1653 = vld [vmem:[%s1651 + $0x8] sm:$0xff]
        %v1654 = vld [vmem:[%s1651 + $0x10] sm:$0xff]
        %v1655 = vld [vmem:[%s1651 + $0x18] sm:$0xff]
        %v1656 = vld [vmem:[%s1651 + $0x20] sm:$0xff]
        %v1657 = vld [vmem:[%s1651 + $0x28] sm:$0xff]
        %v1658 = vld [vmem:[%s1651 + $0x30] sm:$0xff]
        %v1659 = vld [vmem:[%s1651 + $0x38] sm:$0xff]
        %v1660 = vld [vmem:[%s1651 + $0x40] sm:$0xff]
        %v1661 = vld [vmem:[%s1651 + $0x48] sm:$0xff]
        %v1662 = vld [vmem:[%s1651 + $0x50] sm:$0xff]
        %v1663 = vld [vmem:[%s1651 + $0x58] sm:$0xff]
        %v1664 = vld [vmem:[%s1651 + $0x60] sm:$0xff]
        %v1665 = vld [vmem:[%s1651 + $0x68] sm:$0xff]
        %v1666 = vld [vmem:[%s1651 + $0x70] sm:$0xff]
        %v1667 = vld [vmem:[%s1651 + $0x78] sm:$0xff]
        %v1668 = vadd.f32 %v1652, %v1653
        %v1669 = vadd.f32 %v1668, %v1654
        %v1670 = vadd.f32 %v1669, %v1655
        %v1671 = vadd.f32 %v1670, %v1656
        %v1672 = vadd.f32 %v1671, %v1657
        %v1673 = vadd.f32 %v1672, %v1658
        %v1674 = vadd.f32 %v1673, %v1659
        %v1675 = vadd.f32 %v1674, %v1660
        %v1676 = vadd.f32 %v1675, %v1661
        %v1677 = vadd.f32 %v1676, %v1662
        %v1678 = vadd.f32 %v1677, %v1663
        %v1679 = vadd.f32 %v1678, %v1664
        %v1680 = vadd.f32 %v1679, %v1665
        %v1681 = vadd.f32 %v1680, %v1666
        %v1682 = vadd.f32 %v1681, %v1667
        %v1683 = vrot.slane %v1682, 4
        %v1684 = vadd.f32 %v1682, %v1683
        %v1685 = vrot.slane %v1684, 2
        %v1686 = vadd.f32 %v1684, %v1685
        %v1687 = vrot.slane %v1686, 1
        %v1688 = vadd.f32 %v1686, %v1687
        %v1689 = vmul.f32 %v708, %v1688
        %v1690 = vsub.f32 %v546, %v1689
        %v1691 = vmul.f32 %v785, %v1690
        %v1692 = vlaneseq
        %v1693 = vshrl.u32 %v1692, 7
        %v1694 = vsub.s32 3, %v1693
        %v1695 = vrot.slane %v1691, %v1694
        %v1696 = vmul.f32 %v711, %v1695
        %v1697 = vmul.f32 %v712, %v1695
        %v1698 = vmul.f32 %v713, %v1695
        %v1699 = vmul.f32 %v714, %v1695
        %v1700 = vmul.f32 %v715, %v1695
        %v1701 = vmul.f32 %v716, %v1695
        %v1702 = vmul.f32 %v717, %v1695
        %v1703 = vmul.f32 %v718, %v1695
        %v1704 = vmul.f32 %v719, %v1695
        %v1705 = vmul.f32 %v720, %v1695
        %v1706 = vmul.f32 %v721, %v1695
        %v1707 = vmul.f32 %v722, %v1695
        %v1708 = vmul.f32 %v723, %v1695
        %v1709 = vmul.f32 %v724, %v1695
        %v1710 = vmul.f32 %v725, %v1695
        %v1711 = vmul.f32 %v726, %v1695
        %1712 = vadd.xlane.f32.xlu0 %v1696
        %v1713 = vpop.xlane.xlu0 %1712
        %1714 = vadd.xlane.f32.xlu0 %v1697
        %v1715 = vpop.xlane.xlu0 %1714
        %1716 = vadd.xlane.f32.xlu0 %v1698
        %v1717 = vpop.xlane.xlu0 %1716
        %1718 = vadd.xlane.f32.xlu0 %v1699
        %v1719 = vpop.xlane.xlu0 %1718
        %1720 = vadd.xlane.f32.xlu0 %v1700
        %v1721 = vpop.xlane.xlu0 %1720
        %1722 = vadd.xlane.f32.xlu0 %v1701
        %v1723 = vpop.xlane.xlu0 %1722
        %1724 = vadd.xlane.f32.xlu0 %v1702
        %v1725 = vpop.xlane.xlu0 %1724
        %1726 = vadd.xlane.f32.xlu0 %v1703
        %v1727 = vpop.xlane.xlu0 %1726
        %1728 = vadd.xlane.f32.xlu0 %v1704
        %v1729 = vpop.xlane.xlu0 %1728
        %1730 = vadd.xlane.f32.xlu0 %v1705
        %v1731 = vpop.xlane.xlu0 %1730
        %1732 = vadd.xlane.f32.xlu0 %v1706
        %v1733 = vpop.xlane.xlu0 %1732
        %1734 = vadd.xlane.f32.xlu0 %v1707
        %v1735 = vpop.xlane.xlu0 %1734
        %1736 = vadd.xlane.f32.xlu0 %v1708
        %v1737 = vpop.xlane.xlu0 %1736
        %1738 = vadd.xlane.f32.xlu0 %v1709
        %v1739 = vpop.xlane.xlu0 %1738
        %1740 = vadd.xlane.f32.xlu0 %v1710
        %v1741 = vpop.xlane.xlu0 %1740
        %1742 = vadd.xlane.f32.xlu0 %v1711
        %v1743 = vpop.xlane.xlu0 %1742
        %v1744 = vlaneseq
        %v1745 = vshrl.u32 %v1744, 7
        %v1746 = vsub.s32 3, %v1745
        %v1747 = vrot.slane %v708, %v1746
        %v1748 = vmul.f32 %v1713, %v1747
        %v1749 = vmul.f32 %v1715, %v1747
        %v1750 = vmul.f32 %v1717, %v1747
        %v1751 = vmul.f32 %v1719, %v1747
        %v1752 = vmul.f32 %v1721, %v1747
        %v1753 = vmul.f32 %v1723, %v1747
        %v1754 = vmul.f32 %v1725, %v1747
        %v1755 = vmul.f32 %v1727, %v1747
        %v1756 = vmul.f32 %v1729, %v1747
        %v1757 = vmul.f32 %v1731, %v1747
        %v1758 = vmul.f32 %v1733, %v1747
        %v1759 = vmul.f32 %v1735, %v1747
        %v1760 = vmul.f32 %v1737, %v1747
        %v1761 = vmul.f32 %v1739, %v1747
        %v1762 = vmul.f32 %v1741, %v1747
        %v1763 = vmul.f32 %v1743, %v1747
        %v1764 = vadd.f32 %v1652, %v1748
        %v1765 = vadd.f32 %v1653, %v1749
        %v1766 = vadd.f32 %v1654, %v1750
        %v1767 = vadd.f32 %v1655, %v1751
        %v1768 = vadd.f32 %v1656, %v1752
        %v1769 = vadd.f32 %v1657, %v1753
        %v1770 = vadd.f32 %v1658, %v1754
        %v1771 = vadd.f32 %v1659, %v1755
        %v1772 = vadd.f32 %v1660, %v1756
        %v1773 = vadd.f32 %v1661, %v1757
        %v1774 = vadd.f32 %v1662, %v1758
        %v1775 = vadd.f32 %v1663, %v1759
        %v1776 = vadd.f32 %v1664, %v1760
        %v1777 = vadd.f32 %v1665, %v1761
        %v1778 = vadd.f32 %v1666, %v1762
        %v1779 = vadd.f32 %v1667, %v1763
        %s1780 = scalar_lea.vmem %s442, 384 [#allocation6]
        %1781 = vst [vmem:[%s1780] sm:$0xff] %v1764
        %1782 = vst [vmem:[%s1780 + $0x8] sm:$0xff] %v1765
        %1783 = vst [vmem:[%s1780 + $0x10] sm:$0xff] %v1766
        %1784 = vst [vmem:[%s1780 + $0x18] sm:$0xff] %v1767
        %1785 = vst [vmem:[%s1780 + $0x20] sm:$0xff] %v1768
        %1786 = vst [vmem:[%s1780 + $0x28] sm:$0xff] %v1769
        %1787 = vst [vmem:[%s1780 + $0x30] sm:$0xff] %v1770
        %1788 = vst [vmem:[%s1780 + $0x38] sm:$0xff] %v1771
        %1789 = vst [vmem:[%s1780 + $0x40] sm:$0xff] %v1772
        %1790 = vst [vmem:[%s1780 + $0x48] sm:$0xff] %v1773
        %1791 = vst [vmem:[%s1780 + $0x50] sm:$0xff] %v1774
        %1792 = vst [vmem:[%s1780 + $0x58] sm:$0xff] %v1775
        %1793 = vst [vmem:[%s1780 + $0x60] sm:$0xff] %v1776
        %1794 = vst [vmem:[%s1780 + $0x68] sm:$0xff] %v1777
        %1795 = vst [vmem:[%s1780 + $0x70] sm:$0xff] %v1778
        %1796 = vst [vmem:[%s1780 + $0x78] sm:$0xff] %v1779
        %1797 = vadd.xlane.f32.xlu0 %v1652
        %v1798 = vpop.xlane.xlu0 %1797
        %1799 = vadd.xlane.f32.xlu0 %v1653
        %v1800 = vpop.xlane.xlu0 %1799
        %1801 = vadd.xlane.f32.xlu0 %v1654
        %v1802 = vpop.xlane.xlu0 %1801
        %1803 = vadd.xlane.f32.xlu0 %v1655
        %v1804 = vpop.xlane.xlu0 %1803
        %1805 = vadd.xlane.f32.xlu0 %v1656
        %v1806 = vpop.xlane.xlu0 %1805
        %1807 = vadd.xlane.f32.xlu0 %v1657
        %v1808 = vpop.xlane.xlu0 %1807
        %1809 = vadd.xlane.f32.xlu0 %v1658
        %v1810 = vpop.xlane.xlu0 %1809
        %1811 = vadd.xlane.f32.xlu0 %v1659
        %v1812 = vpop.xlane.xlu0 %1811
        %1813 = vadd.xlane.f32.xlu0 %v1660
        %v1814 = vpop.xlane.xlu0 %1813
        %1815 = vadd.xlane.f32.xlu0 %v1661
        %v1816 = vpop.xlane.xlu0 %1815
        %1817 = vadd.xlane.f32.xlu0 %v1662
        %v1818 = vpop.xlane.xlu0 %1817
        %1819 = vadd.xlane.f32.xlu0 %v1663
        %v1820 = vpop.xlane.xlu0 %1819
        %1821 = vadd.xlane.f32.xlu0 %v1664
        %v1822 = vpop.xlane.xlu0 %1821
        %1823 = vadd.xlane.f32.xlu0 %v1665
        %v1824 = vpop.xlane.xlu0 %1823
        %1825 = vadd.xlane.f32.xlu0 %v1666
        %v1826 = vpop.xlane.xlu0 %1825
        %1827 = vadd.xlane.f32.xlu0 %v1667
        %v1828 = vpop.xlane.xlu0 %1827
        %v1829 = vlaneseq
        %v1830 = vshrl.u32 %v1829, 7
        %v1831 = vsub.s32 3, %v1830
        %v1832 = vrot.slane %v710, %v1831
        %v1833 = vmul.f32 %v1713, %v1832
        %v1834 = vmul.f32 %v1715, %v1832
        %v1835 = vmul.f32 %v1717, %v1832
        %v1836 = vmul.f32 %v1719, %v1832
        %v1837 = vmul.f32 %v1721, %v1832
        %v1838 = vmul.f32 %v1723, %v1832
        %v1839 = vmul.f32 %v1725, %v1832
        %v1840 = vmul.f32 %v1727, %v1832
        %v1841 = vmul.f32 %v1729, %v1832
        %v1842 = vmul.f32 %v1731, %v1832
        %v1843 = vmul.f32 %v1733, %v1832
        %v1844 = vmul.f32 %v1735, %v1832
        %v1845 = vmul.f32 %v1737, %v1832
        %v1846 = vmul.f32 %v1739, %v1832
        %v1847 = vmul.f32 %v1741, %v1832
        %v1848 = vmul.f32 %v1743, %v1832
        %v1849 = vadd.f32 %v1798, %v1833
        %v1850 = vadd.f32 %v1800, %v1834
        %v1851 = vadd.f32 %v1802, %v1835
        %v1852 = vadd.f32 %v1804, %v1836
        %v1853 = vadd.f32 %v1806, %v1837
        %v1854 = vadd.f32 %v1808, %v1838
        %v1855 = vadd.f32 %v1810, %v1839
        %v1856 = vadd.f32 %v1812, %v1840
        %v1857 = vadd.f32 %v1814, %v1841
        %v1858 = vadd.f32 %v1816, %v1842
        %v1859 = vadd.f32 %v1818, %v1843
        %v1860 = vadd.f32 %v1820, %v1844
        %v1861 = vadd.f32 %v1822, %v1845
        %v1862 = vadd.f32 %v1824, %v1846
        %v1863 = vadd.f32 %v1826, %v1847
        %v1864 = vadd.f32 %v1828, %v1848
        %v1865 = vmul.f32 %v1849, %v727
        %v1866 = vmul.f32 %v1850, %v728
        %v1867 = vmul.f32 %v1851, %v729
        %v1868 = vmul.f32 %v1852, %v730
        %v1869 = vmul.f32 %v1853, %v731
        %v1870 = vmul.f32 %v1854, %v732
        %v1871 = vmul.f32 %v1855, %v733
        %v1872 = vmul.f32 %v1856, %v734
        %v1873 = vmul.f32 %v1857, %v735
        %v1874 = vmul.f32 %v1858, %v736
        %v1875 = vmul.f32 %v1859, %v737
        %v1876 = vmul.f32 %v1860, %v738
        %v1877 = vmul.f32 %v1861, %v739
        %v1878 = vmul.f32 %v1862, %v740
        %v1879 = vmul.f32 %v1863, %v741
        %v1880 = vmul.f32 %v1864, %v742
        %v1881 = vrot.slane %v707, 3
        %1883 = vmatprep.subr.mxu0 0.0
        %1884 = vmatpush1.msra.mxu0 %v1880
        %1885 = vmatprep.subr.mxu0 0.0
        %1886 = vmatpush1.msra.mxu0 %v1879
        %1887 = vmatprep.subr.mxu0 0.0
        %1888 = vmatpush1.msra.mxu0 %v1878
        %1889 = vmatprep.subr.mxu0 0.0
        %1890 = vmatpush1.msra.mxu0 %v1877
        %1891 = vmatprep.subr.mxu0 0.0
        %1892 = vmatpush1.msra.mxu0 %v1876
        %1893 = vmatprep.subr.mxu0 0.0
        %1894 = vmatpush1.msra.mxu0 %v1875
        %1895 = vmatprep.subr.mxu0 0.0
        %1896 = vmatpush1.msra.mxu0 %v1874
        %1897 = vmatprep.subr.mxu0 0.0
        %1898 = vmatpush1.msra.mxu0 %v1873
        %1899 = vmatprep.subr.mxu0 0.0
        %1900 = vmatpush1.msra.mxu0 %v1872
        %1901 = vmatprep.subr.mxu0 0.0
        %1902 = vmatpush1.msra.mxu0 %v1871
        %1903 = vmatprep.subr.mxu0 0.0
        %1904 = vmatpush1.msra.mxu0 %v1870
        %1905 = vmatprep.subr.mxu0 0.0
        %1906 = vmatpush1.msra.mxu0 %v1869
        %1907 = vmatprep.subr.mxu0 0.0
        %1908 = vmatpush1.msra.mxu0 %v1868
        %1909 = vmatprep.subr.mxu0 0.0
        %1910 = vmatpush1.msra.mxu0 %v1867
        %1911 = vmatprep.subr.mxu0 0.0
        %1912 = vmatpush1.msra.mxu0 %v1866
        %1913 = vmatprep.subr.mxu0 0.0
        %1914 = vmatpush1.msra.mxu0 %v1865
        %1915 = vmatprep.subr.mxu0 0.0
        %1916 = vmatpush2.msra.mxu0 0.0
        %1917 = vmatprep.subr.mxu0 0.0
        %1918 = vmatpush2.msra.mxu0 0.0
        %1919 = vmatprep.subr.mxu0 0.0
        %1920 = vmatpush2.msra.mxu0 0.0
        %1921 = vmatprep.subr.mxu0 0.0
        %1922 = vmatpush2.msra.mxu0 0.0
        %1923 = vmatprep.subr.mxu0 0.0
        %1924 = vmatpush2.msra.mxu0 0.0
        %1925 = vmatprep.subr.mxu0 0.0
        %1926 = vmatpush2.msra.mxu0 0.0
        %1927 = vmatprep.subr.mxu0 0.0
        %1928 = vmatpush2.msra.mxu0 0.0
        %1929 = vmatprep.subr.mxu0 0.0
        %1930 = vmatpush2.msra.mxu0 0.0
        %1931 = vmatprep.subr.mxu0 0.0
        %1932 = vmatpush2.msra.mxu0 0.0
        %1933 = vmatprep.subr.mxu0 0.0
        %1934 = vmatpush2.msra.mxu0 0.0
        %1935 = vmatprep.subr.mxu0 0.0
        %1936 = vmatpush2.msra.mxu0 0.0
        %1937 = vmatprep.subr.mxu0 0.0
        %1938 = vmatpush2.msra.mxu0 0.0
        %1939 = vmatprep.subr.mxu0 0.0
        %1940 = vmatpush2.msra.mxu0 0.0
        %1941 = vmatprep.subr.mxu0 0.0
        %1942 = vmatpush2.msra.mxu0 0.0
        %1943 = vmatprep.subr.mxu0 0.0
        %1944 = vmatpush2.msra.mxu0 0.0
        %1945 = vmatprep.subr.mxu0 0.0
        %1946 = vmatpush2.msra.mxu0 0.0
        %1947 = vmatprep.mubr.f32.mxu0 0.0
        %1948 = vmatmul.mubr.f32.gmra.mxu0 %v1881
        %v1949 = vpop.f32.mrf.mxu0
        %v1950 = vadd.f32 0.0, %v1949
        %v1951 = vpop.f32.mrf.mxu0
        %1952 = vdwg.mxu0
        %s1953 = scalar_lea.vmem %s391, 512 [#allocation2]
        %v1954 = vld [vmem:[%s1953] sm:$0xff]
        %v1955 = vld [vmem:[%s1953 + $0x8] sm:$0xff]
        %v1956 = vld [vmem:[%s1953 + $0x10] sm:$0xff]
        %v1957 = vld [vmem:[%s1953 + $0x18] sm:$0xff]
        %v1958 = vld [vmem:[%s1953 + $0x20] sm:$0xff]
        %v1959 = vld [vmem:[%s1953 + $0x28] sm:$0xff]
        %v1960 = vld [vmem:[%s1953 + $0x30] sm:$0xff]
        %v1961 = vld [vmem:[%s1953 + $0x38] sm:$0xff]
        %v1962 = vld [vmem:[%s1953 + $0x40] sm:$0xff]
        %v1963 = vld [vmem:[%s1953 + $0x48] sm:$0xff]
        %v1964 = vld [vmem:[%s1953 + $0x50] sm:$0xff]
        %v1965 = vld [vmem:[%s1953 + $0x58] sm:$0xff]
        %v1966 = vld [vmem:[%s1953 + $0x60] sm:$0xff]
        %v1967 = vld [vmem:[%s1953 + $0x68] sm:$0xff]
        %v1968 = vld [vmem:[%s1953 + $0x70] sm:$0xff]
        %v1969 = vld [vmem:[%s1953 + $0x78] sm:$0xff]
        %v1970 = vadd.f32 %v1954, %v1955
        %v1971 = vadd.f32 %v1970, %v1956
        %v1972 = vadd.f32 %v1971, %v1957
        %v1973 = vadd.f32 %v1972, %v1958
        %v1974 = vadd.f32 %v1973, %v1959
        %v1975 = vadd.f32 %v1974, %v1960
        %v1976 = vadd.f32 %v1975, %v1961
        %v1977 = vadd.f32 %v1976, %v1962
        %v1978 = vadd.f32 %v1977, %v1963
        %v1979 = vadd.f32 %v1978, %v1964
        %v1980 = vadd.f32 %v1979, %v1965
        %v1981 = vadd.f32 %v1980, %v1966
        %v1982 = vadd.f32 %v1981, %v1967
        %v1983 = vadd.f32 %v1982, %v1968
        %v1984 = vadd.f32 %v1983, %v1969
        %v1985 = vrot.slane %v1984, 4
        %v1986 = vadd.f32 %v1984, %v1985
        %v1987 = vrot.slane %v1986, 2
        %v1988 = vadd.f32 %v1986, %v1987
        %v1989 = vrot.slane %v1988, 1
        %v1990 = vadd.f32 %v1988, %v1989
        %v1991 = vmul.f32 %v708, %v1990
        %v1992 = vsub.f32 %v546, %v1991
        %v1993 = vmul.f32 %v785, %v1992
        %v1994 = vlaneseq
        %v1995 = vshrl.u32 %v1994, 7
        %v1996 = vsub.s32 4, %v1995
        %v1997 = vrot.slane %v1993, %v1996
        %v1998 = vmul.f32 %v711, %v1997
        %v1999 = vmul.f32 %v712, %v1997
        %v2000 = vmul.f32 %v713, %v1997
        %v2001 = vmul.f32 %v714, %v1997
        %v2002 = vmul.f32 %v715, %v1997
        %v2003 = vmul.f32 %v716, %v1997
        %v2004 = vmul.f32 %v717, %v1997
        %v2005 = vmul.f32 %v718, %v1997
        %v2006 = vmul.f32 %v719, %v1997
        %v2007 = vmul.f32 %v720, %v1997
        %v2008 = vmul.f32 %v721, %v1997
        %v2009 = vmul.f32 %v722, %v1997
        %v2010 = vmul.f32 %v723, %v1997
        %v2011 = vmul.f32 %v724, %v1997
        %v2012 = vmul.f32 %v725, %v1997
        %v2013 = vmul.f32 %v726, %v1997
        %2014 = vadd.xlane.f32.xlu0 %v1998
        %v2015 = vpop.xlane.xlu0 %2014
        %2016 = vadd.xlane.f32.xlu0 %v1999
        %v2017 = vpop.xlane.xlu0 %2016
        %2018 = vadd.xlane.f32.xlu0 %v2000
        %v2019 = vpop.xlane.xlu0 %2018
        %2020 = vadd.xlane.f32.xlu0 %v2001
        %v2021 = vpop.xlane.xlu0 %2020
        %2022 = vadd.xlane.f32.xlu0 %v2002
        %v2023 = vpop.xlane.xlu0 %2022
        %2024 = vadd.xlane.f32.xlu0 %v2003
        %v2025 = vpop.xlane.xlu0 %2024
        %2026 = vadd.xlane.f32.xlu0 %v2004
        %v2027 = vpop.xlane.xlu0 %2026
        %2028 = vadd.xlane.f32.xlu0 %v2005
        %v2029 = vpop.xlane.xlu0 %2028
        %2030 = vadd.xlane.f32.xlu0 %v2006
        %v2031 = vpop.xlane.xlu0 %2030
        %2032 = vadd.xlane.f32.xlu0 %v2007
        %v2033 = vpop.xlane.xlu0 %2032
        %2034 = vadd.xlane.f32.xlu0 %v2008
        %v2035 = vpop.xlane.xlu0 %2034
        %2036 = vadd.xlane.f32.xlu0 %v2009
        %v2037 = vpop.xlane.xlu0 %2036
        %2038 = vadd.xlane.f32.xlu0 %v2010
        %v2039 = vpop.xlane.xlu0 %2038
        %2040 = vadd.xlane.f32.xlu0 %v2011
        %v2041 = vpop.xlane.xlu0 %2040
        %2042 = vadd.xlane.f32.xlu0 %v2012
        %v2043 = vpop.xlane.xlu0 %2042
        %2044 = vadd.xlane.f32.xlu0 %v2013
        %v2045 = vpop.xlane.xlu0 %2044
        %v2046 = vlaneseq
        %v2047 = vshrl.u32 %v2046, 7
        %v2048 = vsub.s32 4, %v2047
        %v2049 = vrot.slane %v708, %v2048
        %v2050 = vmul.f32 %v2015, %v2049
        %v2051 = vmul.f32 %v2017, %v2049
        %v2052 = vmul.f32 %v2019, %v2049
        %v2053 = vmul.f32 %v2021, %v2049
        %v2054 = vmul.f32 %v2023, %v2049
        %v2055 = vmul.f32 %v2025, %v2049
        %v2056 = vmul.f32 %v2027, %v2049
        %v2057 = vmul.f32 %v2029, %v2049
        %v2058 = vmul.f32 %v2031, %v2049
        %v2059 = vmul.f32 %v2033, %v2049
        %v2060 = vmul.f32 %v2035, %v2049
        %v2061 = vmul.f32 %v2037, %v2049
        %v2062 = vmul.f32 %v2039, %v2049
        %v2063 = vmul.f32 %v2041, %v2049
        %v2064 = vmul.f32 %v2043, %v2049
        %v2065 = vmul.f32 %v2045, %v2049
        %v2066 = vadd.f32 %v1954, %v2050
        %v2067 = vadd.f32 %v1955, %v2051
        %v2068 = vadd.f32 %v1956, %v2052
        %v2069 = vadd.f32 %v1957, %v2053
        %v2070 = vadd.f32 %v1958, %v2054
        %v2071 = vadd.f32 %v1959, %v2055
        %v2072 = vadd.f32 %v1960, %v2056
        %v2073 = vadd.f32 %v1961, %v2057
        %v2074 = vadd.f32 %v1962, %v2058
        %v2075 = vadd.f32 %v1963, %v2059
        %v2076 = vadd.f32 %v1964, %v2060
        %v2077 = vadd.f32 %v1965, %v2061
        %v2078 = vadd.f32 %v1966, %v2062
        %v2079 = vadd.f32 %v1967, %v2063
        %v2080 = vadd.f32 %v1968, %v2064
        %v2081 = vadd.f32 %v1969, %v2065
        %s2082 = scalar_lea.vmem %s442, 512 [#allocation6]
        %2083 = vst [vmem:[%s2082] sm:$0xff] %v2066
        %2084 = vst [vmem:[%s2082 + $0x8] sm:$0xff] %v2067
        %2085 = vst [vmem:[%s2082 + $0x10] sm:$0xff] %v2068
        %2086 = vst [vmem:[%s2082 + $0x18] sm:$0xff] %v2069
        %2087 = vst [vmem:[%s2082 + $0x20] sm:$0xff] %v2070
        %2088 = vst [vmem:[%s2082 + $0x28] sm:$0xff] %v2071
        %2089 = vst [vmem:[%s2082 + $0x30] sm:$0xff] %v2072
        %2090 = vst [vmem:[%s2082 + $0x38] sm:$0xff] %v2073
        %2091 = vst [vmem:[%s2082 + $0x40] sm:$0xff] %v2074
        %2092 = vst [vmem:[%s2082 + $0x48] sm:$0xff] %v2075
        %2093 = vst [vmem:[%s2082 + $0x50] sm:$0xff] %v2076
        %2094 = vst [vmem:[%s2082 + $0x58] sm:$0xff] %v2077
        %2095 = vst [vmem:[%s2082 + $0x60] sm:$0xff] %v2078
        %2096 = vst [vmem:[%s2082 + $0x68] sm:$0xff] %v2079
        %2097 = vst [vmem:[%s2082 + $0x70] sm:$0xff] %v2080
        %2098 = vst [vmem:[%s2082 + $0x78] sm:$0xff] %v2081
        %2099 = vadd.xlane.f32.xlu0 %v1954
        %v2100 = vpop.xlane.xlu0 %2099
        %2101 = vadd.xlane.f32.xlu0 %v1955
        %v2102 = vpop.xlane.xlu0 %2101
        %2103 = vadd.xlane.f32.xlu0 %v1956
        %v2104 = vpop.xlane.xlu0 %2103
        %2105 = vadd.xlane.f32.xlu0 %v1957
        %v2106 = vpop.xlane.xlu0 %2105
        %2107 = vadd.xlane.f32.xlu0 %v1958
        %v2108 = vpop.xlane.xlu0 %2107
        %2109 = vadd.xlane.f32.xlu0 %v1959
        %v2110 = vpop.xlane.xlu0 %2109
        %2111 = vadd.xlane.f32.xlu0 %v1960
        %v2112 = vpop.xlane.xlu0 %2111
        %2113 = vadd.xlane.f32.xlu0 %v1961
        %v2114 = vpop.xlane.xlu0 %2113
        %2115 = vadd.xlane.f32.xlu0 %v1962
        %v2116 = vpop.xlane.xlu0 %2115
        %2117 = vadd.xlane.f32.xlu0 %v1963
        %v2118 = vpop.xlane.xlu0 %2117
        %2119 = vadd.xlane.f32.xlu0 %v1964
        %v2120 = vpop.xlane.xlu0 %2119
        %2121 = vadd.xlane.f32.xlu0 %v1965
        %v2122 = vpop.xlane.xlu0 %2121
        %2123 = vadd.xlane.f32.xlu0 %v1966
        %v2124 = vpop.xlane.xlu0 %2123
        %2125 = vadd.xlane.f32.xlu0 %v1967
        %v2126 = vpop.xlane.xlu0 %2125
        %2127 = vadd.xlane.f32.xlu0 %v1968
        %v2128 = vpop.xlane.xlu0 %2127
        %2129 = vadd.xlane.f32.xlu0 %v1969
        %v2130 = vpop.xlane.xlu0 %2129
        %v2131 = vlaneseq
        %v2132 = vshrl.u32 %v2131, 7
        %v2133 = vsub.s32 4, %v2132
        %v2134 = vrot.slane %v710, %v2133
        %v2135 = vmul.f32 %v2015, %v2134
        %v2136 = vmul.f32 %v2017, %v2134
        %v2137 = vmul.f32 %v2019, %v2134
        %v2138 = vmul.f32 %v2021, %v2134
        %v2139 = vmul.f32 %v2023, %v2134
        %v2140 = vmul.f32 %v2025, %v2134
        %v2141 = vmul.f32 %v2027, %v2134
        %v2142 = vmul.f32 %v2029, %v2134
        %v2143 = vmul.f32 %v2031, %v2134
        %v2144 = vmul.f32 %v2033, %v2134
        %v2145 = vmul.f32 %v2035, %v2134
        %v2146 = vmul.f32 %v2037, %v2134
        %v2147 = vmul.f32 %v2039, %v2134
        %v2148 = vmul.f32 %v2041, %v2134
        %v2149 = vmul.f32 %v2043, %v2134
        %v2150 = vmul.f32 %v2045, %v2134
        %v2151 = vadd.f32 %v2100, %v2135
        %v2152 = vadd.f32 %v2102, %v2136
        %v2153 = vadd.f32 %v2104, %v2137
        %v2154 = vadd.f32 %v2106, %v2138
        %v2155 = vadd.f32 %v2108, %v2139
        %v2156 = vadd.f32 %v2110, %v2140
        %v2157 = vadd.f32 %v2112, %v2141
        %v2158 = vadd.f32 %v2114, %v2142
        %v2159 = vadd.f32 %v2116, %v2143
        %v2160 = vadd.f32 %v2118, %v2144
        %v2161 = vadd.f32 %v2120, %v2145
        %v2162 = vadd.f32 %v2122, %v2146
        %v2163 = vadd.f32 %v2124, %v2147
        %v2164 = vadd.f32 %v2126, %v2148
        %v2165 = vadd.f32 %v2128, %v2149
        %v2166 = vadd.f32 %v2130, %v2150
        %v2167 = vmul.f32 %v2151, %v727
        %v2168 = vmul.f32 %v2152, %v728
        %v2169 = vmul.f32 %v2153, %v729
        %v2170 = vmul.f32 %v2154, %v730
        %v2171 = vmul.f32 %v2155, %v731
        %v2172 = vmul.f32 %v2156, %v732
        %v2173 = vmul.f32 %v2157, %v733
        %v2174 = vmul.f32 %v2158, %v734
        %v2175 = vmul.f32 %v2159, %v735
        %v2176 = vmul.f32 %v2160, %v736
        %v2177 = vmul.f32 %v2161, %v737
        %v2178 = vmul.f32 %v2162, %v738
        %v2179 = vmul.f32 %v2163, %v739
        %v2180 = vmul.f32 %v2164, %v740
        %v2181 = vmul.f32 %v2165, %v741
        %v2182 = vmul.f32 %v2166, %v742
        %v2183 = vrot.slane %v707, 4
        %2185 = vmatprep.subr.mxu0 0.0
        %2186 = vmatpush1.msra.mxu0 %v2182
        %2187 = vmatprep.subr.mxu0 0.0
        %2188 = vmatpush1.msra.mxu0 %v2181
        %2189 = vmatprep.subr.mxu0 0.0
        %2190 = vmatpush1.msra.mxu0 %v2180
        %2191 = vmatprep.subr.mxu0 0.0
        %2192 = vmatpush1.msra.mxu0 %v2179
        %2193 = vmatprep.subr.mxu0 0.0
        %2194 = vmatpush1.msra.mxu0 %v2178
        %2195 = vmatprep.subr.mxu0 0.0
        %2196 = vmatpush1.msra.mxu0 %v2177
        %2197 = vmatprep.subr.mxu0 0.0
        %2198 = vmatpush1.msra.mxu0 %v2176
        %2199 = vmatprep.subr.mxu0 0.0
        %2200 = vmatpush1.msra.mxu0 %v2175
        %2201 = vmatprep.subr.mxu0 0.0
        %2202 = vmatpush1.msra.mxu0 %v2174
        %2203 = vmatprep.subr.mxu0 0.0
        %2204 = vmatpush1.msra.mxu0 %v2173
        %2205 = vmatprep.subr.mxu0 0.0
        %2206 = vmatpush1.msra.mxu0 %v2172
        %2207 = vmatprep.subr.mxu0 0.0
        %2208 = vmatpush1.msra.mxu0 %v2171
        %2209 = vmatprep.subr.mxu0 0.0
        %2210 = vmatpush1.msra.mxu0 %v2170
        %2211 = vmatprep.subr.mxu0 0.0
        %2212 = vmatpush1.msra.mxu0 %v2169
        %2213 = vmatprep.subr.mxu0 0.0
        %2214 = vmatpush1.msra.mxu0 %v2168
        %2215 = vmatprep.subr.mxu0 0.0
        %2216 = vmatpush1.msra.mxu0 %v2167
        %2217 = vmatprep.subr.mxu0 0.0
        %2218 = vmatpush2.msra.mxu0 0.0
        %2219 = vmatprep.subr.mxu0 0.0
        %2220 = vmatpush2.msra.mxu0 0.0
        %2221 = vmatprep.subr.mxu0 0.0
        %2222 = vmatpush2.msra.mxu0 0.0
        %2223 = vmatprep.subr.mxu0 0.0
        %2224 = vmatpush2.msra.mxu0 0.0
        %2225 = vmatprep.subr.mxu0 0.0
        %2226 = vmatpush2.msra.mxu0 0.0
        %2227 = vmatprep.subr.mxu0 0.0
        %2228 = vmatpush2.msra.mxu0 0.0
        %2229 = vmatprep.subr.mxu0 0.0
        %2230 = vmatpush2.msra.mxu0 0.0
        %2231 = vmatprep.subr.mxu0 0.0
        %2232 = vmatpush2.msra.mxu0 0.0
        %2233 = vmatprep.subr.mxu0 0.0
        %2234 = vmatpush2.msra.mxu0 0.0
        %2235 = vmatprep.subr.mxu0 0.0
        %2236 = vmatpush2.msra.mxu0 0.0
        %2237 = vmatprep.subr.mxu0 0.0
        %2238 = vmatpush2.msra.mxu0 0.0
        %2239 = vmatprep.subr.mxu0 0.0
        %2240 = vmatpush2.msra.mxu0 0.0
        %2241 = vmatprep.subr.mxu0 0.0
        %2242 = vmatpush2.msra.mxu0 0.0
        %2243 = vmatprep.subr.mxu0 0.0
        %2244 = vmatpush2.msra.mxu0 0.0
        %2245 = vmatprep.subr.mxu0 0.0
        %2246 = vmatpush2.msra.mxu0 0.0
        %2247 = vmatprep.subr.mxu0 0.0
        %2248 = vmatpush2.msra.mxu0 0.0
        %2249 = vmatprep.mubr.f32.mxu0 0.0
        %2250 = vmatmul.mubr.f32.gmra.mxu0 %v2183
        %v2251 = vpop.f32.mrf.mxu0
        %v2252 = vadd.f32 0.0, %v2251
        %v2253 = vpop.f32.mrf.mxu0
        %2254 = vdwg.mxu0
        %s2255 = scalar_lea.vmem %s391, 640 [#allocation2]
        %v2256 = vld [vmem:[%s2255] sm:$0xff]
        %v2257 = vld [vmem:[%s2255 + $0x8] sm:$0xff]
        %v2258 = vld [vmem:[%s2255 + $0x10] sm:$0xff]
        %v2259 = vld [vmem:[%s2255 + $0x18] sm:$0xff]
        %v2260 = vld [vmem:[%s2255 + $0x20] sm:$0xff]
        %v2261 = vld [vmem:[%s2255 + $0x28] sm:$0xff]
        %v2262 = vld [vmem:[%s2255 + $0x30] sm:$0xff]
        %v2263 = vld [vmem:[%s2255 + $0x38] sm:$0xff]
        %v2264 = vld [vmem:[%s2255 + $0x40] sm:$0xff]
        %v2265 = vld [vmem:[%s2255 + $0x48] sm:$0xff]
        %v2266 = vld [vmem:[%s2255 + $0x50] sm:$0xff]
        %v2267 = vld [vmem:[%s2255 + $0x58] sm:$0xff]
        %v2268 = vld [vmem:[%s2255 + $0x60] sm:$0xff]
        %v2269 = vld [vmem:[%s2255 + $0x68] sm:$0xff]
        %v2270 = vld [vmem:[%s2255 + $0x70] sm:$0xff]
        %v2271 = vld [vmem:[%s2255 + $0x78] sm:$0xff]
        %v2272 = vadd.f32 %v2256, %v2257
        %v2273 = vadd.f32 %v2272, %v2258
        %v2274 = vadd.f32 %v2273, %v2259
        %v2275 = vadd.f32 %v2274, %v2260
        %v2276 = vadd.f32 %v2275, %v2261
        %v2277 = vadd.f32 %v2276, %v2262
        %v2278 = vadd.f32 %v2277, %v2263
        %v2279 = vadd.f32 %v2278, %v2264
        %v2280 = vadd.f32 %v2279, %v2265
        %v2281 = vadd.f32 %v2280, %v2266
        %v2282 = vadd.f32 %v2281, %v2267
        %v2283 = vadd.f32 %v2282, %v2268
        %v2284 = vadd.f32 %v2283, %v2269
        %v2285 = vadd.f32 %v2284, %v2270
        %v2286 = vadd.f32 %v2285, %v2271
        %v2287 = vrot.slane %v2286, 4
        %v2288 = vadd.f32 %v2286, %v2287
        %v2289 = vrot.slane %v2288, 2
        %v2290 = vadd.f32 %v2288, %v2289
        %v2291 = vrot.slane %v2290, 1
        %v2292 = vadd.f32 %v2290, %v2291
        %v2293 = vmul.f32 %v708, %v2292
        %v2294 = vsub.f32 %v546, %v2293
        %v2295 = vmul.f32 %v785, %v2294
        %v2296 = vlaneseq
        %v2297 = vshrl.u32 %v2296, 7
        %v2298 = vsub.s32 5, %v2297
        %v2299 = vrot.slane %v2295, %v2298
        %v2300 = vmul.f32 %v711, %v2299
        %v2301 = vmul.f32 %v712, %v2299
        %v2302 = vmul.f32 %v713, %v2299
        %v2303 = vmul.f32 %v714, %v2299
        %v2304 = vmul.f32 %v715, %v2299
        %v2305 = vmul.f32 %v716, %v2299
        %v2306 = vmul.f32 %v717, %v2299
        %v2307 = vmul.f32 %v718, %v2299
        %v2308 = vmul.f32 %v719, %v2299
        %v2309 = vmul.f32 %v720, %v2299
        %v2310 = vmul.f32 %v721, %v2299
        %v2311 = vmul.f32 %v722, %v2299
        %v2312 = vmul.f32 %v723, %v2299
        %v2313 = vmul.f32 %v724, %v2299
        %v2314 = vmul.f32 %v725, %v2299
        %v2315 = vmul.f32 %v726, %v2299
        %2316 = vadd.xlane.f32.xlu0 %v2300
        %v2317 = vpop.xlane.xlu0 %2316
        %2318 = vadd.xlane.f32.xlu0 %v2301
        %v2319 = vpop.xlane.xlu0 %2318
        %2320 = vadd.xlane.f32.xlu0 %v2302
        %v2321 = vpop.xlane.xlu0 %2320
        %2322 = vadd.xlane.f32.xlu0 %v2303
        %v2323 = vpop.xlane.xlu0 %2322
        %2324 = vadd.xlane.f32.xlu0 %v2304
        %v2325 = vpop.xlane.xlu0 %2324
        %2326 = vadd.xlane.f32.xlu0 %v2305
        %v2327 = vpop.xlane.xlu0 %2326
        %2328 = vadd.xlane.f32.xlu0 %v2306
        %v2329 = vpop.xlane.xlu0 %2328
        %2330 = vadd.xlane.f32.xlu0 %v2307
        %v2331 = vpop.xlane.xlu0 %2330
        %2332 = vadd.xlane.f32.xlu0 %v2308
        %v2333 = vpop.xlane.xlu0 %2332
        %2334 = vadd.xlane.f32.xlu0 %v2309
        %v2335 = vpop.xlane.xlu0 %2334
        %2336 = vadd.xlane.f32.xlu0 %v2310
        %v2337 = vpop.xlane.xlu0 %2336
        %2338 = vadd.xlane.f32.xlu0 %v2311
        %v2339 = vpop.xlane.xlu0 %2338
        %2340 = vadd.xlane.f32.xlu0 %v2312
        %v2341 = vpop.xlane.xlu0 %2340
        %2342 = vadd.xlane.f32.xlu0 %v2313
        %v2343 = vpop.xlane.xlu0 %2342
        %2344 = vadd.xlane.f32.xlu0 %v2314
        %v2345 = vpop.xlane.xlu0 %2344
        %2346 = vadd.xlane.f32.xlu0 %v2315
        %v2347 = vpop.xlane.xlu0 %2346
        %v2348 = vlaneseq
        %v2349 = vshrl.u32 %v2348, 7
        %v2350 = vsub.s32 5, %v2349
        %v2351 = vrot.slane %v708, %v2350
        %v2352 = vmul.f32 %v2317, %v2351
        %v2353 = vmul.f32 %v2319, %v2351
        %v2354 = vmul.f32 %v2321, %v2351
        %v2355 = vmul.f32 %v2323, %v2351
        %v2356 = vmul.f32 %v2325, %v2351
        %v2357 = vmul.f32 %v2327, %v2351
        %v2358 = vmul.f32 %v2329, %v2351
        %v2359 = vmul.f32 %v2331, %v2351
        %v2360 = vmul.f32 %v2333, %v2351
        %v2361 = vmul.f32 %v2335, %v2351
        %v2362 = vmul.f32 %v2337, %v2351
        %v2363 = vmul.f32 %v2339, %v2351
        %v2364 = vmul.f32 %v2341, %v2351
        %v2365 = vmul.f32 %v2343, %v2351
        %v2366 = vmul.f32 %v2345, %v2351
        %v2367 = vmul.f32 %v2347, %v2351
        %v2368 = vadd.f32 %v2256, %v2352
        %v2369 = vadd.f32 %v2257, %v2353
        %v2370 = vadd.f32 %v2258, %v2354
        %v2371 = vadd.f32 %v2259, %v2355
        %v2372 = vadd.f32 %v2260, %v2356
        %v2373 = vadd.f32 %v2261, %v2357
        %v2374 = vadd.f32 %v2262, %v2358
        %v2375 = vadd.f32 %v2263, %v2359
        %v2376 = vadd.f32 %v2264, %v2360
        %v2377 = vadd.f32 %v2265, %v2361
        %v2378 = vadd.f32 %v2266, %v2362
        %v2379 = vadd.f32 %v2267, %v2363
        %v2380 = vadd.f32 %v2268, %v2364
        %v2381 = vadd.f32 %v2269, %v2365
        %v2382 = vadd.f32 %v2270, %v2366
        %v2383 = vadd.f32 %v2271, %v2367
        %s2384 = scalar_lea.vmem %s442, 640 [#allocation6]
        %2385 = vst [vmem:[%s2384] sm:$0xff] %v2368
        %2386 = vst [vmem:[%s2384 + $0x8] sm:$0xff] %v2369
        %2387 = vst [vmem:[%s2384 + $0x10] sm:$0xff] %v2370
        %2388 = vst [vmem:[%s2384 + $0x18] sm:$0xff] %v2371
        %2389 = vst [vmem:[%s2384 + $0x20] sm:$0xff] %v2372
        %2390 = vst [vmem:[%s2384 + $0x28] sm:$0xff] %v2373
        %2391 = vst [vmem:[%s2384 + $0x30] sm:$0xff] %v2374
        %2392 = vst [vmem:[%s2384 + $0x38] sm:$0xff] %v2375
        %2393 = vst [vmem:[%s2384 + $0x40] sm:$0xff] %v2376
        %2394 = vst [vmem:[%s2384 + $0x48] sm:$0xff] %v2377
        %2395 = vst [vmem:[%s2384 + $0x50] sm:$0xff] %v2378
        %2396 = vst [vmem:[%s2384 + $0x58] sm:$0xff] %v2379
        %2397 = vst [vmem:[%s2384 + $0x60] sm:$0xff] %v2380
        %2398 = vst [vmem:[%s2384 + $0x68] sm:$0xff] %v2381
        %2399 = vst [vmem:[%s2384 + $0x70] sm:$0xff] %v2382
        %2400 = vst [vmem:[%s2384 + $0x78] sm:$0xff] %v2383
        %2401 = vadd.xlane.f32.xlu0 %v2256
        %v2402 = vpop.xlane.xlu0 %2401
        %2403 = vadd.xlane.f32.xlu0 %v2257
        %v2404 = vpop.xlane.xlu0 %2403
        %2405 = vadd.xlane.f32.xlu0 %v2258
        %v2406 = vpop.xlane.xlu0 %2405
        %2407 = vadd.xlane.f32.xlu0 %v2259
        %v2408 = vpop.xlane.xlu0 %2407
        %2409 = vadd.xlane.f32.xlu0 %v2260
        %v2410 = vpop.xlane.xlu0 %2409
        %2411 = vadd.xlane.f32.xlu0 %v2261
        %v2412 = vpop.xlane.xlu0 %2411
        %2413 = vadd.xlane.f32.xlu0 %v2262
        %v2414 = vpop.xlane.xlu0 %2413
        %2415 = vadd.xlane.f32.xlu0 %v2263
        %v2416 = vpop.xlane.xlu0 %2415
        %2417 = vadd.xlane.f32.xlu0 %v2264
        %v2418 = vpop.xlane.xlu0 %2417
        %2419 = vadd.xlane.f32.xlu0 %v2265
        %v2420 = vpop.xlane.xlu0 %2419
        %2421 = vadd.xlane.f32.xlu0 %v2266
        %v2422 = vpop.xlane.xlu0 %2421
        %2423 = vadd.xlane.f32.xlu0 %v2267
        %v2424 = vpop.xlane.xlu0 %2423
        %2425 = vadd.xlane.f32.xlu0 %v2268
        %v2426 = vpop.xlane.xlu0 %2425
        %2427 = vadd.xlane.f32.xlu0 %v2269
        %v2428 = vpop.xlane.xlu0 %2427
        %2429 = vadd.xlane.f32.xlu0 %v2270
        %v2430 = vpop.xlane.xlu0 %2429
        %2431 = vadd.xlane.f32.xlu0 %v2271
        %v2432 = vpop.xlane.xlu0 %2431
        %v2433 = vlaneseq
        %v2434 = vshrl.u32 %v2433, 7
        %v2435 = vsub.s32 5, %v2434
        %v2436 = vrot.slane %v710, %v2435
        %v2437 = vmul.f32 %v2317, %v2436
        %v2438 = vmul.f32 %v2319, %v2436
        %v2439 = vmul.f32 %v2321, %v2436
        %v2440 = vmul.f32 %v2323, %v2436
        %v2441 = vmul.f32 %v2325, %v2436
        %v2442 = vmul.f32 %v2327, %v2436
        %v2443 = vmul.f32 %v2329, %v2436
        %v2444 = vmul.f32 %v2331, %v2436
        %v2445 = vmul.f32 %v2333, %v2436
        %v2446 = vmul.f32 %v2335, %v2436
        %v2447 = vmul.f32 %v2337, %v2436
        %v2448 = vmul.f32 %v2339, %v2436
        %v2449 = vmul.f32 %v2341, %v2436
        %v2450 = vmul.f32 %v2343, %v2436
        %v2451 = vmul.f32 %v2345, %v2436
        %v2452 = vmul.f32 %v2347, %v2436
        %v2453 = vadd.f32 %v2402, %v2437
        %v2454 = vadd.f32 %v2404, %v2438
        %v2455 = vadd.f32 %v2406, %v2439
        %v2456 = vadd.f32 %v2408, %v2440
        %v2457 = vadd.f32 %v2410, %v2441
        %v2458 = vadd.f32 %v2412, %v2442
        %v2459 = vadd.f32 %v2414, %v2443
        %v2460 = vadd.f32 %v2416, %v2444
        %v2461 = vadd.f32 %v2418, %v2445
        %v2462 = vadd.f32 %v2420, %v2446
        %v2463 = vadd.f32 %v2422, %v2447
        %v2464 = vadd.f32 %v2424, %v2448
        %v2465 = vadd.f32 %v2426, %v2449
        %v2466 = vadd.f32 %v2428, %v2450
        %v2467 = vadd.f32 %v2430, %v2451
        %v2468 = vadd.f32 %v2432, %v2452
        %v2469 = vmul.f32 %v2453, %v727
        %v2470 = vmul.f32 %v2454, %v728
        %v2471 = vmul.f32 %v2455, %v729
        %v2472 = vmul.f32 %v2456, %v730
        %v2473 = vmul.f32 %v2457, %v731
        %v2474 = vmul.f32 %v2458, %v732
        %v2475 = vmul.f32 %v2459, %v733
        %v2476 = vmul.f32 %v2460, %v734
        %v2477 = vmul.f32 %v2461, %v735
        %v2478 = vmul.f32 %v2462, %v736
        %v2479 = vmul.f32 %v2463, %v737
        %v2480 = vmul.f32 %v2464, %v738
        %v2481 = vmul.f32 %v2465, %v739
        %v2482 = vmul.f32 %v2466, %v740
        %v2483 = vmul.f32 %v2467, %v741
        %v2484 = vmul.f32 %v2468, %v742
        %v2485 = vrot.slane %v707, 5
        %2487 = vmatprep.subr.mxu0 0.0
        %2488 = vmatpush1.msra.mxu0 %v2484
        %2489 = vmatprep.subr.mxu0 0.0
        %2490 = vmatpush1.msra.mxu0 %v2483
        %2491 = vmatprep.subr.mxu0 0.0
        %2492 = vmatpush1.msra.mxu0 %v2482
        %2493 = vmatprep.subr.mxu0 0.0
        %2494 = vmatpush1.msra.mxu0 %v2481
        %2495 = vmatprep.subr.mxu0 0.0
        %2496 = vmatpush1.msra.mxu0 %v2480
        %2497 = vmatprep.subr.mxu0 0.0
        %2498 = vmatpush1.msra.mxu0 %v2479
        %2499 = vmatprep.subr.mxu0 0.0
        %2500 = vmatpush1.msra.mxu0 %v2478
        %2501 = vmatprep.subr.mxu0 0.0
        %2502 = vmatpush1.msra.mxu0 %v2477
        %2503 = vmatprep.subr.mxu0 0.0
        %2504 = vmatpush1.msra.mxu0 %v2476
        %2505 = vmatprep.subr.mxu0 0.0
        %2506 = vmatpush1.msra.mxu0 %v2475
        %2507 = vmatprep.subr.mxu0 0.0
        %2508 = vmatpush1.msra.mxu0 %v2474
        %2509 = vmatprep.subr.mxu0 0.0
        %2510 = vmatpush1.msra.mxu0 %v2473
        %2511 = vmatprep.subr.mxu0 0.0
        %2512 = vmatpush1.msra.mxu0 %v2472
        %2513 = vmatprep.subr.mxu0 0.0
        %2514 = vmatpush1.msra.mxu0 %v2471
        %2515 = vmatprep.subr.mxu0 0.0
        %2516 = vmatpush1.msra.mxu0 %v2470
        %2517 = vmatprep.subr.mxu0 0.0
        %2518 = vmatpush1.msra.mxu0 %v2469
        %2519 = vmatprep.subr.mxu0 0.0
        %2520 = vmatpush2.msra.mxu0 0.0
        %2521 = vmatprep.subr.mxu0 0.0
        %2522 = vmatpush2.msra.mxu0 0.0
        %2523 = vmatprep.subr.mxu0 0.0
        %2524 = vmatpush2.msra.mxu0 0.0
        %2525 = vmatprep.subr.mxu0 0.0
        %2526 = vmatpush2.msra.mxu0 0.0
        %2527 = vmatprep.subr.mxu0 0.0
        %2528 = vmatpush2.msra.mxu0 0.0
        %2529 = vmatprep.subr.mxu0 0.0
        %2530 = vmatpush2.msra.mxu0 0.0
        %2531 = vmatprep.subr.mxu0 0.0
        %2532 = vmatpush2.msra.mxu0 0.0
        %2533 = vmatprep.subr.mxu0 0.0
        %2534 = vmatpush2.msra.mxu0 0.0
        %2535 = vmatprep.subr.mxu0 0.0
        %2536 = vmatpush2.msra.mxu0 0.0
        %2537 = vmatprep.subr.mxu0 0.0
        %2538 = vmatpush2.msra.mxu0 0.0
        %2539 = vmatprep.subr.mxu0 0.0
        %2540 = vmatpush2.msra.mxu0 0.0
        %2541 = vmatprep.subr.mxu0 0.0
        %2542 = vmatpush2.msra.mxu0 0.0
        %2543 = vmatprep.subr.mxu0 0.0
        %2544 = vmatpush2.msra.mxu0 0.0
        %2545 = vmatprep.subr.mxu0 0.0
        %2546 = vmatpush2.msra.mxu0 0.0
        %2547 = vmatprep.subr.mxu0 0.0
        %2548 = vmatpush2.msra.mxu0 0.0
        %2549 = vmatprep.subr.mxu0 0.0
        %2550 = vmatpush2.msra.mxu0 0.0
        %2551 = vmatprep.mubr.f32.mxu0 0.0
        %2552 = vmatmul.mubr.f32.gmra.mxu0 %v2485
        %v2553 = vpop.f32.mrf.mxu0
        %v2554 = vadd.f32 0.0, %v2553
        %v2555 = vpop.f32.mrf.mxu0
        %2556 = vdwg.mxu0
        %s2557 = scalar_lea.vmem %s391, 768 [#allocation2]
        %v2558 = vld [vmem:[%s2557] sm:$0xff]
        %v2559 = vld [vmem:[%s2557 + $0x8] sm:$0xff]
        %v2560 = vld [vmem:[%s2557 + $0x10] sm:$0xff]
        %v2561 = vld [vmem:[%s2557 + $0x18] sm:$0xff]
        %v2562 = vld [vmem:[%s2557 + $0x20] sm:$0xff]
        %v2563 = vld [vmem:[%s2557 + $0x28] sm:$0xff]
        %v2564 = vld [vmem:[%s2557 + $0x30] sm:$0xff]
        %v2565 = vld [vmem:[%s2557 + $0x38] sm:$0xff]
        %v2566 = vld [vmem:[%s2557 + $0x40] sm:$0xff]
        %v2567 = vld [vmem:[%s2557 + $0x48] sm:$0xff]
        %v2568 = vld [vmem:[%s2557 + $0x50] sm:$0xff]
        %v2569 = vld [vmem:[%s2557 + $0x58] sm:$0xff]
        %v2570 = vld [vmem:[%s2557 + $0x60] sm:$0xff]
        %v2571 = vld [vmem:[%s2557 + $0x68] sm:$0xff]
        %v2572 = vld [vmem:[%s2557 + $0x70] sm:$0xff]
        %v2573 = vld [vmem:[%s2557 + $0x78] sm:$0xff]
        %v2574 = vadd.f32 %v2558, %v2559
        %v2575 = vadd.f32 %v2574, %v2560
        %v2576 = vadd.f32 %v2575, %v2561
        %v2577 = vadd.f32 %v2576, %v2562
        %v2578 = vadd.f32 %v2577, %v2563
        %v2579 = vadd.f32 %v2578, %v2564
        %v2580 = vadd.f32 %v2579, %v2565
        %v2581 = vadd.f32 %v2580, %v2566
        %v2582 = vadd.f32 %v2581, %v2567
        %v2583 = vadd.f32 %v2582, %v2568
        %v2584 = vadd.f32 %v2583, %v2569
        %v2585 = vadd.f32 %v2584, %v2570
        %v2586 = vadd.f32 %v2585, %v2571
        %v2587 = vadd.f32 %v2586, %v2572
        %v2588 = vadd.f32 %v2587, %v2573
        %v2589 = vrot.slane %v2588, 4
        %v2590 = vadd.f32 %v2588, %v2589
        %v2591 = vrot.slane %v2590, 2
        %v2592 = vadd.f32 %v2590, %v2591
        %v2593 = vrot.slane %v2592, 1
        %v2594 = vadd.f32 %v2592, %v2593
        %v2595 = vmul.f32 %v708, %v2594
        %v2596 = vsub.f32 %v546, %v2595
        %v2597 = vmul.f32 %v785, %v2596
        %v2598 = vlaneseq
        %v2599 = vshrl.u32 %v2598, 7
        %v2600 = vsub.s32 6, %v2599
        %v2601 = vrot.slane %v2597, %v2600
        %v2602 = vmul.f32 %v711, %v2601
        %v2603 = vmul.f32 %v712, %v2601
        %v2604 = vmul.f32 %v713, %v2601
        %v2605 = vmul.f32 %v714, %v2601
        %v2606 = vmul.f32 %v715, %v2601
        %v2607 = vmul.f32 %v716, %v2601
        %v2608 = vmul.f32 %v717, %v2601
        %v2609 = vmul.f32 %v718, %v2601
        %v2610 = vmul.f32 %v719, %v2601
        %v2611 = vmul.f32 %v720, %v2601
        %v2612 = vmul.f32 %v721, %v2601
        %v2613 = vmul.f32 %v722, %v2601
        %v2614 = vmul.f32 %v723, %v2601
        %v2615 = vmul.f32 %v724, %v2601
        %v2616 = vmul.f32 %v725, %v2601
        %v2617 = vmul.f32 %v726, %v2601
        %2618 = vadd.xlane.f32.xlu0 %v2602
        %v2619 = vpop.xlane.xlu0 %2618
        %2620 = vadd.xlane.f32.xlu0 %v2603
        %v2621 = vpop.xlane.xlu0 %2620
        %2622 = vadd.xlane.f32.xlu0 %v2604
        %v2623 = vpop.xlane.xlu0 %2622
        %2624 = vadd.xlane.f32.xlu0 %v2605
        %v2625 = vpop.xlane.xlu0 %2624
        %2626 = vadd.xlane.f32.xlu0 %v2606
        %v2627 = vpop.xlane.xlu0 %2626
        %2628 = vadd.xlane.f32.xlu0 %v2607
        %v2629 = vpop.xlane.xlu0 %2628
        %2630 = vadd.xlane.f32.xlu0 %v2608
        %v2631 = vpop.xlane.xlu0 %2630
        %2632 = vadd.xlane.f32.xlu0 %v2609
        %v2633 = vpop.xlane.xlu0 %2632
        %2634 = vadd.xlane.f32.xlu0 %v2610
        %v2635 = vpop.xlane.xlu0 %2634
        %2636 = vadd.xlane.f32.xlu0 %v2611
        %v2637 = vpop.xlane.xlu0 %2636
        %2638 = vadd.xlane.f32.xlu0 %v2612
        %v2639 = vpop.xlane.xlu0 %2638
        %2640 = vadd.xlane.f32.xlu0 %v2613
        %v2641 = vpop.xlane.xlu0 %2640
        %2642 = vadd.xlane.f32.xlu0 %v2614
        %v2643 = vpop.xlane.xlu0 %2642
        %2644 = vadd.xlane.f32.xlu0 %v2615
        %v2645 = vpop.xlane.xlu0 %2644
        %2646 = vadd.xlane.f32.xlu0 %v2616
        %v2647 = vpop.xlane.xlu0 %2646
        %2648 = vadd.xlane.f32.xlu0 %v2617
        %v2649 = vpop.xlane.xlu0 %2648
        %v2650 = vlaneseq
        %v2651 = vshrl.u32 %v2650, 7
        %v2652 = vsub.s32 6, %v2651
        %v2653 = vrot.slane %v708, %v2652
        %v2654 = vmul.f32 %v2619, %v2653
        %v2655 = vmul.f32 %v2621, %v2653
        %v2656 = vmul.f32 %v2623, %v2653
        %v2657 = vmul.f32 %v2625, %v2653
        %v2658 = vmul.f32 %v2627, %v2653
        %v2659 = vmul.f32 %v2629, %v2653
        %v2660 = vmul.f32 %v2631, %v2653
        %v2661 = vmul.f32 %v2633, %v2653
        %v2662 = vmul.f32 %v2635, %v2653
        %v2663 = vmul.f32 %v2637, %v2653
        %v2664 = vmul.f32 %v2639, %v2653
        %v2665 = vmul.f32 %v2641, %v2653
        %v2666 = vmul.f32 %v2643, %v2653
        %v2667 = vmul.f32 %v2645, %v2653
        %v2668 = vmul.f32 %v2647, %v2653
        %v2669 = vmul.f32 %v2649, %v2653
        %v2670 = vadd.f32 %v2558, %v2654
        %v2671 = vadd.f32 %v2559, %v2655
        %v2672 = vadd.f32 %v2560, %v2656
        %v2673 = vadd.f32 %v2561, %v2657
        %v2674 = vadd.f32 %v2562, %v2658
        %v2675 = vadd.f32 %v2563, %v2659
        %v2676 = vadd.f32 %v2564, %v2660
        %v2677 = vadd.f32 %v2565, %v2661
        %v2678 = vadd.f32 %v2566, %v2662
        %v2679 = vadd.f32 %v2567, %v2663
        %v2680 = vadd.f32 %v2568, %v2664
        %v2681 = vadd.f32 %v2569, %v2665
        %v2682 = vadd.f32 %v2570, %v2666
        %v2683 = vadd.f32 %v2571, %v2667
        %v2684 = vadd.f32 %v2572, %v2668
        %v2685 = vadd.f32 %v2573, %v2669
        %s2686 = scalar_lea.vmem %s442, 768 [#allocation6]
        %2687 = vst [vmem:[%s2686] sm:$0xff] %v2670
        %2688 = vst [vmem:[%s2686 + $0x8] sm:$0xff] %v2671
        %2689 = vst [vmem:[%s2686 + $0x10] sm:$0xff] %v2672
        %2690 = vst [vmem:[%s2686 + $0x18] sm:$0xff] %v2673
        %2691 = vst [vmem:[%s2686 + $0x20] sm:$0xff] %v2674
        %2692 = vst [vmem:[%s2686 + $0x28] sm:$0xff] %v2675
        %2693 = vst [vmem:[%s2686 + $0x30] sm:$0xff] %v2676
        %2694 = vst [vmem:[%s2686 + $0x38] sm:$0xff] %v2677
        %2695 = vst [vmem:[%s2686 + $0x40] sm:$0xff] %v2678
        %2696 = vst [vmem:[%s2686 + $0x48] sm:$0xff] %v2679
        %2697 = vst [vmem:[%s2686 + $0x50] sm:$0xff] %v2680
        %2698 = vst [vmem:[%s2686 + $0x58] sm:$0xff] %v2681
        %2699 = vst [vmem:[%s2686 + $0x60] sm:$0xff] %v2682
        %2700 = vst [vmem:[%s2686 + $0x68] sm:$0xff] %v2683
        %2701 = vst [vmem:[%s2686 + $0x70] sm:$0xff] %v2684
        %2702 = vst [vmem:[%s2686 + $0x78] sm:$0xff] %v2685
        %2703 = vadd.xlane.f32.xlu0 %v2558
        %v2704 = vpop.xlane.xlu0 %2703
        %2705 = vadd.xlane.f32.xlu0 %v2559
        %v2706 = vpop.xlane.xlu0 %2705
        %2707 = vadd.xlane.f32.xlu0 %v2560
        %v2708 = vpop.xlane.xlu0 %2707
        %2709 = vadd.xlane.f32.xlu0 %v2561
        %v2710 = vpop.xlane.xlu0 %2709
        %2711 = vadd.xlane.f32.xlu0 %v2562
        %v2712 = vpop.xlane.xlu0 %2711
        %2713 = vadd.xlane.f32.xlu0 %v2563
        %v2714 = vpop.xlane.xlu0 %2713
        %2715 = vadd.xlane.f32.xlu0 %v2564
        %v2716 = vpop.xlane.xlu0 %2715
        %2717 = vadd.xlane.f32.xlu0 %v2565
        %v2718 = vpop.xlane.xlu0 %2717
        %2719 = vadd.xlane.f32.xlu0 %v2566
        %v2720 = vpop.xlane.xlu0 %2719
        %2721 = vadd.xlane.f32.xlu0 %v2567
        %v2722 = vpop.xlane.xlu0 %2721
        %2723 = vadd.xlane.f32.xlu0 %v2568
        %v2724 = vpop.xlane.xlu0 %2723
        %2725 = vadd.xlane.f32.xlu0 %v2569
        %v2726 = vpop.xlane.xlu0 %2725
        %2727 = vadd.xlane.f32.xlu0 %v2570
        %v2728 = vpop.xlane.xlu0 %2727
        %2729 = vadd.xlane.f32.xlu0 %v2571
        %v2730 = vpop.xlane.xlu0 %2729
        %2731 = vadd.xlane.f32.xlu0 %v2572
        %v2732 = vpop.xlane.xlu0 %2731
        %2733 = vadd.xlane.f32.xlu0 %v2573
        %v2734 = vpop.xlane.xlu0 %2733
        %v2735 = vlaneseq
        %v2736 = vshrl.u32 %v2735, 7
        %v2737 = vsub.s32 6, %v2736
        %v2738 = vrot.slane %v710, %v2737
        %v2739 = vmul.f32 %v2619, %v2738
        %v2740 = vmul.f32 %v2621, %v2738
        %v2741 = vmul.f32 %v2623, %v2738
        %v2742 = vmul.f32 %v2625, %v2738
        %v2743 = vmul.f32 %v2627, %v2738
        %v2744 = vmul.f32 %v2629, %v2738
        %v2745 = vmul.f32 %v2631, %v2738
        %v2746 = vmul.f32 %v2633, %v2738
        %v2747 = vmul.f32 %v2635, %v2738
        %v2748 = vmul.f32 %v2637, %v2738
        %v2749 = vmul.f32 %v2639, %v2738
        %v2750 = vmul.f32 %v2641, %v2738
        %v2751 = vmul.f32 %v2643, %v2738
        %v2752 = vmul.f32 %v2645, %v2738
        %v2753 = vmul.f32 %v2647, %v2738
        %v2754 = vmul.f32 %v2649, %v2738
        %v2755 = vadd.f32 %v2704, %v2739
        %v2756 = vadd.f32 %v2706, %v2740
        %v2757 = vadd.f32 %v2708, %v2741
        %v2758 = vadd.f32 %v2710, %v2742
        %v2759 = vadd.f32 %v2712, %v2743
        %v2760 = vadd.f32 %v2714, %v2744
        %v2761 = vadd.f32 %v2716, %v2745
        %v2762 = vadd.f32 %v2718, %v2746
        %v2763 = vadd.f32 %v2720, %v2747
        %v2764 = vadd.f32 %v2722, %v2748
        %v2765 = vadd.f32 %v2724, %v2749
        %v2766 = vadd.f32 %v2726, %v2750
        %v2767 = vadd.f32 %v2728, %v2751
        %v2768 = vadd.f32 %v2730, %v2752
        %v2769 = vadd.f32 %v2732, %v2753
        %v2770 = vadd.f32 %v2734, %v2754
        %v2771 = vmul.f32 %v2755, %v727
        %v2772 = vmul.f32 %v2756, %v728
        %v2773 = vmul.f32 %v2757, %v729
        %v2774 = vmul.f32 %v2758, %v730
        %v2775 = vmul.f32 %v2759, %v731
        %v2776 = vmul.f32 %v2760, %v732
        %v2777 = vmul.f32 %v2761, %v733
        %v2778 = vmul.f32 %v2762, %v734
        %v2779 = vmul.f32 %v2763, %v735
        %v2780 = vmul.f32 %v2764, %v736
        %v2781 = vmul.f32 %v2765, %v737
        %v2782 = vmul.f32 %v2766, %v738
        %v2783 = vmul.f32 %v2767, %v739
        %v2784 = vmul.f32 %v2768, %v740
        %v2785 = vmul.f32 %v2769, %v741
        %v2786 = vmul.f32 %v2770, %v742
        %v2787 = vrot.slane %v707, 6
        %2789 = vmatprep.subr.mxu0 0.0
        %2790 = vmatpush1.msra.mxu0 %v2786
        %2791 = vmatprep.subr.mxu0 0.0
        %2792 = vmatpush1.msra.mxu0 %v2785
        %2793 = vmatprep.subr.mxu0 0.0
        %2794 = vmatpush1.msra.mxu0 %v2784
        %2795 = vmatprep.subr.mxu0 0.0
        %2796 = vmatpush1.msra.mxu0 %v2783
        %2797 = vmatprep.subr.mxu0 0.0
        %2798 = vmatpush1.msra.mxu0 %v2782
        %2799 = vmatprep.subr.mxu0 0.0
        %2800 = vmatpush1.msra.mxu0 %v2781
        %2801 = vmatprep.subr.mxu0 0.0
        %2802 = vmatpush1.msra.mxu0 %v2780
        %2803 = vmatprep.subr.mxu0 0.0
        %2804 = vmatpush1.msra.mxu0 %v2779
        %2805 = vmatprep.subr.mxu0 0.0
        %2806 = vmatpush1.msra.mxu0 %v2778
        %2807 = vmatprep.subr.mxu0 0.0
        %2808 = vmatpush1.msra.mxu0 %v2777
        %2809 = vmatprep.subr.mxu0 0.0
        %2810 = vmatpush1.msra.mxu0 %v2776
        %2811 = vmatprep.subr.mxu0 0.0
        %2812 = vmatpush1.msra.mxu0 %v2775
        %2813 = vmatprep.subr.mxu0 0.0
        %2814 = vmatpush1.msra.mxu0 %v2774
        %2815 = vmatprep.subr.mxu0 0.0
        %2816 = vmatpush1.msra.mxu0 %v2773
        %2817 = vmatprep.subr.mxu0 0.0
        %2818 = vmatpush1.msra.mxu0 %v2772
        %2819 = vmatprep.subr.mxu0 0.0
        %2820 = vmatpush1.msra.mxu0 %v2771
        %2821 = vmatprep.subr.mxu0 0.0
        %2822 = vmatpush2.msra.mxu0 0.0
        %2823 = vmatprep.subr.mxu0 0.0
        %2824 = vmatpush2.msra.mxu0 0.0
        %2825 = vmatprep.subr.mxu0 0.0
        %2826 = vmatpush2.msra.mxu0 0.0
        %2827 = vmatprep.subr.mxu0 0.0
        %2828 = vmatpush2.msra.mxu0 0.0
        %2829 = vmatprep.subr.mxu0 0.0
        %2830 = vmatpush2.msra.mxu0 0.0
        %2831 = vmatprep.subr.mxu0 0.0
        %2832 = vmatpush2.msra.mxu0 0.0
        %2833 = vmatprep.subr.mxu0 0.0
        %2834 = vmatpush2.msra.mxu0 0.0
        %2835 = vmatprep.subr.mxu0 0.0
        %2836 = vmatpush2.msra.mxu0 0.0
        %2837 = vmatprep.subr.mxu0 0.0
        %2838 = vmatpush2.msra.mxu0 0.0
        %2839 = vmatprep.subr.mxu0 0.0
        %2840 = vmatpush2.msra.mxu0 0.0
        %2841 = vmatprep.subr.mxu0 0.0
        %2842 = vmatpush2.msra.mxu0 0.0
        %2843 = vmatprep.subr.mxu0 0.0
        %2844 = vmatpush2.msra.mxu0 0.0
        %2845 = vmatprep.subr.mxu0 0.0
        %2846 = vmatpush2.msra.mxu0 0.0
        %2847 = vmatprep.subr.mxu0 0.0
        %2848 = vmatpush2.msra.mxu0 0.0
        %2849 = vmatprep.subr.mxu0 0.0
        %2850 = vmatpush2.msra.mxu0 0.0
        %2851 = vmatprep.subr.mxu0 0.0
        %2852 = vmatpush2.msra.mxu0 0.0
        %2853 = vmatprep.mubr.f32.mxu0 0.0
        %2854 = vmatmul.mubr.f32.gmra.mxu0 %v2787
        %v2855 = vpop.f32.mrf.mxu0
        %v2856 = vadd.f32 0.0, %v2855
        %v2857 = vpop.f32.mrf.mxu0
        %2858 = vdwg.mxu0
        %s2859 = scalar_lea.vmem %s391, 896 [#allocation2]
        %v2860 = vld [vmem:[%s2859] sm:$0xff]
        %v2861 = vld [vmem:[%s2859 + $0x8] sm:$0xff]
        %v2862 = vld [vmem:[%s2859 + $0x10] sm:$0xff]
        %v2863 = vld [vmem:[%s2859 + $0x18] sm:$0xff]
        %v2864 = vld [vmem:[%s2859 + $0x20] sm:$0xff]
        %v2865 = vld [vmem:[%s2859 + $0x28] sm:$0xff]
        %v2866 = vld [vmem:[%s2859 + $0x30] sm:$0xff]
        %v2867 = vld [vmem:[%s2859 + $0x38] sm:$0xff]
        %v2868 = vld [vmem:[%s2859 + $0x40] sm:$0xff]
        %v2869 = vld [vmem:[%s2859 + $0x48] sm:$0xff]
        %v2870 = vld [vmem:[%s2859 + $0x50] sm:$0xff]
        %v2871 = vld [vmem:[%s2859 + $0x58] sm:$0xff]
        %v2872 = vld [vmem:[%s2859 + $0x60] sm:$0xff]
        %v2873 = vld [vmem:[%s2859 + $0x68] sm:$0xff]
        %v2874 = vld [vmem:[%s2859 + $0x70] sm:$0xff]
        %v2875 = vld [vmem:[%s2859 + $0x78] sm:$0xff]
        %v2876 = vadd.f32 %v2860, %v2861
        %v2877 = vadd.f32 %v2876, %v2862
        %v2878 = vadd.f32 %v2877, %v2863
        %v2879 = vadd.f32 %v2878, %v2864
        %v2880 = vadd.f32 %v2879, %v2865
        %v2881 = vadd.f32 %v2880, %v2866
        %v2882 = vadd.f32 %v2881, %v2867
        %v2883 = vadd.f32 %v2882, %v2868
        %v2884 = vadd.f32 %v2883, %v2869
        %v2885 = vadd.f32 %v2884, %v2870
        %v2886 = vadd.f32 %v2885, %v2871
        %v2887 = vadd.f32 %v2886, %v2872
        %v2888 = vadd.f32 %v2887, %v2873
        %v2889 = vadd.f32 %v2888, %v2874
        %v2890 = vadd.f32 %v2889, %v2875
        %v2891 = vrot.slane %v2890, 4
        %v2892 = vadd.f32 %v2890, %v2891
        %v2893 = vrot.slane %v2892, 2
        %v2894 = vadd.f32 %v2892, %v2893
        %v2895 = vrot.slane %v2894, 1
        %v2896 = vadd.f32 %v2894, %v2895
        %v2897 = vmul.f32 %v708, %v2896
        %v2898 = vsub.f32 %v546, %v2897
        %v2899 = vmul.f32 %v785, %v2898
        %v2900 = vlaneseq
        %v2901 = vshrl.u32 %v2900, 7
        %v2902 = vsub.s32 7, %v2901
        %v2903 = vrot.slane %v2899, %v2902
        %v2904 = vmul.f32 %v711, %v2903
        %v2905 = vmul.f32 %v712, %v2903
        %v2906 = vmul.f32 %v713, %v2903
        %v2907 = vmul.f32 %v714, %v2903
        %v2908 = vmul.f32 %v715, %v2903
        %v2909 = vmul.f32 %v716, %v2903
        %v2910 = vmul.f32 %v717, %v2903
        %v2911 = vmul.f32 %v718, %v2903
        %v2912 = vmul.f32 %v719, %v2903
        %v2913 = vmul.f32 %v720, %v2903
        %v2914 = vmul.f32 %v721, %v2903
        %v2915 = vmul.f32 %v722, %v2903
        %v2916 = vmul.f32 %v723, %v2903
        %v2917 = vmul.f32 %v724, %v2903
        %v2918 = vmul.f32 %v725, %v2903
        %v2919 = vmul.f32 %v726, %v2903
        %2920 = vadd.xlane.f32.xlu0 %v2904
        %v2921 = vpop.xlane.xlu0 %2920
        %2922 = vadd.xlane.f32.xlu0 %v2905
        %v2923 = vpop.xlane.xlu0 %2922
        %2924 = vadd.xlane.f32.xlu0 %v2906
        %v2925 = vpop.xlane.xlu0 %2924
        %2926 = vadd.xlane.f32.xlu0 %v2907
        %v2927 = vpop.xlane.xlu0 %2926
        %2928 = vadd.xlane.f32.xlu0 %v2908
        %v2929 = vpop.xlane.xlu0 %2928
        %2930 = vadd.xlane.f32.xlu0 %v2909
        %v2931 = vpop.xlane.xlu0 %2930
        %2932 = vadd.xlane.f32.xlu0 %v2910
        %v2933 = vpop.xlane.xlu0 %2932
        %2934 = vadd.xlane.f32.xlu0 %v2911
        %v2935 = vpop.xlane.xlu0 %2934
        %2936 = vadd.xlane.f32.xlu0 %v2912
        %v2937 = vpop.xlane.xlu0 %2936
        %2938 = vadd.xlane.f32.xlu0 %v2913
        %v2939 = vpop.xlane.xlu0 %2938
        %2940 = vadd.xlane.f32.xlu0 %v2914
        %v2941 = vpop.xlane.xlu0 %2940
        %2942 = vadd.xlane.f32.xlu0 %v2915
        %v2943 = vpop.xlane.xlu0 %2942
        %2944 = vadd.xlane.f32.xlu0 %v2916
        %v2945 = vpop.xlane.xlu0 %2944
        %2946 = vadd.xlane.f32.xlu0 %v2917
        %v2947 = vpop.xlane.xlu0 %2946
        %2948 = vadd.xlane.f32.xlu0 %v2918
        %v2949 = vpop.xlane.xlu0 %2948
        %2950 = vadd.xlane.f32.xlu0 %v2919
        %v2951 = vpop.xlane.xlu0 %2950
        %v2952 = vlaneseq
        %v2953 = vshrl.u32 %v2952, 7
        %v2954 = vsub.s32 7, %v2953
        %v2955 = vrot.slane %v708, %v2954
        %v2956 = vmul.f32 %v2921, %v2955
        %v2957 = vmul.f32 %v2923, %v2955
        %v2958 = vmul.f32 %v2925, %v2955
        %v2959 = vmul.f32 %v2927, %v2955
        %v2960 = vmul.f32 %v2929, %v2955
        %v2961 = vmul.f32 %v2931, %v2955
        %v2962 = vmul.f32 %v2933, %v2955
        %v2963 = vmul.f32 %v2935, %v2955
        %v2964 = vmul.f32 %v2937, %v2955
        %v2965 = vmul.f32 %v2939, %v2955
        %v2966 = vmul.f32 %v2941, %v2955
        %v2967 = vmul.f32 %v2943, %v2955
        %v2968 = vmul.f32 %v2945, %v2955
        %v2969 = vmul.f32 %v2947, %v2955
        %v2970 = vmul.f32 %v2949, %v2955
        %v2971 = vmul.f32 %v2951, %v2955
        %v2972 = vadd.f32 %v2860, %v2956
        %v2973 = vadd.f32 %v2861, %v2957
        %v2974 = vadd.f32 %v2862, %v2958
        %v2975 = vadd.f32 %v2863, %v2959
        %v2976 = vadd.f32 %v2864, %v2960
        %v2977 = vadd.f32 %v2865, %v2961
        %v2978 = vadd.f32 %v2866, %v2962
        %v2979 = vadd.f32 %v2867, %v2963
        %v2980 = vadd.f32 %v2868, %v2964
        %v2981 = vadd.f32 %v2869, %v2965
        %v2982 = vadd.f32 %v2870, %v2966
        %v2983 = vadd.f32 %v2871, %v2967
        %v2984 = vadd.f32 %v2872, %v2968
        %v2985 = vadd.f32 %v2873, %v2969
        %v2986 = vadd.f32 %v2874, %v2970
        %v2987 = vadd.f32 %v2875, %v2971
        %s2988 = scalar_lea.vmem %s442, 896 [#allocation6]
        %2989 = vst [vmem:[%s2988] sm:$0xff] %v2972
        %2990 = vst [vmem:[%s2988 + $0x8] sm:$0xff] %v2973
        %2991 = vst [vmem:[%s2988 + $0x10] sm:$0xff] %v2974
        %2992 = vst [vmem:[%s2988 + $0x18] sm:$0xff] %v2975
        %2993 = vst [vmem:[%s2988 + $0x20] sm:$0xff] %v2976
        %2994 = vst [vmem:[%s2988 + $0x28] sm:$0xff] %v2977
        %2995 = vst [vmem:[%s2988 + $0x30] sm:$0xff] %v2978
        %2996 = vst [vmem:[%s2988 + $0x38] sm:$0xff] %v2979
        %2997 = vst [vmem:[%s2988 + $0x40] sm:$0xff] %v2980
        %2998 = vst [vmem:[%s2988 + $0x48] sm:$0xff] %v2981
        %2999 = vst [vmem:[%s2988 + $0x50] sm:$0xff] %v2982
        %3000 = vst [vmem:[%s2988 + $0x58] sm:$0xff] %v2983
        %3001 = vst [vmem:[%s2988 + $0x60] sm:$0xff] %v2984
        %3002 = vst [vmem:[%s2988 + $0x68] sm:$0xff] %v2985
        %3003 = vst [vmem:[%s2988 + $0x70] sm:$0xff] %v2986
        %3004 = vst [vmem:[%s2988 + $0x78] sm:$0xff] %v2987
        %3005 = vadd.xlane.f32.xlu0 %v2860
        %v3006 = vpop.xlane.xlu0 %3005
        %3007 = vadd.xlane.f32.xlu0 %v2861
        %v3008 = vpop.xlane.xlu0 %3007
        %3009 = vadd.xlane.f32.xlu0 %v2862
        %v3010 = vpop.xlane.xlu0 %3009
        %3011 = vadd.xlane.f32.xlu0 %v2863
        %v3012 = vpop.xlane.xlu0 %3011
        %3013 = vadd.xlane.f32.xlu0 %v2864
        %v3014 = vpop.xlane.xlu0 %3013
        %3015 = vadd.xlane.f32.xlu0 %v2865
        %v3016 = vpop.xlane.xlu0 %3015
        %3017 = vadd.xlane.f32.xlu0 %v2866
        %v3018 = vpop.xlane.xlu0 %3017
        %3019 = vadd.xlane.f32.xlu0 %v2867
        %v3020 = vpop.xlane.xlu0 %3019
        %3021 = vadd.xlane.f32.xlu0 %v2868
        %v3022 = vpop.xlane.xlu0 %3021
        %3023 = vadd.xlane.f32.xlu0 %v2869
        %v3024 = vpop.xlane.xlu0 %3023
        %3025 = vadd.xlane.f32.xlu0 %v2870
        %v3026 = vpop.xlane.xlu0 %3025
        %3027 = vadd.xlane.f32.xlu0 %v2871
        %v3028 = vpop.xlane.xlu0 %3027
        %3029 = vadd.xlane.f32.xlu0 %v2872
        %v3030 = vpop.xlane.xlu0 %3029
        %3031 = vadd.xlane.f32.xlu0 %v2873
        %v3032 = vpop.xlane.xlu0 %3031
        %3033 = vadd.xlane.f32.xlu0 %v2874
        %v3034 = vpop.xlane.xlu0 %3033
        %3035 = vadd.xlane.f32.xlu0 %v2875
        %v3036 = vpop.xlane.xlu0 %3035
        %v3037 = vlaneseq
        %v3038 = vshrl.u32 %v3037, 7
        %v3039 = vsub.s32 7, %v3038
        %v3040 = vrot.slane %v710, %v3039
        %v3041 = vmul.f32 %v2921, %v3040
        %v3042 = vmul.f32 %v2923, %v3040
        %v3043 = vmul.f32 %v2925, %v3040
        %v3044 = vmul.f32 %v2927, %v3040
        %v3045 = vmul.f32 %v2929, %v3040
        %v3046 = vmul.f32 %v2931, %v3040
        %v3047 = vmul.f32 %v2933, %v3040
        %v3048 = vmul.f32 %v2935, %v3040
        %v3049 = vmul.f32 %v2937, %v3040
        %v3050 = vmul.f32 %v2939, %v3040
        %v3051 = vmul.f32 %v2941, %v3040
        %v3052 = vmul.f32 %v2943, %v3040
        %v3053 = vmul.f32 %v2945, %v3040
        %v3054 = vmul.f32 %v2947, %v3040
        %v3055 = vmul.f32 %v2949, %v3040
        %v3056 = vmul.f32 %v2951, %v3040
        %v3057 = vadd.f32 %v3006, %v3041
        %v3058 = vadd.f32 %v3008, %v3042
        %v3059 = vadd.f32 %v3010, %v3043
        %v3060 = vadd.f32 %v3012, %v3044
        %v3061 = vadd.f32 %v3014, %v3045
        %v3062 = vadd.f32 %v3016, %v3046
        %v3063 = vadd.f32 %v3018, %v3047
        %v3064 = vadd.f32 %v3020, %v3048
        %v3065 = vadd.f32 %v3022, %v3049
        %v3066 = vadd.f32 %v3024, %v3050
        %v3067 = vadd.f32 %v3026, %v3051
        %v3068 = vadd.f32 %v3028, %v3052
        %v3069 = vadd.f32 %v3030, %v3053
        %v3070 = vadd.f32 %v3032, %v3054
        %v3071 = vadd.f32 %v3034, %v3055
        %v3072 = vadd.f32 %v3036, %v3056
        %v3073 = vmul.f32 %v3057, %v727
        %v3074 = vmul.f32 %v3058, %v728
        %v3075 = vmul.f32 %v3059, %v729
        %v3076 = vmul.f32 %v3060, %v730
        %v3077 = vmul.f32 %v3061, %v731
        %v3078 = vmul.f32 %v3062, %v732
        %v3079 = vmul.f32 %v3063, %v733
        %v3080 = vmul.f32 %v3064, %v734
        %v3081 = vmul.f32 %v3065, %v735
        %v3082 = vmul.f32 %v3066, %v736
        %v3083 = vmul.f32 %v3067, %v737
        %v3084 = vmul.f32 %v3068, %v738
        %v3085 = vmul.f32 %v3069, %v739
        %v3086 = vmul.f32 %v3070, %v740
        %v3087 = vmul.f32 %v3071, %v741
        %v3088 = vmul.f32 %v3072, %v742
        %v3089 = vrot.slane %v707, 7
        %3091 = vmatprep.subr.mxu0 0.0
        %3092 = vmatpush1.msra.mxu0 %v3088
        %3093 = vmatprep.subr.mxu0 0.0
        %3094 = vmatpush1.msra.mxu0 %v3087
        %3095 = vmatprep.subr.mxu0 0.0
        %3096 = vmatpush1.msra.mxu0 %v3086
        %3097 = vmatprep.subr.mxu0 0.0
        %3098 = vmatpush1.msra.mxu0 %v3085
        %3099 = vmatprep.subr.mxu0 0.0
        %3100 = vmatpush1.msra.mxu0 %v3084
        %3101 = vmatprep.subr.mxu0 0.0
        %3102 = vmatpush1.msra.mxu0 %v3083
        %3103 = vmatprep.subr.mxu0 0.0
        %3104 = vmatpush1.msra.mxu0 %v3082
        %3105 = vmatprep.subr.mxu0 0.0
        %3106 = vmatpush1.msra.mxu0 %v3081
        %3107 = vmatprep.subr.mxu0 0.0
        %3108 = vmatpush1.msra.mxu0 %v3080
        %3109 = vmatprep.subr.mxu0 0.0
        %3110 = vmatpush1.msra.mxu0 %v3079
        %3111 = vmatprep.subr.mxu0 0.0
        %3112 = vmatpush1.msra.mxu0 %v3078
        %3113 = vmatprep.subr.mxu0 0.0
        %3114 = vmatpush1.msra.mxu0 %v3077
        %3115 = vmatprep.subr.mxu0 0.0
        %3116 = vmatpush1.msra.mxu0 %v3076
        %3117 = vmatprep.subr.mxu0 0.0
        %3118 = vmatpush1.msra.mxu0 %v3075
        %3119 = vmatprep.subr.mxu0 0.0
        %3120 = vmatpush1.msra.mxu0 %v3074
        %3121 = vmatprep.subr.mxu0 0.0
        %3122 = vmatpush1.msra.mxu0 %v3073
        %3123 = vmatprep.subr.mxu0 0.0
        %3124 = vmatpush2.msra.mxu0 0.0
        %3125 = vmatprep.subr.mxu0 0.0
        %3126 = vmatpush2.msra.mxu0 0.0
        %3127 = vmatprep.subr.mxu0 0.0
        %3128 = vmatpush2.msra.mxu0 0.0
        %3129 = vmatprep.subr.mxu0 0.0
        %3130 = vmatpush2.msra.mxu0 0.0
        %3131 = vmatprep.subr.mxu0 0.0
        %3132 = vmatpush2.msra.mxu0 0.0
        %3133 = vmatprep.subr.mxu0 0.0
        %3134 = vmatpush2.msra.mxu0 0.0
        %3135 = vmatprep.subr.mxu0 0.0
        %3136 = vmatpush2.msra.mxu0 0.0
        %3137 = vmatprep.subr.mxu0 0.0
        %3138 = vmatpush2.msra.mxu0 0.0
        %3139 = vmatprep.subr.mxu0 0.0
        %3140 = vmatpush2.msra.mxu0 0.0
        %3141 = vmatprep.subr.mxu0 0.0
        %3142 = vmatpush2.msra.mxu0 0.0
        %3143 = vmatprep.subr.mxu0 0.0
        %3144 = vmatpush2.msra.mxu0 0.0
        %3145 = vmatprep.subr.mxu0 0.0
        %3146 = vmatpush2.msra.mxu0 0.0
        %3147 = vmatprep.subr.mxu0 0.0
        %3148 = vmatpush2.msra.mxu0 0.0
        %3149 = vmatprep.subr.mxu0 0.0
        %3150 = vmatpush2.msra.mxu0 0.0
        %3151 = vmatprep.subr.mxu0 0.0
        %3152 = vmatpush2.msra.mxu0 0.0
        %3153 = vmatprep.subr.mxu0 0.0
        %3154 = vmatpush2.msra.mxu0 0.0
        %3155 = vmatprep.mubr.f32.mxu0 0.0
        %3156 = vmatmul.mubr.f32.gmra.mxu0 %v3089
        %v3157 = vpop.f32.mrf.mxu0
        %v3158 = vadd.f32 0.0, %v3157
        %v3159 = vpop.f32.mrf.mxu0
        %3160 = vdwg.mxu0
        %v3162 = vrot.slane %v1346, 7
        %v3165 = vrot.slane %v1648, 6
        %v3168 = vrot.slane %v1950, 5
        %v3171 = vrot.slane %v2252, 4
        %v3174 = vrot.slane %v2554, 3
        %v3177 = vrot.slane %v2856, 2
        %v3180 = vrot.slane %v3158, 1
        %vm3182 = vcmask 1040384
        %v3183 = vsel %vm3182, %v1043, %v3162
        %vm3184 = vcmask 1041408
        %v3185 = vsel %vm3184, %v3183, %v3165
        %vm3186 = vcmask 1042432
        %v3187 = vsel %vm3186, %v3185, %v3168
        %vm3188 = vcmask 1043456
        %v3189 = vsel %vm3188, %v3187, %v3171
        %vm3190 = vcmask 1044480
        %v3191 = vsel %vm3190, %v3189, %v3174
        %vm3192 = vcmask 1045504
        %v3193 = vsel %vm3192, %v3191, %v3177
        %vm3194 = vcmask 1046528
        %v3195 = vsel %vm3194, %v3193, %v3180
        %v3196 = vld [vmem:[%s8] sm:$0x1]
        %v3198 = vlaneseq
        %v3199 = vshrl.u32 %v3198, 7
        %v3200 = vsub.s32 0, %v3199
        %v3201 = vrot.slane %v3196, %v3200
        %v3203 = vadd.f32 %v3195, %v3201
        %3204 = vst.msk [vmem:[%s435] sm:$0xff] %vm475, %v3203
        %s3205 = sand.u32 %s265, 1
        %s3206 = scalar_lea.sflag [#allocation4], %s3205
        %s3207 = sand.u32 %s265, 1
        %s3208 = smul.addr %s3207, 8
        %s3209 = scalar_lea.vmem [#allocation5], %s3208
        %s3210 = sand.u32 %s291, 1
        %s3211 = scalar_lea.sflag [#allocation7], %s3210
        %s3212 = sand.u32 %s291, 1
        %s3213 = smul.addr %s3212, 1024
        %s3214 = scalar_lea.vmem [#allocation6], %s3213
        // Predicated region
        $region65: #{tpu_custom_call.1} parent=59 // pred_check
          %p3215 = pneg %p275
        $region66: #{tpu_custom_call.1} parent=59 // pred_check_branch
          %3217 = sbr.rel (%p3215) target = $region68
        $region67: #{tpu_custom_call.1} parent=59 // pred_region
          %s3219 = ssub.s32 128, 128
          %3220 = vsyncadd %s3206, %s3219
          %s3221 = smul.addr %s32, 128
          %s3222 = scalar_lea.hbm %s10, %s3221
          %s3224 = sshll.u32 %s3209, 4
          %s3225 = int_to_ptr.vmem [resolvable:$true] %s3224
          %3227 = dma.vmem_to_hbm [thread:$0]  %s3225, 128, %s3222, %s3206
        $region68: #{tpu_custom_call.1} parent=59 // pred_fallthru
          _
        // Predicated region
        $region69: #{tpu_custom_call.1} parent=59 // pred_check
          %p3228 = pneg %p301
        $region70: #{tpu_custom_call.1} parent=59 // pred_check_branch
          %3230 = sbr.rel (%p3228) target = $region72
        $region71: #{tpu_custom_call.1} parent=59 // pred_region
          %s3231 = smul.u32 8, %s32
          %s3233 = ssub.s32 16384, 16384
          %3234 = vsyncadd %s3211, %s3233
          %s3235 = smul.addr %s3231, 16
          %s3236 = smul.addr %s3235, 128
          %s3237 = scalar_lea.hbm %s11, %s3236
          %s3238 = sshll.u32 %s3214, 4
          %s3239 = int_to_ptr.vmem [resolvable:$true] %s3238
          %3244 = dma.vmem_to_hbm [thread:$0]  %s3239, 16384, %s3237, %s3211, 128, 128, 8
        $region72: #{tpu_custom_call.1} parent=59 // pred_fallthru
          _
      $region60: #{tpu_custom_call.1} parent=5 // pred_fallthru
        _
      %p3245 = scmp.le.s32.totalorder 2, %s27
      // Predicated region
      $region73: #{tpu_custom_call.1} parent=5 // pred_check
        %p3246 = pneg %p3245
      $region74: #{tpu_custom_call.1} parent=5 // pred_check_branch
        %3248 = sbr.rel (%p3246) target = $region76
      $region75: #{tpu_custom_call.1} parent=5 // pred_region
        %s3249 = ssub.s32 %s27, 2
        // Predicated region
        $region77: #{tpu_custom_call.1} parent=75 // pred_check
          %p3250 = pneg %p281
        $region78: #{tpu_custom_call.1} parent=75 // pred_check_branch
          %3252 = sbr.rel (%p3250) target = $region80
        $region79: #{tpu_custom_call.1} parent=75 // pred_region
          %s3253 = sand.u32 %s266, 1
          %s3254 = scalar_lea.sflag [#allocation4], %s3253
          %s3255 = sand.u32 %s266, 1
          %s3256 = smul.addr %s3255, 8
          %s3257 = scalar_lea.vmem [#allocation5], %s3256
          %3258 = dma.done %s3254, 128
        $region80: #{tpu_custom_call.1} parent=75 // pred_fallthru
          _
        // Predicated region
        $region81: #{tpu_custom_call.1} parent=75 // pred_check
          %p3259 = pneg %p307
        $region82: #{tpu_custom_call.1} parent=75 // pred_check_branch
          %3261 = sbr.rel (%p3259) target = $region84
        $region83: #{tpu_custom_call.1} parent=75 // pred_region
          %s3262 = sand.u32 %s292, 1
          %s3263 = scalar_lea.sflag [#allocation7], %s3262
          %s3264 = sand.u32 %s292, 1
          %s3265 = smul.addr %s3264, 1024
          %s3266 = scalar_lea.vmem [#allocation6], %s3265
          %3267 = dma.done %s3263, 16384
        $region84: #{tpu_custom_call.1} parent=75 // pred_fallthru
          _
      $region76: #{tpu_custom_call.1} parent=5 // pred_fallthru
        _
    $region6: #{tpu_custom_call.1} parent=1 // loop_footer
      %s31 = sadd.s32 1, %s27
    $region7: #{tpu_custom_call.1} parent=1 // loop_footer_branch
      %26 = sbr.rel target = $region3
    $region8: #{tpu_custom_call.1} parent=1 // loop_exit
      _
    %3268 = vsyncpa [#allocation3], 1
    %s3269 = scalar_lea.sflag [#allocation3], 1
    %3270 = vsyncpa %s3269, 1
    %3271 = vsyncpa [#allocation4], 1
    %s3272 = scalar_lea.sflag [#allocation4], 1
    %3273 = vsyncpa %s3272, 1
    %3274 = vsyncpa [#allocation7], 1
    %s3275 = scalar_lea.sflag [#allocation7], 1
    %3276 = vsyncpa %s3275, 1

</llo_original>
